<compile_context>
chip_gen: v6e
topology: v6e:2x2x1
jax: 0.10.0
libtpu: 0.0.40
codegen_flags: <defaults>
</compile_context>

<pallas_src>
import math
from functools import partial

import jax
import jax.numpy as jnp
from jax import lax
from jax.experimental import pallas as pl
from jax.experimental.pallas import tpu as pltpu

BETA1 = 200000.0
BETA2 = 200000.0
MU = 50000.0

_SMEM = pl.BlockSpec(memory_space=pltpu.MemorySpace.SMEM)
_VMEM_LIMIT = 32 * 1024 * 1024     # safe on v5e(128M)/v6e(128M)/v7x(64M physical)


def _round_up(a, b):
    return ((a + b - 1) // b) * b


# ----------------------------- Pallas kernels -----------------------------

def _pa_fused_kernel(w1_ref, b1_ref, w2_ref, b2_ref, g_ref, out_ref,
                     *, thresh, mg, ng):
    """Fused thresh_l1 + PALayer (conv7+ReLU, conv7+Sigmoid, gate) for one
    (filter, image) grid point.

    g_ref/out_ref: (1, 1, Hb, Wb) VMEM; the image occupies [0:mg, 0:ng] and the
    rest is zero (Hb multiple of 8, Wb multiple of 128, >=6 rows/cols margin).
    w*_ref: (Fn, 49) SMEM, b*_ref: (Fn,) SMEM; filter index = program_id(0).

    The 7x7 'same' convs use pltpu.roll (XLU) shifts of the zero-margined
    buffer: circular wrap lands in the zero margin, so on [0:mg, 0:ng] the
    result equals a zero-padded conv.  No misaligned value slices.
    """
    f = pl.program_id(0)
    g = g_ref[0, 0]                                    # (Hb, Wb)
    Hb, Wb = g.shape

    # soft threshold: sign(x)*max(|x|-t,0) == relu(x-t) - relu(-x-t); 0 -> 0,
    # so the zero margin stays zero.
    z = jnp.maximum(g - thresh, 0.0) - jnp.maximum(-g - thresh, 0.0)

    row = lax.broadcasted_iota(jnp.int32, (Hb, Wb), 0)
    col = lax.broadcasted_iota(jnp.int32, (Hb, Wb), 1)
    valid = jnp.logical_and(row < mg, col < ng)

    def conv7(x, w_ref):
        # x must be zero outside [0:mg, 0:ng); result is valid on [0:mg, 0:ng).
        acc = jnp.zeros((Hb, Wb), jnp.float32)
        for dx in range(7):                            # 7 lane shifts, reused
            sx = (3 - dx) % Wb
            xs = pltpu.roll(x, sx, axis=1) if sx else x
            for dy in range(7):                        # sublane shifts (XLU)
                sy = (3 - dy) % Hb
                xsh = pltpu.roll(xs, sy, axis=0) if sy else xs
                acc = acc + w_ref[f, dy * 7 + dx] * xsh
        return acc

    c1 = conv7(z, w1_ref) + b1_ref[f]
    r = jnp.where(valid, jnp.maximum(c1, 0.0), 0.0)    # zero outside image
    c2 = conv7(r, w2_ref) + b2_ref[f]
    att = pl.reciprocal(1.0 + jnp.exp(-c2), approx=True)   # sigmoid via EUP
    out_ref[0, 0] = att * z                            # zero outside image


def _freq_solve_kernel(fkr, fki, fur, fui, ffr, ffi, fzr, fzi, outr, outi,
                       *, ratio, n_filters):
    """Frequency-domain elementwise solve, split re/im, one (row-tile, image):

      num = ratio*conj(Fk)*Fu + sum_f conj(Ff)*Fz
      den = ratio*|Fk|^2      + sum_f |Ff|^2       (no epsilon, as in torch)
    """
    kr = fkr[0]; ki = fki[0]                    # (tm, nf)
    ur = fur[0]; ui = fui[0]
    den = ratio * (kr * kr + ki * ki)
    numr = ratio * (kr * ur + ki * ui)
    numi = ratio * (kr * ui - ki * ur)
    for fidx in range(n_filters):
        fr = ffr[fidx]; fi = ffi[fidx]          # shared across images
        zr = fzr[fidx, 0]; zi = fzi[fidx, 0]
        den = den + fr * fr + fi * fi
        numr = numr + fr * zr + fi * zi
        numi = numi + fr * zi - fi * zr
    inv = pl.reciprocal(den, approx=True)       # EUP slot, no f32 divide
    outr[0] = numr * inv
    outi[0] = numi * inv


def _u_update_kernel(ypad_ref, gk_ref, minv_ref, u_ref, *, coef):
    """u = (yPadding + (beta2/mu)*gk) * (1/M)   (1/M precomputed, broadcast)."""
    u_ref[...] = (ypad_ref[...] + coef * gk_ref[...]) * minv_ref[...]


# ----------------------------- kernel wrappers -----------------------------

def pa_layer_fused(g_all, w1, b1, w2, b2, *, thresh, mg, ng):
    """g_all: (Fn, N, mg, ng) f32 -> (Fn, N, Hb, Wb) f32 with the PA output in
    [:, :, :mg, :ng] and exact zeros elsewhere (lane-dense, fft-ready)."""
    Fn, N, _, _ = g_all.shape
    Hb = _round_up(mg + 6, 8)          # sublane aligned, >=6 zero margin
    Wb = _round_up(ng + 6, 128)        # lane dense, >=6 zero margin
    gbuf = jnp.pad(g_all, ((0, 0), (0, 0), (0, Hb - mg), (0, Wb - ng)))
    blk = pl.BlockSpec((1, 1, Hb, Wb), lambda fi, ni: (fi, ni, 0, 0))
    return pl.pallas_call(
        partial(_pa_fused_kernel, thresh=thresh, mg=mg, ng=ng),
        grid=(Fn, N),
        out_shape=jax.ShapeDtypeStruct((Fn, N, Hb, Wb), jnp.float32),
        in_specs=[_SMEM, _SMEM, _SMEM, _SMEM, blk],
        out_specs=blk,
        compiler_params=pltpu.CompilerParams(
            dimension_semantics=("parallel", "parallel"),
            vmem_limit_bytes=_VMEM_LIMIT),
    )(w1, b1, w2, b2, gbuf)


def freq_solve(Fk, Fu, Ff, Fz, ratio):
    """Fk, Fu: (N, mf, nf) complex; Ff: (Fn, mf, nf); Fz: (Fn, N, mf, nf).
    Returns num/den as (N, mf, nf) complex64.  Ff is NOT broadcast over N in
    HBM -- the same block is reused for every image via its index_map."""
    Fn, N, mf, nf = Fz.shape
    f32 = jnp.float32
    fkr, fki = jnp.real(Fk).astype(f32), jnp.imag(Fk).astype(f32)
    fur, fui = jnp.real(Fu).astype(f32), jnp.imag(Fu).astype(f32)
    ffr, ffi = jnp.real(Ff).astype(f32), jnp.imag(Ff).astype(f32)
    fzr, fzi = jnp.real(Fz).astype(f32), jnp.imag(Fz).astype(f32)

    # Row tile: as large as possible while the double-buffered working set
    # stays ~12 MiB (fits v5e's 16 MiB scoped default and v7x's 64 MiB VMEM).
    tm = mf
    while tm > 8 and (6 + 4 * Fn) * tm * nf * 4 * 2 > (12 << 20):
        tm //= 2

    per_n = pl.BlockSpec((1, tm, nf), lambda m, n: (n, m, 0))
    per_f = pl.BlockSpec((Fn, tm, nf), lambda m, n: (0, m, 0))
    per_fn = pl.BlockSpec((Fn, 1, tm, nf), lambda m, n: (0, n, m, 0))

    outr, outi = pl.pallas_call(
        partial(_freq_solve_kernel, ratio=ratio, n_filters=Fn),
        grid=(mf // tm, N),
        out_shape=[jax.ShapeDtypeStruct((N, mf, nf), f32),
                   jax.ShapeDtypeStruct((N, mf, nf), f32)],
        in_specs=[per_n, per_n, per_n, per_n, per_f, per_f, per_fn, per_fn],
        out_specs=[per_n, per_n],
        compiler_params=pltpu.CompilerParams(
            dimension_semantics=("parallel", "parallel"),
            vmem_limit_bytes=_VMEM_LIMIT),
    )(fkr, fki, fur, fui, ffr, ffi, fzr, fzi)
    return outr + 1j * outi


def u_update(ypad, gk, minv, coef):
    """ypad, gk: (N, Hu, Wu) f32; minv: (1, Hu, Wu) f32 (broadcast via index_map)."""
    N, Hu, Wu = ypad.shape
    per_n = pl.BlockSpec((1, Hu, Wu), lambda n: (n, 0, 0))
    bcast = pl.BlockSpec((1, Hu, Wu), lambda n: (0, 0, 0))
    return pl.pallas_call(
        partial(_u_update_kernel, coef=coef),
        grid=(N,),
        out_shape=jax.ShapeDtypeStruct((N, Hu, Wu), jnp.float32),
        in_specs=[per_n, per_n, bcast],
        out_specs=per_n,
        compiler_params=pltpu.CompilerParams(
            dimension_semantics=("parallel",),
            vmem_limit_bytes=_VMEM_LIMIT),
    )(ypad, gk, minv)


# ----------------------------- DecovNet forward -----------------------------

def _precompute(y, k, filters):
    """Iteration-invariant quantities (shapes, Fk, ypad, 1/M) computed once."""
    B, C, mb, nb = y.shape
    _, _, mk, nk = k.shape
    assert mk == nk, "square blur kernel assumed (matches the module's hardcoded M)"
    mi, ni = mb + mk - 1, nb + nk - 1
    fh = max(int(f.shape[2]) for f in filters)
    fw = max(int(f.shape[3]) for f in filters)
    mg, ng = mi + fh - 1, ni + fw - 1
    mf = int(2 ** math.ceil(math.log2(max(mg, mi + mk - 1))))
    nf = int(2 ** math.ceil(math.log2(max(ng, ni + nk - 1))))
    N = B * C

    # torch F.pad order: (k.shape[2]-1 on W, k.shape[3]-1 on H) -- identical
    # because mk == nk (asserted above).
    pad_spec = ((0, 0), (0, 0), (nk - 1, nk - 1), (mk - 1, mk - 1))
    ypad = jnp.pad(y, pad_spec).astype(jnp.float32)
    Hu, Wu = ypad.shape[2], ypad.shape[3]

    M = jnp.pad(jnp.ones((1, 1, mb, nb), jnp.float32),
                ((0, 0), (0, 0), (nk - 1, nk - 1), (mk - 1, mk - 1))) + BETA2 / MU
    Minv = (1.0 / M).reshape(1, Hu, Wu)              # hoisted reciprocal of M

    Fk = jnp.fft.fft2(k, s=(mf, nf)).reshape(N, mf, nf)
    Fk_gk = jnp.fft.fft2(k, s=(Hu, Wu))              # (B, C, mi+mk-1, ni+nk-1)

    return dict(B=B, C=C, N=N, mi=mi, ni=ni, mg=mg, ng=ng, mf=mf, nf=nf,
                Hu=Hu, Wu=Wu, pad_spec=pad_spec,
                ypad=ypad.reshape(N, Hu, Wu), Minv=Minv, Fk=Fk, Fk_gk=Fk_gk)


def decov_net_iter(y, k, g_all, u, params, pre):
    B, C, N = pre["B"], pre["C"], pre["N"]
    mi, ni = pre["mi"], pre["ni"]
    mg, ng = pre["mg"], pre["ng"]
    mf, nf = pre["mf"], pre["nf"]
    Hu, Wu = pre["Hu"], pre["Wu"]
    filters = params["filters"]
    Fn = len(filters)

    if u is None:
        u = jnp.pad(y, pre["pad_spec"], mode="edge")
    if g_all is None:
        g_all = jnp.zeros((Fn, B, C, mg, ng), jnp.float32)

    # thresh_l1 + PALayer for ALL filters in a single fused Pallas call.
    W1 = jnp.stack([p[0].reshape(-1) for p in params["pa"]]).astype(jnp.float32)
    B1 = jnp.stack([p[1].reshape(()) for p in params["pa"]]).astype(jnp.float32)
    W2 = jnp.stack([p[2].reshape(-1) for p in params["pa"]]).astype(jnp.float32)
    B2 = jnp.stack([p[3].reshape(()) for p in params["pa"]]).astype(jnp.float32)
    za_buf = pa_layer_fused(g_all.reshape(Fn, N, mg, ng).astype(jnp.float32),
                            W1, B1, W2, B2, thresh=1.0 / BETA1, mg=mg, ng=ng)
    # za_buf is exactly zero outside [:mg, :ng], so fft2(.., s=(mf, nf)) equals
    # the fft of the cropped (mg, ng) image -- no extra crop/copy needed.
    Fz = jnp.fft.fft2(za_buf, s=(mf, nf))                              # (Fn,N,mf,nf)

    Ff = jnp.stack([jnp.fft.fft2(f[0, 0], s=(mf, nf)) for f in filters])  # (Fn,mf,nf)
    Fu = jnp.fft.fft2(u, s=(mf, nf)).reshape(N, mf, nf)

    Xhat = freq_solve(pre["Fk"], Fu, Ff, Fz, ratio=BETA2 / BETA1)      # (N,mf,nf)
    x = jnp.real(jnp.fft.ifft2(Xhat.reshape(B, C, mf, nf), s=(mf, nf)))
    x = x[:, :, :mi, :ni]

    Ffg = jnp.stack([jnp.fft.fft2(f[0, 0], s=(mg, ng)) for f in filters])
    Fx_g = jnp.fft.fft2(x, s=(mg, ng))
    g_new = jnp.real(jnp.fft.ifft2(Fx_g[None] * Ffg[:, None, None]))   # (Fn,B,C,mg,ng)

    gk = jnp.real(jnp.fft.ifft2(jnp.fft.fft2(x, s=(Hu, Wu)) * pre["Fk_gk"]))

    u_new = u_update(pre["ypad"], gk.reshape(N, Hu, Wu).astype(jnp.float32),
                     pre["Minv"], coef=BETA2 / MU).reshape(B, C, Hu, Wu)
    return x, g_new, u_new


def decov_net_individual(y, k, params_list, g=None, u=None):
    pre = _precompute(y, k, params_list[0]["filters"])
    g_all = jnp.stack(g) if g is not None else None
    x = None
    for params in params_list:
        x, g_all, u = decov_net_iter(y, k, g_all, u, params, pre)
    g_list = [g_all[i] for i in range(g_all.shape[0])]
    return x, g_list, u


# ----------------------------- parameter init -----------------------------

def init_params(key, max_iter=2, filter_number=2):
    """Deterministic params: per-iteration filters (1,1,4,4) and PALayer convs."""
    params_list = []
    for _ in range(max_iter):
        keys = jax.random.split(key, 5 * filter_number + 1)
        key = keys[0]
        ks = iter(keys[1:])
        filters = [jax.random.uniform(next(ks), (1, 1, 4, 4), jnp.float32)
                   for _ in range(filter_number)]
        pa = []
        for _ in range(filter_number):
            w1 = jax.random.normal(next(ks), (7, 7), jnp.float32) * 0.1
            b1 = jax.random.normal(next(ks), (1,), jnp.float32) * 0.1
            w2 = jax.random.normal(next(ks), (7, 7), jnp.float32) * 0.1
            b2 = jax.random.normal(next(ks), (1,), jnp.float32) * 0.1
            pa.append((w1, b1, w2, b2))
        params_list.append({"filters": filters, "pa": pa})
    return params_list


# --------------------------------- main ---------------------------------

if __name__ == "__main__":
    key = jax.random.PRNGKey(0)
    ky, kk, kp = jax.random.split(key, 3)

    B, C = 1, 1                 # PALayer's Conv2d(1,1,...) requires 1 channel
    y = jax.random.normal(ky, (B, C, 32, 32), jnp.float32)
    k = jax.random.uniform(kk, (B, C, 5, 5), jnp.float32)
    k = k / jnp.sum(k)

    params_list = init_params(kp, max_iter=2, filter_number=2)

    run = jax.jit(decov_net_individual)
    x, g, u = run(y, k, params_list)

    jax.block_until_ready(x)
    jax.block_until_ready(u)
    for gi in g:
        jax.block_until_ready(gi)

    assert x.shape == (B, C, 36, 36)
    assert u.shape == (B, C, 40, 40)
    assert all(gi.shape == (B, C, 39, 39) for gi in g)
    print("KERNEL_OK")
</pallas_src>

<mosaic_0001>
module attributes {stable_mosaic.version = 11 : i64} {
  func.func @_pa_fused_kernel(%arg0: i32, %arg1: i32, %arg2: memref<2x49xf32, #tpu.memory_space<smem>>, %arg3: memref<2xf32, #tpu.memory_space<smem>>, %arg4: memref<2x49xf32, #tpu.memory_space<smem>>, %arg5: memref<2xf32, #tpu.memory_space<smem>>, %arg6: memref<1x1x48x128xf32, #tpu.memory_space<vmem>>, %arg7: memref<1x1x48x128xf32, #tpu.memory_space<vmem>>) attributes {dimension_semantics = [#tpu.dimension_semantics<parallel>, #tpu.dimension_semantics<parallel>], iteration_bounds = array<i64: 2, 1>, scalar_prefetch = 0 : i64, scratch_operands = 0 : i64, tpu.core_type = #tpu.core_type<tc>, window_params = [{transform_indices = @transform_0, window_bounds = array<i64: 2, 49>}, {transform_indices = @transform_1, window_bounds = array<i64: 2>}, {transform_indices = @transform_2, window_bounds = array<i64: 2, 49>}, {transform_indices = @transform_3, window_bounds = array<i64: 2>}, {transform_indices = @transform_4, window_bounds = array<i64: 1, 1, 48, 128>}, {transform_indices = @transform_5, window_bounds = array<i64: 1, 1, 48, 128>}]} {
    %c0 = arith.constant 0 : index
    %c0_0 = arith.constant 0 : index
    %c0_1 = arith.constant 0 : index
    %c0_2 = arith.constant 0 : index
    %0 = vector.load %arg6[%c0, %c0_0, %c0_1, %c0_2] : memref<1x1x48x128xf32, #tpu.memory_space<vmem>>, vector<1x1x48x128xf32>
    %1 = vector.shape_cast %0 : vector<1x1x48x128xf32> to vector<48x128xf32>
    %cst = arith.constant 5.000000e-06 : f32
    %2 = vector.broadcast %cst : f32 to vector<48x128xf32>
    %3 = arith.subf %1, %2 : vector<48x128xf32>
    %cst_3 = arith.constant 0.000000e+00 : f32
    %4 = vector.broadcast %cst_3 : f32 to vector<48x128xf32>
    %5 = arith.maximumf %3, %4 : vector<48x128xf32>
    %cst_4 = arith.constant 0.000000e+00 : f32
    %6 = vector.broadcast %cst_4 : f32 to vector<48x128xf32>
    %7 = arith.subf %6, %1 : vector<48x128xf32>
    %cst_5 = arith.constant 5.000000e-06 : f32
    %8 = vector.broadcast %cst_5 : f32 to vector<48x128xf32>
    %9 = arith.subf %7, %8 : vector<48x128xf32>
    %cst_6 = arith.constant 0.000000e+00 : f32
    %10 = vector.broadcast %cst_6 : f32 to vector<48x128xf32>
    %11 = arith.maximumf %9, %10 : vector<48x128xf32>
    %12 = arith.subf %5, %11 : vector<48x128xf32>
    %13 = tpu.iota {dimensions = array<i32: 0>} : vector<48x128xi32>
    %14 = tpu.iota {dimensions = array<i32: 1>} : vector<48x128xi32>
    %c39_i32 = arith.constant 39 : i32
    %15 = vector.broadcast %c39_i32 : i32 to vector<48x128xi32>
    %16 = arith.cmpi slt, %13, %15 : vector<48x128xi32>
    %c39_i32_7 = arith.constant 39 : i32
    %17 = vector.broadcast %c39_i32_7 : i32 to vector<48x128xi32>
    %18 = arith.cmpi slt, %14, %17 : vector<48x128xi32>
    %19 = arith.andi %16, %18 : vector<48x128xi1>
    %cst_8 = arith.constant 0.000000e+00 : f32
    %20 = vector.broadcast %cst_8 : f32 to vector<48x128xf32>
    %c3_i32 = arith.constant 3 : i32
    %21 = tpu.dynamic_rotate %12 by %c3_i32 dim 1 : vector<48x128xf32>, i32 -> vector<48x128xf32>
    %c3_i32_9 = arith.constant 3 : i32
    %22 = tpu.dynamic_rotate %21 by %c3_i32_9 dim 0 : vector<48x128xf32>, i32 -> vector<48x128xf32>
    %23 = arith.index_cast %arg0 : i32 to index
    %c0_10 = arith.constant 0 : index
    %24 = memref.load %arg2[%23, %c0_10] : memref<2x49xf32, #tpu.memory_space<smem>>
    %25 = vector.broadcast %24 : f32 to vector<48x128xf32>
    %26 = arith.mulf %25, %22 : vector<48x128xf32>
    %27 = arith.addf %20, %26 : vector<48x128xf32>
    %c2_i32 = arith.constant 2 : i32
    %28 = tpu.dynamic_rotate %21 by %c2_i32 dim 0 : vector<48x128xf32>, i32 -> vector<48x128xf32>
    %29 = arith.index_cast %arg0 : i32 to index
    %c7 = arith.constant 7 : index
    %30 = memref.load %arg2[%29, %c7] : memref<2x49xf32, #tpu.memory_space<smem>>
    %31 = vector.broadcast %30 : f32 to vector<48x128xf32>
    %32 = arith.mulf %31, %28 : vector<48x128xf32>
    %33 = arith.addf %27, %32 : vector<48x128xf32>
    %c1_i32 = arith.constant 1 : i32
    %34 = tpu.dynamic_rotate %21 by %c1_i32 dim 0 : vector<48x128xf32>, i32 -> vector<48x128xf32>
    %35 = arith.index_cast %arg0 : i32 to index
    %c14 = arith.constant 14 : index
    %36 = memref.load %arg2[%35, %c14] : memref<2x49xf32, #tpu.memory_space<smem>>
    %37 = vector.broadcast %36 : f32 to vector<48x128xf32>
    %38 = arith.mulf %37, %34 : vector<48x128xf32>
    %39 = arith.addf %33, %38 : vector<48x128xf32>
    %40 = arith.index_cast %arg0 : i32 to index
    %c21 = arith.constant 21 : index
    %41 = memref.load %arg2[%40, %c21] : memref<2x49xf32, #tpu.memory_space<smem>>
    %42 = vector.broadcast %41 : f32 to vector<48x128xf32>
    %43 = arith.mulf %42, %21 : vector<48x128xf32>
    %44 = arith.addf %39, %43 : vector<48x128xf32>
    %c47_i32 = arith.constant 47 : i32
    %45 = tpu.dynamic_rotate %21 by %c47_i32 dim 0 : vector<48x128xf32>, i32 -> vector<48x128xf32>
    %46 = arith.index_cast %arg0 : i32 to index
    %c28 = arith.constant 28 : index
    %47 = memref.load %arg2[%46, %c28] : memref<2x49xf32, #tpu.memory_space<smem>>
    %48 = vector.broadcast %47 : f32 to vector<48x128xf32>
    %49 = arith.mulf %48, %45 : vector<48x128xf32>
    %50 = arith.addf %44, %49 : vector<48x128xf32>
    %c46_i32 = arith.constant 46 : i32
    %51 = tpu.dynamic_rotate %21 by %c46_i32 dim 0 : vector<48x128xf32>, i32 -> vector<48x128xf32>
    %52 = arith.index_cast %arg0 : i32 to index
    %c35 = arith.constant 35 : index
    %53 = memref.load %arg2[%52, %c35] : memref<2x49xf32, #tpu.memory_space<smem>>
    %54 = vector.broadcast %53 : f32 to vector<48x128xf32>
    %55 = arith.mulf %54, %51 : vector<48x128xf32>
    %56 = arith.addf %50, %55 : vector<48x128xf32>
    %c45_i32 = arith.constant 45 : i32
    %57 = tpu.dynamic_rotate %21 by %c45_i32 dim 0 : vector<48x128xf32>, i32 -> vector<48x128xf32>
    %58 = arith.index_cast %arg0 : i32 to index
    %c42 = arith.constant 42 : index
    %59 = memref.load %arg2[%58, %c42] : memref<2x49xf32, #tpu.memory_space<smem>>
    %60 = vector.broadcast %59 : f32 to vector<48x128xf32>
    %61 = arith.mulf %60, %57 : vector<48x128xf32>
    %62 = arith.addf %56, %61 : vector<48x128xf32>
    %c2_i32_11 = arith.constant 2 : i32
    %63 = tpu.dynamic_rotate %12 by %c2_i32_11 dim 1 : vector<48x128xf32>, i32 -> vector<48x128xf32>
    %c3_i32_12 = arith.constant 3 : i32
    %64 = tpu.dynamic_rotate %63 by %c3_i32_12 dim 0 : vector<48x128xf32>, i32 -> vector<48x128xf32>
    %65 = arith.index_cast %arg0 : i32 to index
    %c1 = arith.constant 1 : index
    %66 = memref.load %arg2[%65, %c1] : memref<2x49xf32, #tpu.memory_space<smem>>
    %67 = vector.broadcast %66 : f32 to vector<48x128xf32>
    %68 = arith.mulf %67, %64 : vector<48x128xf32>
    %69 = arith.addf %62, %68 : vector<48x128xf32>
    %c2_i32_13 = arith.constant 2 : i32
    %70 = tpu.dynamic_rotate %63 by %c2_i32_13 dim 0 : vector<48x128xf32>, i32 -> vector<48x128xf32>
    %71 = arith.index_cast %arg0 : i32 to index
    %c8 = arith.constant 8 : index
    %72 = memref.load %arg2[%71, %c8] : memref<2x49xf32, #tpu.memory_space<smem>>
    %73 = vector.broadcast %72 : f32 to vector<48x128xf32>
    %74 = arith.mulf %73, %70 : vector<48x128xf32>
    %75 = arith.addf %69, %74 : vector<48x128xf32>
    %c1_i32_14 = arith.constant 1 : i32
    %76 = tpu.dynamic_rotate %63 by %c1_i32_14 dim 0 : vector<48x128xf32>, i32 -> vector<48x128xf32>
    %77 = arith.index_cast %arg0 : i32 to index
    %c15 = arith.constant 15 : index
    %78 = memref.load %arg2[%77, %c15] : memref<2x49xf32, #tpu.memory_space<smem>>
    %79 = vector.broadcast %78 : f32 to vector<48x128xf32>
    %80 = arith.mulf %79, %76 : vector<48x128xf32>
    %81 = arith.addf %75, %80 : vector<48x128xf32>
    %82 = arith.index_cast %arg0 : i32 to index
    %c22 = arith.constant 22 : index
    %83 = memref.load %arg2[%82, %c22] : memref<2x49xf32, #tpu.memory_space<smem>>
    %84 = vector.broadcast %83 : f32 to vector<48x128xf32>
    %85 = arith.mulf %84, %63 : vector<48x128xf32>
    %86 = arith.addf %81, %85 : vector<48x128xf32>
    %c47_i32_15 = arith.constant 47 : i32
    %87 = tpu.dynamic_rotate %63 by %c47_i32_15 dim 0 : vector<48x128xf32>, i32 -> vector<48x128xf32>
    %88 = arith.index_cast %arg0 : i32 to index
    %c29 = arith.constant 29 : index
    %89 = memref.load %arg2[%88, %c29] : memref<2x49xf32, #tpu.memory_space<smem>>
    %90 = vector.broadcast %89 : f32 to vector<48x128xf32>
    %91 = arith.mulf %90, %87 : vector<48x128xf32>
    %92 = arith.addf %86, %91 : vector<48x128xf32>
    %c46_i32_16 = arith.constant 46 : i32
    %93 = tpu.dynamic_rotate %63 by %c46_i32_16 dim 0 : vector<48x128xf32>, i32 -> vector<48x128xf32>
    %94 = arith.index_cast %arg0 : i32 to index
    %c36 = arith.constant 36 : index
    %95 = memref.load %arg2[%94, %c36] : memref<2x49xf32, #tpu.memory_space<smem>>
    %96 = vector.broadcast %95 : f32 to vector<48x128xf32>
    %97 = arith.mulf %96, %93 : vector<48x128xf32>
    %98 = arith.addf %92, %97 : vector<48x128xf32>
    %c45_i32_17 = arith.constant 45 : i32
    %99 = tpu.dynamic_rotate %63 by %c45_i32_17 dim 0 : vector<48x128xf32>, i32 -> vector<48x128xf32>
    %100 = arith.index_cast %arg0 : i32 to index
    %c43 = arith.constant 43 : index
    %101 = memref.load %arg2[%100, %c43] : memref<2x49xf32, #tpu.memory_space<smem>>
    %102 = vector.broadcast %101 : f32 to vector<48x128xf32>
    %103 = arith.mulf %102, %99 : vector<48x128xf32>
    %104 = arith.addf %98, %103 : vector<48x128xf32>
    %c1_i32_18 = arith.constant 1 : i32
    %105 = tpu.dynamic_rotate %12 by %c1_i32_18 dim 1 : vector<48x128xf32>, i32 -> vector<48x128xf32>
    %c3_i32_19 = arith.constant 3 : i32
    %106 = tpu.dynamic_rotate %105 by %c3_i32_19 dim 0 : vector<48x128xf32>, i32 -> vector<48x128xf32>
    %107 = arith.index_cast %arg0 : i32 to index
    %c2 = arith.constant 2 : index
    %108 = memref.load %arg2[%107, %c2] : memref<2x49xf32, #tpu.memory_space<smem>>
    %109 = vector.broadcast %108 : f32 to vector<48x128xf32>
    %110 = arith.mulf %109, %106 : vector<48x128xf32>
    %111 = arith.addf %104, %110 : vector<48x128xf32>
    %c2_i32_20 = arith.constant 2 : i32
    %112 = tpu.dynamic_rotate %105 by %c2_i32_20 dim 0 : vector<48x128xf32>, i32 -> vector<48x128xf32>
    %113 = arith.index_cast %arg0 : i32 to index
    %c9 = arith.constant 9 : index
    %114 = memref.load %arg2[%113, %c9] : memref<2x49xf32, #tpu.memory_space<smem>>
    %115 = vector.broadcast %114 : f32 to vector<48x128xf32>
    %116 = arith.mulf %115, %112 : vector<48x128xf32>
    %117 = arith.addf %111, %116 : vector<48x128xf32>
    %c1_i32_21 = arith.constant 1 : i32
    %118 = tpu.dynamic_rotate %105 by %c1_i32_21 dim 0 : vector<48x128xf32>, i32 -> vector<48x128xf32>
    %119 = arith.index_cast %arg0 : i32 to index
    %c16 = arith.constant 16 : index
    %120 = memref.load %arg2[%119, %c16] : memref<2x49xf32, #tpu.memory_space<smem>>
    %121 = vector.broadcast %120 : f32 to vector<48x128xf32>
    %122 = arith.mulf %121, %118 : vector<48x128xf32>
    %123 = arith.addf %117, %122 : vector<48x128xf32>
    %124 = arith.index_cast %arg0 : i32 to index
    %c23 = arith.constant 23 : index
    %125 = memref.load %arg2[%124, %c23] : memref<2x49xf32, #tpu.memory_space<smem>>
    %126 = vector.broadcast %125 : f32 to vector<48x128xf32>
    %127 = arith.mulf %126, %105 : vector<48x128xf32>
    %128 = arith.addf %123, %127 : vector<48x128xf32>
    %c47_i32_22 = arith.constant 47 : i32
    %129 = tpu.dynamic_rotate %105 by %c47_i32_22 dim 0 : vector<48x128xf32>, i32 -> vector<48x128xf32>
    %130 = arith.index_cast %arg0 : i32 to index
    %c30 = arith.constant 30 : index
    %131 = memref.load %arg2[%130, %c30] : memref<2x49xf32, #tpu.memory_space<smem>>
    %132 = vector.broadcast %131 : f32 to vector<48x128xf32>
    %133 = arith.mulf %132, %129 : vector<48x128xf32>
    %134 = arith.addf %128, %133 : vector<48x128xf32>
    %c46_i32_23 = arith.constant 46 : i32
    %135 = tpu.dynamic_rotate %105 by %c46_i32_23 dim 0 : vector<48x128xf32>, i32 -> vector<48x128xf32>
    %136 = arith.index_cast %arg0 : i32 to index
    %c37 = arith.constant 37 : index
    %137 = memref.load %arg2[%136, %c37] : memref<2x49xf32, #tpu.memory_space<smem>>
    %138 = vector.broadcast %137 : f32 to vector<48x128xf32>
    %139 = arith.mulf %138, %135 : vector<48x128xf32>
    %140 = arith.addf %134, %139 : vector<48x128xf32>
    %c45_i32_24 = arith.constant 45 : i32
    %141 = tpu.dynamic_rotate %105 by %c45_i32_24 dim 0 : vector<48x128xf32>, i32 -> vector<48x128xf32>
    %142 = arith.index_cast %arg0 : i32 to index
    %c44 = arith.constant 44 : index
    %143 = memref.load %arg2[%142, %c44] : memref<2x49xf32, #tpu.memory_space<smem>>
    %144 = vector.broadcast %143 : f32 to vector<48x128xf32>
    %145 = arith.mulf %144, %141 : vector<48x128xf32>
    %146 = arith.addf %140, %145 : vector<48x128xf32>
    %c3_i32_25 = arith.constant 3 : i32
    %147 = tpu.dynamic_rotate %12 by %c3_i32_25 dim 0 : vector<48x128xf32>, i32 -> vector<48x128xf32>
    %148 = arith.index_cast %arg0 : i32 to index
    %c3 = arith.constant 3 : index
    %149 = memref.load %arg2[%148, %c3] : memref<2x49xf32, #tpu.memory_space<smem>>
    %150 = vector.broadcast %149 : f32 to vector<48x128xf32>
    %151 = arith.mulf %150, %147 : vector<48x128xf32>
    %152 = arith.addf %146, %151 : vector<48x128xf32>
    %c2_i32_26 = arith.constant 2 : i32
    %153 = tpu.dynamic_rotate %12 by %c2_i32_26 dim 0 : vector<48x128xf32>, i32 -> vector<48x128xf32>
    %154 = arith.index_cast %arg0 : i32 to index
    %c10 = arith.constant 10 : index
    %155 = memref.load %arg2[%154, %c10] : memref<2x49xf32, #tpu.memory_space<smem>>
    %156 = vector.broadcast %155 : f32 to vector<48x128xf32>
    %157 = arith.mulf %156, %153 : vector<48x128xf32>
    %158 = arith.addf %152, %157 : vector<48x128xf32>
    %c1_i32_27 = arith.constant 1 : i32
    %159 = tpu.dynamic_rotate %12 by %c1_i32_27 dim 0 : vector<48x128xf32>, i32 -> vector<48x128xf32>
    %160 = arith.index_cast %arg0 : i32 to index
    %c17 = arith.constant 17 : index
    %161 = memref.load %arg2[%160, %c17] : memref<2x49xf32, #tpu.memory_space<smem>>
    %162 = vector.broadcast %161 : f32 to vector<48x128xf32>
    %163 = arith.mulf %162, %159 : vector<48x128xf32>
    %164 = arith.addf %158, %163 : vector<48x128xf32>
    %165 = arith.index_cast %arg0 : i32 to index
    %c24 = arith.constant 24 : index
    %166 = memref.load %arg2[%165, %c24] : memref<2x49xf32, #tpu.memory_space<smem>>
    %167 = vector.broadcast %166 : f32 to vector<48x128xf32>
    %168 = arith.mulf %167, %12 : vector<48x128xf32>
    %169 = arith.addf %164, %168 : vector<48x128xf32>
    %c47_i32_28 = arith.constant 47 : i32
    %170 = tpu.dynamic_rotate %12 by %c47_i32_28 dim 0 : vector<48x128xf32>, i32 -> vector<48x128xf32>
    %171 = arith.index_cast %arg0 : i32 to index
    %c31 = arith.constant 31 : index
    %172 = memref.load %arg2[%171, %c31] : memref<2x49xf32, #tpu.memory_space<smem>>
    %173 = vector.broadcast %172 : f32 to vector<48x128xf32>
    %174 = arith.mulf %173, %170 : vector<48x128xf32>
    %175 = arith.addf %169, %174 : vector<48x128xf32>
    %c46_i32_29 = arith.constant 46 : i32
    %176 = tpu.dynamic_rotate %12 by %c46_i32_29 dim 0 : vector<48x128xf32>, i32 -> vector<48x128xf32>
    %177 = arith.index_cast %arg0 : i32 to index
    %c38 = arith.constant 38 : index
    %178 = memref.load %arg2[%177, %c38] : memref<2x49xf32, #tpu.memory_space<smem>>
    %179 = vector.broadcast %178 : f32 to vector<48x128xf32>
    %180 = arith.mulf %179, %176 : vector<48x128xf32>
    %181 = arith.addf %175, %180 : vector<48x128xf32>
    %c45_i32_30 = arith.constant 45 : i32
    %182 = tpu.dynamic_rotate %12 by %c45_i32_30 dim 0 : vector<48x128xf32>, i32 -> vector<48x128xf32>
    %183 = arith.index_cast %arg0 : i32 to index
    %c45 = arith.constant 45 : index
    %184 = memref.load %arg2[%183, %c45] : memref<2x49xf32, #tpu.memory_space<smem>>
    %185 = vector.broadcast %184 : f32 to vector<48x128xf32>
    %186 = arith.mulf %185, %182 : vector<48x128xf32>
    %187 = arith.addf %181, %186 : vector<48x128xf32>
    %c127_i32 = arith.constant 127 : i32
    %188 = tpu.dynamic_rotate %12 by %c127_i32 dim 1 : vector<48x128xf32>, i32 -> vector<48x128xf32>
    %c3_i32_31 = arith.constant 3 : i32
    %189 = tpu.dynamic_rotate %188 by %c3_i32_31 dim 0 : vector<48x128xf32>, i32 -> vector<48x128xf32>
    %190 = arith.index_cast %arg0 : i32 to index
    %c4 = arith.constant 4 : index
    %191 = memref.load %arg2[%190, %c4] : memref<2x49xf32, #tpu.memory_space<smem>>
    %192 = vector.broadcast %191 : f32 to vector<48x128xf32>
    %193 = arith.mulf %192, %189 : vector<48x128xf32>
    %194 = arith.addf %187, %193 : vector<48x128xf32>
    %c2_i32_32 = arith.constant 2 : i32
    %195 = tpu.dynamic_rotate %188 by %c2_i32_32 dim 0 : vector<48x128xf32>, i32 -> vector<48x128xf32>
    %196 = arith.index_cast %arg0 : i32 to index
    %c11 = arith.constant 11 : index
    %197 = memref.load %arg2[%196, %c11] : memref<2x49xf32, #tpu.memory_space<smem>>
    %198 = vector.broadcast %197 : f32 to vector<48x128xf32>
    %199 = arith.mulf %198, %195 : vector<48x128xf32>
    %200 = arith.addf %194, %199 : vector<48x128xf32>
    %c1_i32_33 = arith.constant 1 : i32
    %201 = tpu.dynamic_rotate %188 by %c1_i32_33 dim 0 : vector<48x128xf32>, i32 -> vector<48x128xf32>
    %202 = arith.index_cast %arg0 : i32 to index
    %c18 = arith.constant 18 : index
    %203 = memref.load %arg2[%202, %c18] : memref<2x49xf32, #tpu.memory_space<smem>>
    %204 = vector.broadcast %203 : f32 to vector<48x128xf32>
    %205 = arith.mulf %204, %201 : vector<48x128xf32>
    %206 = arith.addf %200, %205 : vector<48x128xf32>
    %207 = arith.index_cast %arg0 : i32 to index
    %c25 = arith.constant 25 : index
    %208 = memref.load %arg2[%207, %c25] : memref<2x49xf32, #tpu.memory_space<smem>>
    %209 = vector.broadcast %208 : f32 to vector<48x128xf32>
    %210 = arith.mulf %209, %188 : vector<48x128xf32>
    %211 = arith.addf %206, %210 : vector<48x128xf32>
    %c47_i32_34 = arith.constant 47 : i32
    %212 = tpu.dynamic_rotate %188 by %c47_i32_34 dim 0 : vector<48x128xf32>, i32 -> vector<48x128xf32>
    %213 = arith.index_cast %arg0 : i32 to index
    %c32 = arith.constant 32 : index
    %214 = memref.load %arg2[%213, %c32] : memref<2x49xf32, #tpu.memory_space<smem>>
    %215 = vector.broadcast %214 : f32 to vector<48x128xf32>
    %216 = arith.mulf %215, %212 : vector<48x128xf32>
    %217 = arith.addf %211, %216 : vector<48x128xf32>
    %c46_i32_35 = arith.constant 46 : i32
    %218 = tpu.dynamic_rotate %188 by %c46_i32_35 dim 0 : vector<48x128xf32>, i32 -> vector<48x128xf32>
    %219 = arith.index_cast %arg0 : i32 to index
    %c39 = arith.constant 39 : index
    %220 = memref.load %arg2[%219, %c39] : memref<2x49xf32, #tpu.memory_space<smem>>
    %221 = vector.broadcast %220 : f32 to vector<48x128xf32>
    %222 = arith.mulf %221, %218 : vector<48x128xf32>
    %223 = arith.addf %217, %222 : vector<48x128xf32>
    %c45_i32_36 = arith.constant 45 : i32
    %224 = tpu.dynamic_rotate %188 by %c45_i32_36 dim 0 : vector<48x128xf32>, i32 -> vector<48x128xf32>
    %225 = arith.index_cast %arg0 : i32 to index
    %c46 = arith.constant 46 : index
    %226 = memref.load %arg2[%225, %c46] : memref<2x49xf32, #tpu.memory_space<smem>>
    %227 = vector.broadcast %226 : f32 to vector<48x128xf32>
    %228 = arith.mulf %227, %224 : vector<48x128xf32>
    %229 = arith.addf %223, %228 : vector<48x128xf32>
    %c126_i32 = arith.constant 126 : i32
    %230 = tpu.dynamic_rotate %12 by %c126_i32 dim 1 : vector<48x128xf32>, i32 -> vector<48x128xf32>
    %c3_i32_37 = arith.constant 3 : i32
    %231 = tpu.dynamic_rotate %230 by %c3_i32_37 dim 0 : vector<48x128xf32>, i32 -> vector<48x128xf32>
    %232 = arith.index_cast %arg0 : i32 to index
    %c5 = arith.constant 5 : index
    %233 = memref.load %arg2[%232, %c5] : memref<2x49xf32, #tpu.memory_space<smem>>
    %234 = vector.broadcast %233 : f32 to vector<48x128xf32>
    %235 = arith.mulf %234, %231 : vector<48x128xf32>
    %236 = arith.addf %229, %235 : vector<48x128xf32>
    %c2_i32_38 = arith.constant 2 : i32
    %237 = tpu.dynamic_rotate %230 by %c2_i32_38 dim 0 : vector<48x128xf32>, i32 -> vector<48x128xf32>
    %238 = arith.index_cast %arg0 : i32 to index
    %c12 = arith.constant 12 : index
    %239 = memref.load %arg2[%238, %c12] : memref<2x49xf32, #tpu.memory_space<smem>>
    %240 = vector.broadcast %239 : f32 to vector<48x128xf32>
    %241 = arith.mulf %240, %237 : vector<48x128xf32>
    %242 = arith.addf %236, %241 : vector<48x128xf32>
    %c1_i32_39 = arith.constant 1 : i32
    %243 = tpu.dynamic_rotate %230 by %c1_i32_39 dim 0 : vector<48x128xf32>, i32 -> vector<48x128xf32>
    %244 = arith.index_cast %arg0 : i32 to index
    %c19 = arith.constant 19 : index
    %245 = memref.load %arg2[%244, %c19] : memref<2x49xf32, #tpu.memory_space<smem>>
    %246 = vector.broadcast %245 : f32 to vector<48x128xf32>
    %247 = arith.mulf %246, %243 : vector<48x128xf32>
    %248 = arith.addf %242, %247 : vector<48x128xf32>
    %249 = arith.index_cast %arg0 : i32 to index
    %c26 = arith.constant 26 : index
    %250 = memref.load %arg2[%249, %c26] : memref<2x49xf32, #tpu.memory_space<smem>>
    %251 = vector.broadcast %250 : f32 to vector<48x128xf32>
    %252 = arith.mulf %251, %230 : vector<48x128xf32>
    %253 = arith.addf %248, %252 : vector<48x128xf32>
    %c47_i32_40 = arith.constant 47 : i32
    %254 = tpu.dynamic_rotate %230 by %c47_i32_40 dim 0 : vector<48x128xf32>, i32 -> vector<48x128xf32>
    %255 = arith.index_cast %arg0 : i32 to index
    %c33 = arith.constant 33 : index
    %256 = memref.load %arg2[%255, %c33] : memref<2x49xf32, #tpu.memory_space<smem>>
    %257 = vector.broadcast %256 : f32 to vector<48x128xf32>
    %258 = arith.mulf %257, %254 : vector<48x128xf32>
    %259 = arith.addf %253, %258 : vector<48x128xf32>
    %c46_i32_41 = arith.constant 46 : i32
    %260 = tpu.dynamic_rotate %230 by %c46_i32_41 dim 0 : vector<48x128xf32>, i32 -> vector<48x128xf32>
    %261 = arith.index_cast %arg0 : i32 to index
    %c40 = arith.constant 40 : index
    %262 = memref.load %arg2[%261, %c40] : memref<2x49xf32, #tpu.memory_space<smem>>
    %263 = vector.broadcast %262 : f32 to vector<48x128xf32>
    %264 = arith.mulf %263, %260 : vector<48x128xf32>
    %265 = arith.addf %259, %264 : vector<48x128xf32>
    %c45_i32_42 = arith.constant 45 : i32
    %266 = tpu.dynamic_rotate %230 by %c45_i32_42 dim 0 : vector<48x128xf32>, i32 -> vector<48x128xf32>
    %267 = arith.index_cast %arg0 : i32 to index
    %c47 = arith.constant 47 : index
    %268 = memref.load %arg2[%267, %c47] : memref<2x49xf32, #tpu.memory_space<smem>>
    %269 = vector.broadcast %268 : f32 to vector<48x128xf32>
    %270 = arith.mulf %269, %266 : vector<48x128xf32>
    %271 = arith.addf %265, %270 : vector<48x128xf32>
    %c125_i32 = arith.constant 125 : i32
    %272 = tpu.dynamic_rotate %12 by %c125_i32 dim 1 : vector<48x128xf32>, i32 -> vector<48x128xf32>
    %c3_i32_43 = arith.constant 3 : i32
    %273 = tpu.dynamic_rotate %272 by %c3_i32_43 dim 0 : vector<48x128xf32>, i32 -> vector<48x128xf32>
    %274 = arith.index_cast %arg0 : i32 to index
    %c6 = arith.constant 6 : index
    %275 = memref.load %arg2[%274, %c6] : memref<2x49xf32, #tpu.memory_space<smem>>
    %276 = vector.broadcast %275 : f32 to vector<48x128xf32>
    %277 = arith.mulf %276, %273 : vector<48x128xf32>
    %278 = arith.addf %271, %277 : vector<48x128xf32>
    %c2_i32_44 = arith.constant 2 : i32
    %279 = tpu.dynamic_rotate %272 by %c2_i32_44 dim 0 : vector<48x128xf32>, i32 -> vector<48x128xf32>
    %280 = arith.index_cast %arg0 : i32 to index
    %c13 = arith.constant 13 : index
    %281 = memref.load %arg2[%280, %c13] : memref<2x49xf32, #tpu.memory_space<smem>>
    %282 = vector.broadcast %281 : f32 to vector<48x128xf32>
    %283 = arith.mulf %282, %279 : vector<48x128xf32>
    %284 = arith.addf %278, %283 : vector<48x128xf32>
    %c1_i32_45 = arith.constant 1 : i32
    %285 = tpu.dynamic_rotate %272 by %c1_i32_45 dim 0 : vector<48x128xf32>, i32 -> vector<48x128xf32>
    %286 = arith.index_cast %arg0 : i32 to index
    %c20 = arith.constant 20 : index
    %287 = memref.load %arg2[%286, %c20] : memref<2x49xf32, #tpu.memory_space<smem>>
    %288 = vector.broadcast %287 : f32 to vector<48x128xf32>
    %289 = arith.mulf %288, %285 : vector<48x128xf32>
    %290 = arith.addf %284, %289 : vector<48x128xf32>
    %291 = arith.index_cast %arg0 : i32 to index
    %c27 = arith.constant 27 : index
    %292 = memref.load %arg2[%291, %c27] : memref<2x49xf32, #tpu.memory_space<smem>>
    %293 = vector.broadcast %292 : f32 to vector<48x128xf32>
    %294 = arith.mulf %293, %272 : vector<48x128xf32>
    %295 = arith.addf %290, %294 : vector<48x128xf32>
    %c47_i32_46 = arith.constant 47 : i32
    %296 = tpu.dynamic_rotate %272 by %c47_i32_46 dim 0 : vector<48x128xf32>, i32 -> vector<48x128xf32>
    %297 = arith.index_cast %arg0 : i32 to index
    %c34 = arith.constant 34 : index
    %298 = memref.load %arg2[%297, %c34] : memref<2x49xf32, #tpu.memory_space<smem>>
    %299 = vector.broadcast %298 : f32 to vector<48x128xf32>
    %300 = arith.mulf %299, %296 : vector<48x128xf32>
    %301 = arith.addf %295, %300 : vector<48x128xf32>
    %c46_i32_47 = arith.constant 46 : i32
    %302 = tpu.dynamic_rotate %272 by %c46_i32_47 dim 0 : vector<48x128xf32>, i32 -> vector<48x128xf32>
    %303 = arith.index_cast %arg0 : i32 to index
    %c41 = arith.constant 41 : index
    %304 = memref.load %arg2[%303, %c41] : memref<2x49xf32, #tpu.memory_space<smem>>
    %305 = vector.broadcast %304 : f32 to vector<48x128xf32>
    %306 = arith.mulf %305, %302 : vector<48x128xf32>
    %307 = arith.addf %301, %306 : vector<48x128xf32>
    %c45_i32_48 = arith.constant 45 : i32
    %308 = tpu.dynamic_rotate %272 by %c45_i32_48 dim 0 : vector<48x128xf32>, i32 -> vector<48x128xf32>
    %309 = arith.index_cast %arg0 : i32 to index
    %c48 = arith.constant 48 : index
    %310 = memref.load %arg2[%309, %c48] : memref<2x49xf32, #tpu.memory_space<smem>>
    %311 = vector.broadcast %310 : f32 to vector<48x128xf32>
    %312 = arith.mulf %311, %308 : vector<48x128xf32>
    %313 = arith.addf %307, %312 : vector<48x128xf32>
    %314 = arith.index_cast %arg0 : i32 to index
    %315 = memref.load %arg3[%314] : memref<2xf32, #tpu.memory_space<smem>>
    %316 = vector.broadcast %315 : f32 to vector<48x128xf32>
    %317 = arith.addf %313, %316 : vector<48x128xf32>
    %cst_49 = arith.constant 0.000000e+00 : f32
    %318 = vector.broadcast %cst_49 : f32 to vector<48x128xf32>
    %319 = arith.maximumf %317, %318 : vector<48x128xf32>
    %cst_50 = arith.constant 0.000000e+00 : f32
    %320 = vector.broadcast %cst_50 : f32 to vector<48x128xf32>
    %321 = arith.select %19, %319, %320 : vector<48x128xi1>, vector<48x128xf32>
    %cst_51 = arith.constant 0.000000e+00 : f32
    %322 = vector.broadcast %cst_51 : f32 to vector<48x128xf32>
    %c3_i32_52 = arith.constant 3 : i32
    %323 = tpu.dynamic_rotate %321 by %c3_i32_52 dim 1 : vector<48x128xf32>, i32 -> vector<48x128xf32>
    %c3_i32_53 = arith.constant 3 : i32
    %324 = tpu.dynamic_rotate %323 by %c3_i32_53 dim 0 : vector<48x128xf32>, i32 -> vector<48x128xf32>
    %325 = arith.index_cast %arg0 : i32 to index
    %c0_54 = arith.constant 0 : index
    %326 = memref.load %arg4[%325, %c0_54] : memref<2x49xf32, #tpu.memory_space<smem>>
    %327 = vector.broadcast %326 : f32 to vector<48x128xf32>
    %328 = arith.mulf %327, %324 : vector<48x128xf32>
    %329 = arith.addf %322, %328 : vector<48x128xf32>
    %c2_i32_55 = arith.constant 2 : i32
    %330 = tpu.dynamic_rotate %323 by %c2_i32_55 dim 0 : vector<48x128xf32>, i32 -> vector<48x128xf32>
    %331 = arith.index_cast %arg0 : i32 to index
    %c7_56 = arith.constant 7 : index
    %332 = memref.load %arg4[%331, %c7_56] : memref<2x49xf32, #tpu.memory_space<smem>>
    %333 = vector.broadcast %332 : f32 to vector<48x128xf32>
    %334 = arith.mulf %333, %330 : vector<48x128xf32>
    %335 = arith.addf %329, %334 : vector<48x128xf32>
    %c1_i32_57 = arith.constant 1 : i32
    %336 = tpu.dynamic_rotate %323 by %c1_i32_57 dim 0 : vector<48x128xf32>, i32 -> vector<48x128xf32>
    %337 = arith.index_cast %arg0 : i32 to index
    %c14_58 = arith.constant 14 : index
    %338 = memref.load %arg4[%337, %c14_58] : memref<2x49xf32, #tpu.memory_space<smem>>
    %339 = vector.broadcast %338 : f32 to vector<48x128xf32>
    %340 = arith.mulf %339, %336 : vector<48x128xf32>
    %341 = arith.addf %335, %340 : vector<48x128xf32>
    %342 = arith.index_cast %arg0 : i32 to index
    %c21_59 = arith.constant 21 : index
    %343 = memref.load %arg4[%342, %c21_59] : memref<2x49xf32, #tpu.memory_space<smem>>
    %344 = vector.broadcast %343 : f32 to vector<48x128xf32>
    %345 = arith.mulf %344, %323 : vector<48x128xf32>
    %346 = arith.addf %341, %345 : vector<48x128xf32>
    %c47_i32_60 = arith.constant 47 : i32
    %347 = tpu.dynamic_rotate %323 by %c47_i32_60 dim 0 : vector<48x128xf32>, i32 -> vector<48x128xf32>
    %348 = arith.index_cast %arg0 : i32 to index
    %c28_61 = arith.constant 28 : index
    %349 = memref.load %arg4[%348, %c28_61] : memref<2x49xf32, #tpu.memory_space<smem>>
    %350 = vector.broadcast %349 : f32 to vector<48x128xf32>
    %351 = arith.mulf %350, %347 : vector<48x128xf32>
    %352 = arith.addf %346, %351 : vector<48x128xf32>
    %c46_i32_62 = arith.constant 46 : i32
    %353 = tpu.dynamic_rotate %323 by %c46_i32_62 dim 0 : vector<48x128xf32>, i32 -> vector<48x128xf32>
    %354 = arith.index_cast %arg0 : i32 to index
    %c35_63 = arith.constant 35 : index
    %355 = memref.load %arg4[%354, %c35_63] : memref<2x49xf32, #tpu.memory_space<smem>>
    %356 = vector.broadcast %355 : f32 to vector<48x128xf32>
    %357 = arith.mulf %356, %353 : vector<48x128xf32>
    %358 = arith.addf %352, %357 : vector<48x128xf32>
    %c45_i32_64 = arith.constant 45 : i32
    %359 = tpu.dynamic_rotate %323 by %c45_i32_64 dim 0 : vector<48x128xf32>, i32 -> vector<48x128xf32>
    %360 = arith.index_cast %arg0 : i32 to index
    %c42_65 = arith.constant 42 : index
    %361 = memref.load %arg4[%360, %c42_65] : memref<2x49xf32, #tpu.memory_space<smem>>
    %362 = vector.broadcast %361 : f32 to vector<48x128xf32>
    %363 = arith.mulf %362, %359 : vector<48x128xf32>
    %364 = arith.addf %358, %363 : vector<48x128xf32>
    %c2_i32_66 = arith.constant 2 : i32
    %365 = tpu.dynamic_rotate %321 by %c2_i32_66 dim 1 : vector<48x128xf32>, i32 -> vector<48x128xf32>
    %c3_i32_67 = arith.constant 3 : i32
    %366 = tpu.dynamic_rotate %365 by %c3_i32_67 dim 0 : vector<48x128xf32>, i32 -> vector<48x128xf32>
    %367 = arith.index_cast %arg0 : i32 to index
    %c1_68 = arith.constant 1 : index
    %368 = memref.load %arg4[%367, %c1_68] : memref<2x49xf32, #tpu.memory_space<smem>>
    %369 = vector.broadcast %368 : f32 to vector<48x128xf32>
    %370 = arith.mulf %369, %366 : vector<48x128xf32>
    %371 = arith.addf %364, %370 : vector<48x128xf32>
    %c2_i32_69 = arith.constant 2 : i32
    %372 = tpu.dynamic_rotate %365 by %c2_i32_69 dim 0 : vector<48x128xf32>, i32 -> vector<48x128xf32>
    %373 = arith.index_cast %arg0 : i32 to index
    %c8_70 = arith.constant 8 : index
    %374 = memref.load %arg4[%373, %c8_70] : memref<2x49xf32, #tpu.memory_space<smem>>
    %375 = vector.broadcast %374 : f32 to vector<48x128xf32>
    %376 = arith.mulf %375, %372 : vector<48x128xf32>
    %377 = arith.addf %371, %376 : vector<48x128xf32>
    %c1_i32_71 = arith.constant 1 : i32
    %378 = tpu.dynamic_rotate %365 by %c1_i32_71 dim 0 : vector<48x128xf32>, i32 -> vector<48x128xf32>
    %379 = arith.index_cast %arg0 : i32 to index
    %c15_72 = arith.constant 15 : index
    %380 = memref.load %arg4[%379, %c15_72] : memref<2x49xf32, #tpu.memory_space<smem>>
    %381 = vector.broadcast %380 : f32 to vector<48x128xf32>
    %382 = arith.mulf %381, %378 : vector<48x128xf32>
    %383 = arith.addf %377, %382 : vector<48x128xf32>
    %384 = arith.index_cast %arg0 : i32 to index
    %c22_73 = arith.constant 22 : index
    %385 = memref.load %arg4[%384, %c22_73] : memref<2x49xf32, #tpu.memory_space<smem>>
    %386 = vector.broadcast %385 : f32 to vector<48x128xf32>
    %387 = arith.mulf %386, %365 : vector<48x128xf32>
    %388 = arith.addf %383, %387 : vector<48x128xf32>
    %c47_i32_74 = arith.constant 47 : i32
    %389 = tpu.dynamic_rotate %365 by %c47_i32_74 dim 0 : vector<48x128xf32>, i32 -> vector<48x128xf32>
    %390 = arith.index_cast %arg0 : i32 to index
    %c29_75 = arith.constant 29 : index
    %391 = memref.load %arg4[%390, %c29_75] : memref<2x49xf32, #tpu.memory_space<smem>>
    %392 = vector.broadcast %391 : f32 to vector<48x128xf32>
    %393 = arith.mulf %392, %389 : vector<48x128xf32>
    %394 = arith.addf %388, %393 : vector<48x128xf32>
    %c46_i32_76 = arith.constant 46 : i32
    %395 = tpu.dynamic_rotate %365 by %c46_i32_76 dim 0 : vector<48x128xf32>, i32 -> vector<48x128xf32>
    %396 = arith.index_cast %arg0 : i32 to index
    %c36_77 = arith.constant 36 : index
    %397 = memref.load %arg4[%396, %c36_77] : memref<2x49xf32, #tpu.memory_space<smem>>
    %398 = vector.broadcast %397 : f32 to vector<48x128xf32>
    %399 = arith.mulf %398, %395 : vector<48x128xf32>
    %400 = arith.addf %394, %399 : vector<48x128xf32>
    %c45_i32_78 = arith.constant 45 : i32
    %401 = tpu.dynamic_rotate %365 by %c45_i32_78 dim 0 : vector<48x128xf32>, i32 -> vector<48x128xf32>
    %402 = arith.index_cast %arg0 : i32 to index
    %c43_79 = arith.constant 43 : index
    %403 = memref.load %arg4[%402, %c43_79] : memref<2x49xf32, #tpu.memory_space<smem>>
    %404 = vector.broadcast %403 : f32 to vector<48x128xf32>
    %405 = arith.mulf %404, %401 : vector<48x128xf32>
    %406 = arith.addf %400, %405 : vector<48x128xf32>
    %c1_i32_80 = arith.constant 1 : i32
    %407 = tpu.dynamic_rotate %321 by %c1_i32_80 dim 1 : vector<48x128xf32>, i32 -> vector<48x128xf32>
    %c3_i32_81 = arith.constant 3 : i32
    %408 = tpu.dynamic_rotate %407 by %c3_i32_81 dim 0 : vector<48x128xf32>, i32 -> vector<48x128xf32>
    %409 = arith.index_cast %arg0 : i32 to index
    %c2_82 = arith.constant 2 : index
    %410 = memref.load %arg4[%409, %c2_82] : memref<2x49xf32, #tpu.memory_space<smem>>
    %411 = vector.broadcast %410 : f32 to vector<48x128xf32>
    %412 = arith.mulf %411, %408 : vector<48x128xf32>
    %413 = arith.addf %406, %412 : vector<48x128xf32>
    %c2_i32_83 = arith.constant 2 : i32
    %414 = tpu.dynamic_rotate %407 by %c2_i32_83 dim 0 : vector<48x128xf32>, i32 -> vector<48x128xf32>
    %415 = arith.index_cast %arg0 : i32 to index
    %c9_84 = arith.constant 9 : index
    %416 = memref.load %arg4[%415, %c9_84] : memref<2x49xf32, #tpu.memory_space<smem>>
    %417 = vector.broadcast %416 : f32 to vector<48x128xf32>
    %418 = arith.mulf %417, %414 : vector<48x128xf32>
    %419 = arith.addf %413, %418 : vector<48x128xf32>
    %c1_i32_85 = arith.constant 1 : i32
    %420 = tpu.dynamic_rotate %407 by %c1_i32_85 dim 0 : vector<48x128xf32>, i32 -> vector<48x128xf32>
    %421 = arith.index_cast %arg0 : i32 to index
    %c16_86 = arith.constant 16 : index
    %422 = memref.load %arg4[%421, %c16_86] : memref<2x49xf32, #tpu.memory_space<smem>>
    %423 = vector.broadcast %422 : f32 to vector<48x128xf32>
    %424 = arith.mulf %423, %420 : vector<48x128xf32>
    %425 = arith.addf %419, %424 : vector<48x128xf32>
    %426 = arith.index_cast %arg0 : i32 to index
    %c23_87 = arith.constant 23 : index
    %427 = memref.load %arg4[%426, %c23_87] : memref<2x49xf32, #tpu.memory_space<smem>>
    %428 = vector.broadcast %427 : f32 to vector<48x128xf32>
    %429 = arith.mulf %428, %407 : vector<48x128xf32>
    %430 = arith.addf %425, %429 : vector<48x128xf32>
    %c47_i32_88 = arith.constant 47 : i32
    %431 = tpu.dynamic_rotate %407 by %c47_i32_88 dim 0 : vector<48x128xf32>, i32 -> vector<48x128xf32>
    %432 = arith.index_cast %arg0 : i32 to index
    %c30_89 = arith.constant 30 : index
    %433 = memref.load %arg4[%432, %c30_89] : memref<2x49xf32, #tpu.memory_space<smem>>
    %434 = vector.broadcast %433 : f32 to vector<48x128xf32>
    %435 = arith.mulf %434, %431 : vector<48x128xf32>
    %436 = arith.addf %430, %435 : vector<48x128xf32>
    %c46_i32_90 = arith.constant 46 : i32
    %437 = tpu.dynamic_rotate %407 by %c46_i32_90 dim 0 : vector<48x128xf32>, i32 -> vector<48x128xf32>
    %438 = arith.index_cast %arg0 : i32 to index
    %c37_91 = arith.constant 37 : index
    %439 = memref.load %arg4[%438, %c37_91] : memref<2x49xf32, #tpu.memory_space<smem>>
    %440 = vector.broadcast %439 : f32 to vector<48x128xf32>
    %441 = arith.mulf %440, %437 : vector<48x128xf32>
    %442 = arith.addf %436, %441 : vector<48x128xf32>
    %c45_i32_92 = arith.constant 45 : i32
    %443 = tpu.dynamic_rotate %407 by %c45_i32_92 dim 0 : vector<48x128xf32>, i32 -> vector<48x128xf32>
    %444 = arith.index_cast %arg0 : i32 to index
    %c44_93 = arith.constant 44 : index
    %445 = memref.load %arg4[%444, %c44_93] : memref<2x49xf32, #tpu.memory_space<smem>>
    %446 = vector.broadcast %445 : f32 to vector<48x128xf32>
    %447 = arith.mulf %446, %443 : vector<48x128xf32>
    %448 = arith.addf %442, %447 : vector<48x128xf32>
    %c3_i32_94 = arith.constant 3 : i32
    %449 = tpu.dynamic_rotate %321 by %c3_i32_94 dim 0 : vector<48x128xf32>, i32 -> vector<48x128xf32>
    %450 = arith.index_cast %arg0 : i32 to index
    %c3_95 = arith.constant 3 : index
    %451 = memref.load %arg4[%450, %c3_95] : memref<2x49xf32, #tpu.memory_space<smem>>
    %452 = vector.broadcast %451 : f32 to vector<48x128xf32>
    %453 = arith.mulf %452, %449 : vector<48x128xf32>
    %454 = arith.addf %448, %453 : vector<48x128xf32>
    %c2_i32_96 = arith.constant 2 : i32
    %455 = tpu.dynamic_rotate %321 by %c2_i32_96 dim 0 : vector<48x128xf32>, i32 -> vector<48x128xf32>
    %456 = arith.index_cast %arg0 : i32 to index
    %c10_97 = arith.constant 10 : index
    %457 = memref.load %arg4[%456, %c10_97] : memref<2x49xf32, #tpu.memory_space<smem>>
    %458 = vector.broadcast %457 : f32 to vector<48x128xf32>
    %459 = arith.mulf %458, %455 : vector<48x128xf32>
    %460 = arith.addf %454, %459 : vector<48x128xf32>
    %c1_i32_98 = arith.constant 1 : i32
    %461 = tpu.dynamic_rotate %321 by %c1_i32_98 dim 0 : vector<48x128xf32>, i32 -> vector<48x128xf32>
    %462 = arith.index_cast %arg0 : i32 to index
    %c17_99 = arith.constant 17 : index
    %463 = memref.load %arg4[%462, %c17_99] : memref<2x49xf32, #tpu.memory_space<smem>>
    %464 = vector.broadcast %463 : f32 to vector<48x128xf32>
    %465 = arith.mulf %464, %461 : vector<48x128xf32>
    %466 = arith.addf %460, %465 : vector<48x128xf32>
    %467 = arith.index_cast %arg0 : i32 to index
    %c24_100 = arith.constant 24 : index
    %468 = memref.load %arg4[%467, %c24_100] : memref<2x49xf32, #tpu.memory_space<smem>>
    %469 = vector.broadcast %468 : f32 to vector<48x128xf32>
    %470 = arith.mulf %469, %321 : vector<48x128xf32>
    %471 = arith.addf %466, %470 : vector<48x128xf32>
    %c47_i32_101 = arith.constant 47 : i32
    %472 = tpu.dynamic_rotate %321 by %c47_i32_101 dim 0 : vector<48x128xf32>, i32 -> vector<48x128xf32>
    %473 = arith.index_cast %arg0 : i32 to index
    %c31_102 = arith.constant 31 : index
    %474 = memref.load %arg4[%473, %c31_102] : memref<2x49xf32, #tpu.memory_space<smem>>
    %475 = vector.broadcast %474 : f32 to vector<48x128xf32>
    %476 = arith.mulf %475, %472 : vector<48x128xf32>
    %477 = arith.addf %471, %476 : vector<48x128xf32>
    %c46_i32_103 = arith.constant 46 : i32
    %478 = tpu.dynamic_rotate %321 by %c46_i32_103 dim 0 : vector<48x128xf32>, i32 -> vector<48x128xf32>
    %479 = arith.index_cast %arg0 : i32 to index
    %c38_104 = arith.constant 38 : index
    %480 = memref.load %arg4[%479, %c38_104] : memref<2x49xf32, #tpu.memory_space<smem>>
    %481 = vector.broadcast %480 : f32 to vector<48x128xf32>
    %482 = arith.mulf %481, %478 : vector<48x128xf32>
    %483 = arith.addf %477, %482 : vector<48x128xf32>
    %c45_i32_105 = arith.constant 45 : i32
    %484 = tpu.dynamic_rotate %321 by %c45_i32_105 dim 0 : vector<48x128xf32>, i32 -> vector<48x128xf32>
    %485 = arith.index_cast %arg0 : i32 to index
    %c45_106 = arith.constant 45 : index
    %486 = memref.load %arg4[%485, %c45_106] : memref<2x49xf32, #tpu.memory_space<smem>>
    %487 = vector.broadcast %486 : f32 to vector<48x128xf32>
    %488 = arith.mulf %487, %484 : vector<48x128xf32>
    %489 = arith.addf %483, %488 : vector<48x128xf32>
    %c127_i32_107 = arith.constant 127 : i32
    %490 = tpu.dynamic_rotate %321 by %c127_i32_107 dim 1 : vector<48x128xf32>, i32 -> vector<48x128xf32>
    %c3_i32_108 = arith.constant 3 : i32
    %491 = tpu.dynamic_rotate %490 by %c3_i32_108 dim 0 : vector<48x128xf32>, i32 -> vector<48x128xf32>
    %492 = arith.index_cast %arg0 : i32 to index
    %c4_109 = arith.constant 4 : index
    %493 = memref.load %arg4[%492, %c4_109] : memref<2x49xf32, #tpu.memory_space<smem>>
    %494 = vector.broadcast %493 : f32 to vector<48x128xf32>
    %495 = arith.mulf %494, %491 : vector<48x128xf32>
    %496 = arith.addf %489, %495 : vector<48x128xf32>
    %c2_i32_110 = arith.constant 2 : i32
    %497 = tpu.dynamic_rotate %490 by %c2_i32_110 dim 0 : vector<48x128xf32>, i32 -> vector<48x128xf32>
    %498 = arith.index_cast %arg0 : i32 to index
    %c11_111 = arith.constant 11 : index
    %499 = memref.load %arg4[%498, %c11_111] : memref<2x49xf32, #tpu.memory_space<smem>>
    %500 = vector.broadcast %499 : f32 to vector<48x128xf32>
    %501 = arith.mulf %500, %497 : vector<48x128xf32>
    %502 = arith.addf %496, %501 : vector<48x128xf32>
    %c1_i32_112 = arith.constant 1 : i32
    %503 = tpu.dynamic_rotate %490 by %c1_i32_112 dim 0 : vector<48x128xf32>, i32 -> vector<48x128xf32>
    %504 = arith.index_cast %arg0 : i32 to index
    %c18_113 = arith.constant 18 : index
    %505 = memref.load %arg4[%504, %c18_113] : memref<2x49xf32, #tpu.memory_space<smem>>
    %506 = vector.broadcast %505 : f32 to vector<48x128xf32>
    %507 = arith.mulf %506, %503 : vector<48x128xf32>
    %508 = arith.addf %502, %507 : vector<48x128xf32>
    %509 = arith.index_cast %arg0 : i32 to index
    %c25_114 = arith.constant 25 : index
    %510 = memref.load %arg4[%509, %c25_114] : memref<2x49xf32, #tpu.memory_space<smem>>
    %511 = vector.broadcast %510 : f32 to vector<48x128xf32>
    %512 = arith.mulf %511, %490 : vector<48x128xf32>
    %513 = arith.addf %508, %512 : vector<48x128xf32>
    %c47_i32_115 = arith.constant 47 : i32
    %514 = tpu.dynamic_rotate %490 by %c47_i32_115 dim 0 : vector<48x128xf32>, i32 -> vector<48x128xf32>
    %515 = arith.index_cast %arg0 : i32 to index
    %c32_116 = arith.constant 32 : index
    %516 = memref.load %arg4[%515, %c32_116] : memref<2x49xf32, #tpu.memory_space<smem>>
    %517 = vector.broadcast %516 : f32 to vector<48x128xf32>
    %518 = arith.mulf %517, %514 : vector<48x128xf32>
    %519 = arith.addf %513, %518 : vector<48x128xf32>
    %c46_i32_117 = arith.constant 46 : i32
    %520 = tpu.dynamic_rotate %490 by %c46_i32_117 dim 0 : vector<48x128xf32>, i32 -> vector<48x128xf32>
    %521 = arith.index_cast %arg0 : i32 to index
    %c39_118 = arith.constant 39 : index
    %522 = memref.load %arg4[%521, %c39_118] : memref<2x49xf32, #tpu.memory_space<smem>>
    %523 = vector.broadcast %522 : f32 to vector<48x128xf32>
    %524 = arith.mulf %523, %520 : vector<48x128xf32>
    %525 = arith.addf %519, %524 : vector<48x128xf32>
    %c45_i32_119 = arith.constant 45 : i32
    %526 = tpu.dynamic_rotate %490 by %c45_i32_119 dim 0 : vector<48x128xf32>, i32 -> vector<48x128xf32>
    %527 = arith.index_cast %arg0 : i32 to index
    %c46_120 = arith.constant 46 : index
    %528 = memref.load %arg4[%527, %c46_120] : memref<2x49xf32, #tpu.memory_space<smem>>
    %529 = vector.broadcast %528 : f32 to vector<48x128xf32>
    %530 = arith.mulf %529, %526 : vector<48x128xf32>
    %531 = arith.addf %525, %530 : vector<48x128xf32>
    %c126_i32_121 = arith.constant 126 : i32
    %532 = tpu.dynamic_rotate %321 by %c126_i32_121 dim 1 : vector<48x128xf32>, i32 -> vector<48x128xf32>
    %c3_i32_122 = arith.constant 3 : i32
    %533 = tpu.dynamic_rotate %532 by %c3_i32_122 dim 0 : vector<48x128xf32>, i32 -> vector<48x128xf32>
    %534 = arith.index_cast %arg0 : i32 to index
    %c5_123 = arith.constant 5 : index
    %535 = memref.load %arg4[%534, %c5_123] : memref<2x49xf32, #tpu.memory_space<smem>>
    %536 = vector.broadcast %535 : f32 to vector<48x128xf32>
    %537 = arith.mulf %536, %533 : vector<48x128xf32>
    %538 = arith.addf %531, %537 : vector<48x128xf32>
    %c2_i32_124 = arith.constant 2 : i32
    %539 = tpu.dynamic_rotate %532 by %c2_i32_124 dim 0 : vector<48x128xf32>, i32 -> vector<48x128xf32>
    %540 = arith.index_cast %arg0 : i32 to index
    %c12_125 = arith.constant 12 : index
    %541 = memref.load %arg4[%540, %c12_125] : memref<2x49xf32, #tpu.memory_space<smem>>
    %542 = vector.broadcast %541 : f32 to vector<48x128xf32>
    %543 = arith.mulf %542, %539 : vector<48x128xf32>
    %544 = arith.addf %538, %543 : vector<48x128xf32>
    %c1_i32_126 = arith.constant 1 : i32
    %545 = tpu.dynamic_rotate %532 by %c1_i32_126 dim 0 : vector<48x128xf32>, i32 -> vector<48x128xf32>
    %546 = arith.index_cast %arg0 : i32 to index
    %c19_127 = arith.constant 19 : index
    %547 = memref.load %arg4[%546, %c19_127] : memref<2x49xf32, #tpu.memory_space<smem>>
    %548 = vector.broadcast %547 : f32 to vector<48x128xf32>
    %549 = arith.mulf %548, %545 : vector<48x128xf32>
    %550 = arith.addf %544, %549 : vector<48x128xf32>
    %551 = arith.index_cast %arg0 : i32 to index
    %c26_128 = arith.constant 26 : index
    %552 = memref.load %arg4[%551, %c26_128] : memref<2x49xf32, #tpu.memory_space<smem>>
    %553 = vector.broadcast %552 : f32 to vector<48x128xf32>
    %554 = arith.mulf %553, %532 : vector<48x128xf32>
    %555 = arith.addf %550, %554 : vector<48x128xf32>
    %c47_i32_129 = arith.constant 47 : i32
    %556 = tpu.dynamic_rotate %532 by %c47_i32_129 dim 0 : vector<48x128xf32>, i32 -> vector<48x128xf32>
    %557 = arith.index_cast %arg0 : i32 to index
    %c33_130 = arith.constant 33 : index
    %558 = memref.load %arg4[%557, %c33_130] : memref<2x49xf32, #tpu.memory_space<smem>>
    %559 = vector.broadcast %558 : f32 to vector<48x128xf32>
    %560 = arith.mulf %559, %556 : vector<48x128xf32>
    %561 = arith.addf %555, %560 : vector<48x128xf32>
    %c46_i32_131 = arith.constant 46 : i32
    %562 = tpu.dynamic_rotate %532 by %c46_i32_131 dim 0 : vector<48x128xf32>, i32 -> vector<48x128xf32>
    %563 = arith.index_cast %arg0 : i32 to index
    %c40_132 = arith.constant 40 : index
    %564 = memref.load %arg4[%563, %c40_132] : memref<2x49xf32, #tpu.memory_space<smem>>
    %565 = vector.broadcast %564 : f32 to vector<48x128xf32>
    %566 = arith.mulf %565, %562 : vector<48x128xf32>
    %567 = arith.addf %561, %566 : vector<48x128xf32>
    %c45_i32_133 = arith.constant 45 : i32
    %568 = tpu.dynamic_rotate %532 by %c45_i32_133 dim 0 : vector<48x128xf32>, i32 -> vector<48x128xf32>
    %569 = arith.index_cast %arg0 : i32 to index
    %c47_134 = arith.constant 47 : index
    %570 = memref.load %arg4[%569, %c47_134] : memref<2x49xf32, #tpu.memory_space<smem>>
    %571 = vector.broadcast %570 : f32 to vector<48x128xf32>
    %572 = arith.mulf %571, %568 : vector<48x128xf32>
    %573 = arith.addf %567, %572 : vector<48x128xf32>
    %c125_i32_135 = arith.constant 125 : i32
    %574 = tpu.dynamic_rotate %321 by %c125_i32_135 dim 1 : vector<48x128xf32>, i32 -> vector<48x128xf32>
    %c3_i32_136 = arith.constant 3 : i32
    %575 = tpu.dynamic_rotate %574 by %c3_i32_136 dim 0 : vector<48x128xf32>, i32 -> vector<48x128xf32>
    %576 = arith.index_cast %arg0 : i32 to index
    %c6_137 = arith.constant 6 : index
    %577 = memref.load %arg4[%576, %c6_137] : memref<2x49xf32, #tpu.memory_space<smem>>
    %578 = vector.broadcast %577 : f32 to vector<48x128xf32>
    %579 = arith.mulf %578, %575 : vector<48x128xf32>
    %580 = arith.addf %573, %579 : vector<48x128xf32>
    %c2_i32_138 = arith.constant 2 : i32
    %581 = tpu.dynamic_rotate %574 by %c2_i32_138 dim 0 : vector<48x128xf32>, i32 -> vector<48x128xf32>
    %582 = arith.index_cast %arg0 : i32 to index
    %c13_139 = arith.constant 13 : index
    %583 = memref.load %arg4[%582, %c13_139] : memref<2x49xf32, #tpu.memory_space<smem>>
    %584 = vector.broadcast %583 : f32 to vector<48x128xf32>
    %585 = arith.mulf %584, %581 : vector<48x128xf32>
    %586 = arith.addf %580, %585 : vector<48x128xf32>
    %c1_i32_140 = arith.constant 1 : i32
    %587 = tpu.dynamic_rotate %574 by %c1_i32_140 dim 0 : vector<48x128xf32>, i32 -> vector<48x128xf32>
    %588 = arith.index_cast %arg0 : i32 to index
    %c20_141 = arith.constant 20 : index
    %589 = memref.load %arg4[%588, %c20_141] : memref<2x49xf32, #tpu.memory_space<smem>>
    %590 = vector.broadcast %589 : f32 to vector<48x128xf32>
    %591 = arith.mulf %590, %587 : vector<48x128xf32>
    %592 = arith.addf %586, %591 : vector<48x128xf32>
    %593 = arith.index_cast %arg0 : i32 to index
    %c27_142 = arith.constant 27 : index
    %594 = memref.load %arg4[%593, %c27_142] : memref<2x49xf32, #tpu.memory_space<smem>>
    %595 = vector.broadcast %594 : f32 to vector<48x128xf32>
    %596 = arith.mulf %595, %574 : vector<48x128xf32>
    %597 = arith.addf %592, %596 : vector<48x128xf32>
    %c47_i32_143 = arith.constant 47 : i32
    %598 = tpu.dynamic_rotate %574 by %c47_i32_143 dim 0 : vector<48x128xf32>, i32 -> vector<48x128xf32>
    %599 = arith.index_cast %arg0 : i32 to index
    %c34_144 = arith.constant 34 : index
    %600 = memref.load %arg4[%599, %c34_144] : memref<2x49xf32, #tpu.memory_space<smem>>
    %601 = vector.broadcast %600 : f32 to vector<48x128xf32>
    %602 = arith.mulf %601, %598 : vector<48x128xf32>
    %603 = arith.addf %597, %602 : vector<48x128xf32>
    %c46_i32_145 = arith.constant 46 : i32
    %604 = tpu.dynamic_rotate %574 by %c46_i32_145 dim 0 : vector<48x128xf32>, i32 -> vector<48x128xf32>
    %605 = arith.index_cast %arg0 : i32 to index
    %c41_146 = arith.constant 41 : index
    %606 = memref.load %arg4[%605, %c41_146] : memref<2x49xf32, #tpu.memory_space<smem>>
    %607 = vector.broadcast %606 : f32 to vector<48x128xf32>
    %608 = arith.mulf %607, %604 : vector<48x128xf32>
    %609 = arith.addf %603, %608 : vector<48x128xf32>
    %c45_i32_147 = arith.constant 45 : i32
    %610 = tpu.dynamic_rotate %574 by %c45_i32_147 dim 0 : vector<48x128xf32>, i32 -> vector<48x128xf32>
    %611 = arith.index_cast %arg0 : i32 to index
    %c48_148 = arith.constant 48 : index
    %612 = memref.load %arg4[%611, %c48_148] : memref<2x49xf32, #tpu.memory_space<smem>>
    %613 = vector.broadcast %612 : f32 to vector<48x128xf32>
    %614 = arith.mulf %613, %610 : vector<48x128xf32>
    %615 = arith.addf %609, %614 : vector<48x128xf32>
    %616 = arith.index_cast %arg0 : i32 to index
    %617 = memref.load %arg5[%616] : memref<2xf32, #tpu.memory_space<smem>>
    %618 = vector.broadcast %617 : f32 to vector<48x128xf32>
    %619 = arith.addf %615, %618 : vector<48x128xf32>
    %cst_149 = arith.constant 0.000000e+00 : f32
    %620 = vector.broadcast %cst_149 : f32 to vector<48x128xf32>
    %621 = arith.subf %620, %619 : vector<48x128xf32>
    %622 = math.exp %621 : vector<48x128xf32>
    %cst_150 = arith.constant 1.000000e+00 : f32
    %623 = vector.broadcast %cst_150 : f32 to vector<48x128xf32>
    %624 = arith.addf %623, %622 : vector<48x128xf32>
    %625 = tpu.reciprocal %624 {approx = true} : vector<48x128xf32> -> vector<48x128xf32>
    %626 = arith.mulf %625, %12 : vector<48x128xf32>
    %c0_151 = arith.constant 0 : index
    %c0_152 = arith.constant 0 : index
    %c0_153 = arith.constant 0 : index
    %c0_154 = arith.constant 0 : index
    %627 = vector.load %arg7[%c0_151, %c0_152, %c0_153, %c0_154] : memref<1x1x48x128xf32, #tpu.memory_space<vmem>>, vector<1x1x48x128xf32>
    %628 = vector.shape_cast %627 : vector<1x1x48x128xf32> to vector<48x128xf32>
    %629 = vector.shape_cast %626 : vector<48x128xf32> to vector<1x1x48x128xf32>
    tpu.vector_store %arg7[%c0_151, %c0_152, %c0_153, %c0_154], %629 {strides = array<i32>} : memref<1x1x48x128xf32, #tpu.memory_space<vmem>>, vector<1x1x48x128xf32>,
    return
  }
  func.func @transform_0(%arg0: i32, %arg1: i32) -> (i32, i32) {
    %c0_i32 = arith.constant 0 : i32
    %c0_i32_0 = arith.constant 0 : i32
    %c0_i32_1 = arith.constant 0 : i32
    return %c0_i32, %c0_i32_0 : i32, i32
  }
  func.func @transform_1(%arg0: i32, %arg1: i32) -> i32 {
    %c0_i32 = arith.constant 0 : i32
    %c0_i32_0 = arith.constant 0 : i32
    return %c0_i32 : i32
  }
  func.func @transform_2(%arg0: i32, %arg1: i32) -> (i32, i32) {
    %c0_i32 = arith.constant 0 : i32
    %c0_i32_0 = arith.constant 0 : i32
    %c0_i32_1 = arith.constant 0 : i32
    return %c0_i32, %c0_i32_0 : i32, i32
  }
  func.func @transform_3(%arg0: i32, %arg1: i32) -> i32 {
    %c0_i32 = arith.constant 0 : i32
    %c0_i32_0 = arith.constant 0 : i32
    return %c0_i32 : i32
  }
  func.func @transform_4(%arg0: i32, %arg1: i32) -> (i32, i32, i32, i32) {
    %c0_i32 = arith.constant 0 : i32
    %c0_i32_0 = arith.constant 0 : i32
    %c0_i32_1 = arith.constant 0 : i32
    return %arg0, %arg1, %c0_i32, %c0_i32_0 : i32, i32, i32, i32
  }
  func.func @transform_5(%arg0: i32, %arg1: i32) -> (i32, i32, i32, i32) {
    %c0_i32 = arith.constant 0 : i32
    %c0_i32_0 = arith.constant 0 : i32
    %c0_i32_1 = arith.constant 0 : i32
    return %arg0, %arg1, %c0_i32, %c0_i32_0 : i32, i32, i32, i32
  }
}

module attributes {stable_mosaic.version = 11 : i64} {
  func.func @_freq_solve_kernel(%arg0: i32, %arg1: i32, %arg2: memref<1x64x64xf32, #tpu.memory_space<vmem>>, %arg3: memref<1x64x64xf32, #tpu.memory_space<vmem>>, %arg4: memref<1x64x64xf32, #tpu.memory_space<vmem>>, %arg5: memref<1x64x64xf32, #tpu.memory_space<vmem>>, %arg6: memref<2x64x64xf32, #tpu.memory_space<vmem>>, %arg7: memref<2x64x64xf32, #tpu.memory_space<vmem>>, %arg8: memref<2x1x64x64xf32, #tpu.memory_space<vmem>>, %arg9: memref<2x1x64x64xf32, #tpu.memory_space<vmem>>, %arg10: memref<1x64x64xf32, #tpu.memory_space<vmem>>, %arg11: memref<1x64x64xf32, #tpu.memory_space<vmem>>) attributes {dimension_semantics = [#tpu.dimension_semantics<parallel>, #tpu.dimension_semantics<parallel>], iteration_bounds = array<i64: 1, 1>, scalar_prefetch = 0 : i64, scratch_operands = 0 : i64, tpu.core_type = #tpu.core_type<tc>, window_params = [{transform_indices = @transform_0, window_bounds = array<i64: 1, 64, 64>}, {transform_indices = @transform_1, window_bounds = array<i64: 1, 64, 64>}, {transform_indices = @transform_2, window_bounds = array<i64: 1, 64, 64>}, {transform_indices = @transform_3, window_bounds = array<i64: 1, 64, 64>}, {transform_indices = @transform_4, window_bounds = array<i64: 2, 64, 64>}, {transform_indices = @transform_5, window_bounds = array<i64: 2, 64, 64>}, {transform_indices = @transform_6, window_bounds = array<i64: 2, 1, 64, 64>}, {transform_indices = @transform_7, window_bounds = array<i64: 2, 1, 64, 64>}, {transform_indices = @transform_8, window_bounds = array<i64: 1, 64, 64>}, {transform_indices = @transform_9, window_bounds = array<i64: 1, 64, 64>}]} {
    %c0 = arith.constant 0 : index
    %c0_0 = arith.constant 0 : index
    %c0_1 = arith.constant 0 : index
    %0 = vector.load %arg2[%c0, %c0_0, %c0_1] : memref<1x64x64xf32, #tpu.memory_space<vmem>>, vector<1x64x64xf32>
    %1 = vector.shape_cast %0 : vector<1x64x64xf32> to vector<64x64xf32>
    %c0_2 = arith.constant 0 : index
    %c0_3 = arith.constant 0 : index
    %c0_4 = arith.constant 0 : index
    %2 = vector.load %arg3[%c0_2, %c0_3, %c0_4] : memref<1x64x64xf32, #tpu.memory_space<vmem>>, vector<1x64x64xf32>
    %3 = vector.shape_cast %2 : vector<1x64x64xf32> to vector<64x64xf32>
    %c0_5 = arith.constant 0 : index
    %c0_6 = arith.constant 0 : index
    %c0_7 = arith.constant 0 : index
    %4 = vector.load %arg4[%c0_5, %c0_6, %c0_7] : memref<1x64x64xf32, #tpu.memory_space<vmem>>, vector<1x64x64xf32>
    %5 = vector.shape_cast %4 : vector<1x64x64xf32> to vector<64x64xf32>
    %c0_8 = arith.constant 0 : index
    %c0_9 = arith.constant 0 : index
    %c0_10 = arith.constant 0 : index
    %6 = vector.load %arg5[%c0_8, %c0_9, %c0_10] : memref<1x64x64xf32, #tpu.memory_space<vmem>>, vector<1x64x64xf32>
    %7 = vector.shape_cast %6 : vector<1x64x64xf32> to vector<64x64xf32>
    %8 = arith.mulf %1, %1 : vector<64x64xf32>
    %9 = arith.mulf %3, %3 : vector<64x64xf32>
    %10 = arith.addf %8, %9 : vector<64x64xf32>
    %cst = arith.constant 1.000000e+00 : f32
    %11 = vector.broadcast %cst : f32 to vector<64x64xf32>
    %12 = arith.mulf %11, %10 : vector<64x64xf32>
    %13 = arith.mulf %1, %5 : vector<64x64xf32>
    %14 = arith.mulf %3, %7 : vector<64x64xf32>
    %15 = arith.addf %13, %14 : vector<64x64xf32>
    %cst_11 = arith.constant 1.000000e+00 : f32
    %16 = vector.broadcast %cst_11 : f32 to vector<64x64xf32>
    %17 = arith.mulf %16, %15 : vector<64x64xf32>
    %18 = arith.mulf %1, %7 : vector<64x64xf32>
    %19 = arith.mulf %3, %5 : vector<64x64xf32>
    %20 = arith.subf %18, %19 : vector<64x64xf32>
    %cst_12 = arith.constant 1.000000e+00 : f32
    %21 = vector.broadcast %cst_12 : f32 to vector<64x64xf32>
    %22 = arith.mulf %21, %20 : vector<64x64xf32>
    %c0_13 = arith.constant 0 : index
    %c0_14 = arith.constant 0 : index
    %c0_15 = arith.constant 0 : index
    %23 = vector.load %arg6[%c0_13, %c0_14, %c0_15] : memref<2x64x64xf32, #tpu.memory_space<vmem>>, vector<1x64x64xf32>
    %24 = vector.shape_cast %23 : vector<1x64x64xf32> to vector<64x64xf32>
    %c0_16 = arith.constant 0 : index
    %c0_17 = arith.constant 0 : index
    %c0_18 = arith.constant 0 : index
    %25 = vector.load %arg7[%c0_16, %c0_17, %c0_18] : memref<2x64x64xf32, #tpu.memory_space<vmem>>, vector<1x64x64xf32>
    %26 = vector.shape_cast %25 : vector<1x64x64xf32> to vector<64x64xf32>
    %c0_19 = arith.constant 0 : index
    %c0_20 = arith.constant 0 : index
    %c0_21 = arith.constant 0 : index
    %c0_22 = arith.constant 0 : index
    %27 = vector.load %arg8[%c0_19, %c0_20, %c0_21, %c0_22] : memref<2x1x64x64xf32, #tpu.memory_space<vmem>>, vector<1x1x64x64xf32>
    %28 = vector.shape_cast %27 : vector<1x1x64x64xf32> to vector<64x64xf32>
    %c0_23 = arith.constant 0 : index
    %c0_24 = arith.constant 0 : index
    %c0_25 = arith.constant 0 : index
    %c0_26 = arith.constant 0 : index
    %29 = vector.load %arg9[%c0_23, %c0_24, %c0_25, %c0_26] : memref<2x1x64x64xf32, #tpu.memory_space<vmem>>, vector<1x1x64x64xf32>
    %30 = vector.shape_cast %29 : vector<1x1x64x64xf32> to vector<64x64xf32>
    %31 = arith.mulf %24, %24 : vector<64x64xf32>
    %32 = arith.addf %12, %31 : vector<64x64xf32>
    %33 = arith.mulf %26, %26 : vector<64x64xf32>
    %34 = arith.addf %32, %33 : vector<64x64xf32>
    %35 = arith.mulf %24, %28 : vector<64x64xf32>
    %36 = arith.addf %17, %35 : vector<64x64xf32>
    %37 = arith.mulf %26, %30 : vector<64x64xf32>
    %38 = arith.addf %36, %37 : vector<64x64xf32>
    %39 = arith.mulf %24, %30 : vector<64x64xf32>
    %40 = arith.addf %22, %39 : vector<64x64xf32>
    %41 = arith.mulf %26, %28 : vector<64x64xf32>
    %42 = arith.subf %40, %41 : vector<64x64xf32>
    %c1 = arith.constant 1 : index
    %c0_27 = arith.constant 0 : index
    %c0_28 = arith.constant 0 : index
    %43 = vector.load %arg6[%c1, %c0_27, %c0_28] : memref<2x64x64xf32, #tpu.memory_space<vmem>>, vector<1x64x64xf32>
    %44 = vector.shape_cast %43 : vector<1x64x64xf32> to vector<64x64xf32>
    %c1_29 = arith.constant 1 : index
    %c0_30 = arith.constant 0 : index
    %c0_31 = arith.constant 0 : index
    %45 = vector.load %arg7[%c1_29, %c0_30, %c0_31] : memref<2x64x64xf32, #tpu.memory_space<vmem>>, vector<1x64x64xf32>
    %46 = vector.shape_cast %45 : vector<1x64x64xf32> to vector<64x64xf32>
    %c1_32 = arith.constant 1 : index
    %c0_33 = arith.constant 0 : index
    %c0_34 = arith.constant 0 : index
    %c0_35 = arith.constant 0 : index
    %47 = vector.load %arg8[%c1_32, %c0_33, %c0_34, %c0_35] : memref<2x1x64x64xf32, #tpu.memory_space<vmem>>, vector<1x1x64x64xf32>
    %48 = vector.shape_cast %47 : vector<1x1x64x64xf32> to vector<64x64xf32>
    %c1_36 = arith.constant 1 : index
    %c0_37 = arith.constant 0 : index
    %c0_38 = arith.constant 0 : index
    %c0_39 = arith.constant 0 : index
    %49 = vector.load %arg9[%c1_36, %c0_37, %c0_38, %c0_39] : memref<2x1x64x64xf32, #tpu.memory_space<vmem>>, vector<1x1x64x64xf32>
    %50 = vector.shape_cast %49 : vector<1x1x64x64xf32> to vector<64x64xf32>
    %51 = arith.mulf %44, %44 : vector<64x64xf32>
    %52 = arith.addf %34, %51 : vector<64x64xf32>
    %53 = arith.mulf %46, %46 : vector<64x64xf32>
    %54 = arith.addf %52, %53 : vector<64x64xf32>
    %55 = arith.mulf %44, %48 : vector<64x64xf32>
    %56 = arith.addf %38, %55 : vector<64x64xf32>
    %57 = arith.mulf %46, %50 : vector<64x64xf32>
    %58 = arith.addf %56, %57 : vector<64x64xf32>
    %59 = arith.mulf %44, %50 : vector<64x64xf32>
    %60 = arith.addf %42, %59 : vector<64x64xf32>
    %61 = arith.mulf %46, %48 : vector<64x64xf32>
    %62 = arith.subf %60, %61 : vector<64x64xf32>
    %63 = tpu.reciprocal %54 {approx = true} : vector<64x64xf32> -> vector<64x64xf32>
    %64 = arith.mulf %58, %63 : vector<64x64xf32>
    %c0_40 = arith.constant 0 : index
    %c0_41 = arith.constant 0 : index
    %c0_42 = arith.constant 0 : index
    %65 = vector.load %arg10[%c0_40, %c0_41, %c0_42] : memref<1x64x64xf32, #tpu.memory_space<vmem>>, vector<1x64x64xf32>
    %66 = vector.shape_cast %65 : vector<1x64x64xf32> to vector<64x64xf32>
    %67 = vector.shape_cast %64 : vector<64x64xf32> to vector<1x64x64xf32>
    tpu.vector_store %arg10[%c0_40, %c0_41, %c0_42], %67 {strides = array<i32>} : memref<1x64x64xf32, #tpu.memory_space<vmem>>, vector<1x64x64xf32>,
    %68 = arith.mulf %62, %63 : vector<64x64xf32>
    %c0_43 = arith.constant 0 : index
    %c0_44 = arith.constant 0 : index
    %c0_45 = arith.constant 0 : index
    %69 = vector.load %arg11[%c0_43, %c0_44, %c0_45] : memref<1x64x64xf32, #tpu.memory_space<vmem>>, vector<1x64x64xf32>
    %70 = vector.shape_cast %69 : vector<1x64x64xf32> to vector<64x64xf32>
    %71 = vector.shape_cast %68 : vector<64x64xf32> to vector<1x64x64xf32>
    tpu.vector_store %arg11[%c0_43, %c0_44, %c0_45], %71 {strides = array<i32>} : memref<1x64x64xf32, #tpu.memory_space<vmem>>, vector<1x64x64xf32>,
    return
  }
  func.func @transform_0(%arg0: i32, %arg1: i32) -> (i32, i32, i32) {
    %c0_i32 = arith.constant 0 : i32
    %c0_i32_0 = arith.constant 0 : i32
    return %arg1, %arg0, %c0_i32 : i32, i32, i32
  }
  func.func @transform_1(%arg0: i32, %arg1: i32) -> (i32, i32, i32) {
    %c0_i32 = arith.constant 0 : i32
    %c0_i32_0 = arith.constant 0 : i32
    return %arg1, %arg0, %c0_i32 : i32, i32, i32
  }
  func.func @transform_2(%arg0: i32, %arg1: i32) -> (i32, i32, i32) {
    %c0_i32 = arith.constant 0 : i32
    %c0_i32_0 = arith.constant 0 : i32
    return %arg1, %arg0, %c0_i32 : i32, i32, i32
  }
  func.func @transform_3(%arg0: i32, %arg1: i32) -> (i32, i32, i32) {
    %c0_i32 = arith.constant 0 : i32
    %c0_i32_0 = arith.constant 0 : i32
    return %arg1, %arg0, %c0_i32 : i32, i32, i32
  }
  func.func @transform_4(%arg0: i32, %arg1: i32) -> (i32, i32, i32) {
    %c0_i32 = arith.constant 0 : i32
    %c0_i32_0 = arith.constant 0 : i32
    %c0_i32_1 = arith.constant 0 : i32
    return %c0_i32, %arg0, %c0_i32_0 : i32, i32, i32
  }
  func.func @transform_5(%arg0: i32, %arg1: i32) -> (i32, i32, i32) {
    %c0_i32 = arith.constant 0 : i32
    %c0_i32_0 = arith.constant 0 : i32
    %c0_i32_1 = arith.constant 0 : i32
    return %c0_i32, %arg0, %c0_i32_0 : i32, i32, i32
  }
  func.func @transform_6(%arg0: i32, %arg1: i32) -> (i32, i32, i32, i32) {
    %c0_i32 = arith.constant 0 : i32
    %c0_i32_0 = arith.constant 0 : i32
    %c0_i32_1 = arith.constant 0 : i32
    return %c0_i32, %arg1, %arg0, %c0_i32_0 : i32, i32, i32, i32
  }
  func.func @transform_7(%arg0: i32, %arg1: i32) -> (i32, i32, i32, i32) {
    %c0_i32 = arith.constant 0 : i32
    %c0_i32_0 = arith.constant 0 : i32
    %c0_i32_1 = arith.constant 0 : i32
    return %c0_i32, %arg1, %arg0, %c0_i32_0 : i32, i32, i32, i32
  }
  func.func @transform_8(%arg0: i32, %arg1: i32) -> (i32, i32, i32) {
    %c0_i32 = arith.constant 0 : i32
    %c0_i32_0 = arith.constant 0 : i32
    return %arg1, %arg0, %c0_i32 : i32, i32, i32
  }
  func.func @transform_9(%arg0: i32, %arg1: i32) -> (i32, i32, i32) {
    %c0_i32 = arith.constant 0 : i32
    %c0_i32_0 = arith.constant 0 : i32
    return %arg1, %arg0, %c0_i32 : i32, i32, i32
  }
}

module attributes {stable_mosaic.version = 11 : i64} {
  func.func @_u_update_kernel(%arg0: i32, %arg1: memref<1x40x40xf32, #tpu.memory_space<vmem>>, %arg2: memref<1x40x40xf32, #tpu.memory_space<vmem>>, %arg3: memref<1x40x40xf32, #tpu.memory_space<vmem>>, %arg4: memref<1x40x40xf32, #tpu.memory_space<vmem>>) attributes {dimension_semantics = [#tpu.dimension_semantics<parallel>], iteration_bounds = array<i64: 1>, scalar_prefetch = 0 : i64, scratch_operands = 0 : i64, tpu.core_type = #tpu.core_type<tc>, window_params = [{transform_indices = @transform_0, window_bounds = array<i64: 1, 40, 40>}, {transform_indices = @transform_1, window_bounds = array<i64: 1, 40, 40>}, {pipeline_mode = #tpu.pipeline_mode<synchronous>, transform_indices = @transform_2, window_bounds = array<i64: 1, 40, 40>}, {transform_indices = @transform_3, window_bounds = array<i64: 1, 40, 40>}]} {
    %c0 = arith.constant 0 : index
    %c0_0 = arith.constant 0 : index
    %c0_1 = arith.constant 0 : index
    %0 = vector.load %arg1[%c0, %c0_0, %c0_1] : memref<1x40x40xf32, #tpu.memory_space<vmem>>, vector<1x40x40xf32>
    %c0_2 = arith.constant 0 : index
    %c0_3 = arith.constant 0 : index
    %c0_4 = arith.constant 0 : index
    %1 = vector.load %arg2[%c0_2, %c0_3, %c0_4] : memref<1x40x40xf32, #tpu.memory_space<vmem>>, vector<1x40x40xf32>
    %cst = arith.constant 4.000000e+00 : f32
    %2 = vector.broadcast %cst : f32 to vector<1x40x40xf32>
    %3 = arith.mulf %2, %1 : vector<1x40x40xf32>
    %4 = arith.addf %0, %3 : vector<1x40x40xf32>
    %c0_5 = arith.constant 0 : index
    %c0_6 = arith.constant 0 : index
    %c0_7 = arith.constant 0 : index
    %5 = vector.load %arg3[%c0_5, %c0_6, %c0_7] : memref<1x40x40xf32, #tpu.memory_space<vmem>>, vector<1x40x40xf32>
    %6 = arith.mulf %4, %5 : vector<1x40x40xf32>
    %c0_8 = arith.constant 0 : index
    %c0_9 = arith.constant 0 : index
    %c0_10 = arith.constant 0 : index
    %7 = vector.load %arg4[%c0_8, %c0_9, %c0_10] : memref<1x40x40xf32, #tpu.memory_space<vmem>>, vector<1x40x40xf32>
    tpu.vector_store %arg4[%c0_8, %c0_9, %c0_10], %6 {strides = array<i32>} : memref<1x40x40xf32, #tpu.memory_space<vmem>>, vector<1x40x40xf32>,
    return
  }
  func.func @transform_0(%arg0: i32) -> (i32, i32, i32) {
    %c0_i32 = arith.constant 0 : i32
    %c0_i32_0 = arith.constant 0 : i32
    %c0_i32_1 = arith.constant 0 : i32
    return %arg0, %c0_i32, %c0_i32_0 : i32, i32, i32
  }
  func.func @transform_1(%arg0: i32) -> (i32, i32, i32) {
    %c0_i32 = arith.constant 0 : i32
    %c0_i32_0 = arith.constant 0 : i32
    %c0_i32_1 = arith.constant 0 : i32
    return %arg0, %c0_i32, %c0_i32_0 : i32, i32, i32
  }
  func.func @transform_2(%arg0: i32) -> (i32, i32, i32) {
    %c0_i32 = arith.constant 0 : i32
    %c0_i32_0 = arith.constant 0 : i32
    %c0_i32_1 = arith.constant 0 : i32
    %c0_i32_2 = arith.constant 0 : i32
    return %c0_i32, %c0_i32_0, %c0_i32_1 : i32, i32, i32
  }
  func.func @transform_3(%arg0: i32) -> (i32, i32, i32) {
    %c0_i32 = arith.constant 0 : i32
    %c0_i32_0 = arith.constant 0 : i32
    %c0_i32_1 = arith.constant 0 : i32
    return %arg0, %c0_i32, %c0_i32_0 : i32, i32, i32
  }
}

module attributes {stable_mosaic.version = 11 : i64} {
  func.func @_u_update_kernel(%arg0: i32, %arg1: memref<1x40x40xf32, #tpu.memory_space<vmem>>, %arg2: memref<1x40x40xf32, #tpu.memory_space<vmem>>, %arg3: memref<1x40x40xf32, #tpu.memory_space<vmem>>, %arg4: memref<1x40x40xf32, #tpu.memory_space<vmem>>) attributes {dimension_semantics = [#tpu.dimension_semantics<parallel>], iteration_bounds = array<i64: 1>, scalar_prefetch = 0 : i64, scratch_operands = 0 : i64, tpu.core_type = #tpu.core_type<tc>, window_params = [{transform_indices = @transform_0, window_bounds = array<i64: 1, 40, 40>}, {transform_indices = @transform_1, window_bounds = array<i64: 1, 40, 40>}, {pipeline_mode = #tpu.pipeline_mode<synchronous>, transform_indices = @transform_2, window_bounds = array<i64: 1, 40, 40>}, {transform_indices = @transform_3, window_bounds = array<i64: 1, 40, 40>}]} {
    %c0 = arith.constant 0 : index
    %c0_0 = arith.constant 0 : index
    %c0_1 = arith.constant 0 : index
    %0 = vector.load %arg1[%c0, %c0_0, %c0_1] : memref<1x40x40xf32, #tpu.memory_space<vmem>>, vector<1x40x40xf32>
    %c0_2 = arith.constant 0 : index
    %c0_3 = arith.constant 0 : index
    %c0_4 = arith.constant 0 : index
    %1 = vector.load %arg2[%c0_2, %c0_3, %c0_4] : memref<1x40x40xf32, #tpu.memory_space<vmem>>, vector<1x40x40xf32>
    %cst = arith.constant 4.000000e+00 : f32
    %2 = vector.broadcast %cst : f32 to vector<1x40x40xf32>
    %3 = arith.mulf %2, %1 : vector<1x40x40xf32>
    %4 = arith.addf %0, %3 : vector<1x40x40xf32>
    %c0_5 = arith.constant 0 : index
    %c0_6 = arith.constant 0 : index
    %c0_7 = arith.constant 0 : index
    %5 = vector.load %arg3[%c0_5, %c0_6, %c0_7] : memref<1x40x40xf32, #tpu.memory_space<vmem>>, vector<1x40x40xf32>
    %6 = arith.mulf %4, %5 : vector<1x40x40xf32>
    %c0_8 = arith.constant 0 : index
    %c0_9 = arith.constant 0 : index
    %c0_10 = arith.constant 0 : index
    %7 = vector.load %arg4[%c0_8, %c0_9, %c0_10] : memref<1x40x40xf32, #tpu.memory_space<vmem>>, vector<1x40x40xf32>
    tpu.vector_store %arg4[%c0_8, %c0_9, %c0_10], %6 {strides = array<i32>} : memref<1x40x40xf32, #tpu.memory_space<vmem>>, vector<1x40x40xf32>,
    return
  }
  func.func @transform_0(%arg0: i32) -> (i32, i32, i32) {
    %c0_i32 = arith.constant 0 : i32
    %c0_i32_0 = arith.constant 0 : i32
    %c0_i32_1 = arith.constant 0 : i32
    return %arg0, %c0_i32, %c0_i32_0 : i32, i32, i32
  }
  func.func @transform_1(%arg0: i32) -> (i32, i32, i32) {
    %c0_i32 = arith.constant 0 : i32
    %c0_i32_0 = arith.constant 0 : i32
    %c0_i32_1 = arith.constant 0 : i32
    return %arg0, %c0_i32, %c0_i32_0 : i32, i32, i32
  }
  func.func @transform_2(%arg0: i32) -> (i32, i32, i32) {
    %c0_i32 = arith.constant 0 : i32
    %c0_i32_0 = arith.constant 0 : i32
    %c0_i32_1 = arith.constant 0 : i32
    %c0_i32_2 = arith.constant 0 : i32
    return %c0_i32, %c0_i32_0, %c0_i32_1 : i32, i32, i32
  }
  func.func @transform_3(%arg0: i32) -> (i32, i32, i32) {
    %c0_i32 = arith.constant 0 : i32
    %c0_i32_0 = arith.constant 0 : i32
    %c0_i32_1 = arith.constant 0 : i32
    return %arg0, %c0_i32, %c0_i32_0 : i32, i32, i32
  }
}

</mosaic_0001>

<llo_original>
// kernel: decov_net_individual.6
$region0: #{decov_net_individual.6}
  #allocation0 [shape = 'u32[]', space=smem, size = 0x4, offset = 0x4, fixed_abs, tag = 'smem constant byte address 0x4 - core index']
  #allocation1 [shape = 'u32[144,128]{1,0:T(1,128)}', space=vmem, size = 0x12000, scoped, tag = 'internal scratch']
  %s0 = inlined_call_operand.vmem [shape: f32[2,49], index: 0, kind: input, shape index: {}]
  %s1 = inlined_call_operand.vmem [shape: f32[2], index: 1, kind: input, shape index: {}]
  %s2 = inlined_call_operand.vmem [shape: f32[2,49], index: 2, kind: input, shape index: {}]
  %s3 = inlined_call_operand.vmem [shape: f32[2], index: 3, kind: input, shape index: {}]
  %s4 = inlined_call_operand.vmem [shape: f32[2,1,48,128], index: 4, kind: input, shape index: {}]
  %s5 = inlined_call_operand.vmem [shape: f32[2,1,48,128], index: 5, kind: output, shape index: {}]
  %s6 = sld [smem:[#allocation0]]
  $region69: #{decov_net_individual.6} parent=0
    _
  %s8 = ssub.s32 1, %s6
  %s9 = scalar_select 0, %s8, %s6
  $region1: #{decov_net_individual.6} parent=0
    #allocation2 [shape = 'u8[1024]{0}', space=smem, size = 0x400, scoped, tag = 'input window, operand 0, single buffered']
    #allocation3 [shape = 's32[2]{0}', space=sflag, size = 0x8, scoped, tag = 'scoped memory for decov_net_individual.6']
    #allocation4 [shape = 'u8[512]{0}', space=smem, size = 0x200, scoped, tag = 'input window, operand 1, single buffered']
    #allocation5 [shape = 's32[1]{0}', space=sflag, size = 0x4, scoped, tag = 'scoped memory for decov_net_individual.6']
    #allocation6 [shape = 'u8[1024]{0}', space=smem, size = 0x400, scoped, tag = 'input window, operand 2, single buffered']
    #allocation7 [shape = 'u8[512]{0}', space=smem, size = 0x200, scoped, tag = 'input window, operand 3, single buffered']
    #allocation8 [shape = 's32[1]{0}', space=sflag, size = 0x4, scoped, tag = 'scoped memory for decov_net_individual.6']
    %10 = vsyncpa [#allocation3], 0
    %11 = vsyncpa [#allocation5], 0
    %12 = vsyncpa [#allocation8], 0
    loop: start=0, step=1, limit=4
    $region2: #{decov_net_individual.6} parent=1 // loop_pre_header
      _
    $region3: #{decov_net_individual.6} parent=1 // loop_header
      %s14 = sphi 0, %s18
      %p15 = scmp.ge.s32.totalorder %s14, 4
      %s21 = sphi 0, %s33
      %s22 = sphi 0, %s29
      %s23 = sphi 0, %s21
      %s24 = sphi 0, %s22
      %s25 = sphi 0, %s23
      %s26 = sphi 0, %s24
      %s34 = sphi 0, %s34
      %s36 = sphi 0, %s34
      %s37 = sphi 0, %s36
      %s51 = sphi 0, %s37
      %s55 = sphi 0, %s55
      %s57 = sphi 0, %s55
      %s58 = sphi 0, %s57
      %s72 = sphi 0, %s58
      %s76 = sphi 0, %s76
      %s78 = sphi 0, %s76
      %s79 = sphi 0, %s78
      %s93 = sphi 0, %s79
      %s97 = sphi 0, %s97
      %s99 = sphi 0, %s97
      %s100 = sphi 0, %s99
      %s114 = sphi 0, %s100
      %s122 = sphi 0, %s124
      %s125 = sphi 0, %s122
      %s126 = sphi 0, %s125
      %s142 = sphi 0, %s126
      %s150 = sphi 0, %s152
      %s153 = sphi 0, %s150
      %s154 = sphi 0, %s153
      %s170 = sphi 0, %s154
    $region4: #{decov_net_individual.6} parent=1 // loop_header_branch
      %17 = sbr.rel (%p15) target = $region8
    $region5: #{decov_net_individual.6} parent=1 // loop_body
      %s19 = ssub.s32 %s14, 1
      %s20 = ssub.s32 %s14, 2
      %s27 = sadd.s32 1, %s22
      %p28 = scmp.ge.s32.totalorder %s27, 1
      %s29 = scalar_select %p28, 0, %s27
      %s30 = sadd.s32 1, %s21
      %s31 = scalar_select %p28, %s30, %s21
      %p32 = scmp.ge.s32.totalorder %s31, 2
      %s33 = scalar_select %p32, 0, %s31
      %s35 = sadd.s32 %s34, 1
      %p38 = scmp.eq.s32.totalorder %s14, 1
      %p39 = scmp.ne.s32.totalorder %s34, %s36
      %p40 = scmp.eq.s32.totalorder %s14, 0
      %p41 = por %p39, %p40
      %p42 = scmp.ne.s32.totalorder %s34, %s36
      %p43 = scmp.eq.s32.totalorder %s19, 1
      %p44 = por %p42, %p43
      %p45 = scmp.ne.s32.totalorder %s36, %s37
      %p46 = scmp.eq.s32.totalorder %s19, 0
      %p47 = por %p45, %p46
      %p48 = scmp.ne.s32.totalorder %s36, %s37
      %p49 = scmp.eq.s32.totalorder %s20, 1
      %p50 = por %p48, %p49
      %p52 = scmp.ne.s32.totalorder %s37, %s51
      %p53 = scmp.eq.s32.totalorder %s20, 0
      %p54 = por %p52, %p53
      %s56 = sadd.s32 %s55, 1
      %p59 = scmp.eq.s32.totalorder %s14, 1
      %p60 = scmp.ne.s32.totalorder %s55, %s57
      %p61 = scmp.eq.s32.totalorder %s14, 0
      %p62 = por %p60, %p61
      %p63 = scmp.ne.s32.totalorder %s55, %s57
      %p64 = scmp.eq.s32.totalorder %s19, 1
      %p65 = por %p63, %p64
      %p66 = scmp.ne.s32.totalorder %s57, %s58
      %p67 = scmp.eq.s32.totalorder %s19, 0
      %p68 = por %p66, %p67
      %p69 = scmp.ne.s32.totalorder %s57, %s58
      %p70 = scmp.eq.s32.totalorder %s20, 1
      %p71 = por %p69, %p70
      %p73 = scmp.ne.s32.totalorder %s58, %s72
      %p74 = scmp.eq.s32.totalorder %s20, 0
      %p75 = por %p73, %p74
      %s77 = sadd.s32 %s76, 1
      %p80 = scmp.eq.s32.totalorder %s14, 1
      %p81 = scmp.ne.s32.totalorder %s76, %s78
      %p82 = scmp.eq.s32.totalorder %s14, 0
      %p83 = por %p81, %p82
      %p84 = scmp.ne.s32.totalorder %s76, %s78
      %p85 = scmp.eq.s32.totalorder %s19, 1
      %p86 = por %p84, %p85
      %p87 = scmp.ne.s32.totalorder %s78, %s79
      %p88 = scmp.eq.s32.totalorder %s19, 0
      %p89 = por %p87, %p88
      %p90 = scmp.ne.s32.totalorder %s78, %s79
      %p91 = scmp.eq.s32.totalorder %s20, 1
      %p92 = por %p90, %p91
      %p94 = scmp.ne.s32.totalorder %s79, %s93
      %p95 = scmp.eq.s32.totalorder %s20, 0
      %p96 = por %p94, %p95
      %s98 = sadd.s32 %s97, 1
      %p101 = scmp.eq.s32.totalorder %s14, 1
      %p102 = scmp.ne.s32.totalorder %s97, %s99
      %p103 = scmp.eq.s32.totalorder %s14, 0
      %p104 = por %p102, %p103
      %p105 = scmp.ne.s32.totalorder %s97, %s99
      %p106 = scmp.eq.s32.totalorder %s19, 1
      %p107 = por %p105, %p106
      %p108 = scmp.ne.s32.totalorder %s99, %s100
      %p109 = scmp.eq.s32.totalorder %s19, 0
      %p110 = por %p108, %p109
      %p111 = scmp.ne.s32.totalorder %s99, %s100
      %p112 = scmp.eq.s32.totalorder %s20, 1
      %p113 = por %p111, %p112
      %p115 = scmp.ne.s32.totalorder %s100, %s114
      %p116 = scmp.eq.s32.totalorder %s20, 0
      %p117 = por %p115, %p116
      %s118 = ssub.s32 %s21, %s33
      %s119 = ssub.s32 %s22, %s29
      %s120 = sor.u32 %s118, %s119
      %p121 = scmp.eq.s32.totalorder %s120, 0
      %s123 = sadd.s32 %s122, 1
      %s124 = scalar_select %p121, %s122, %s123
      %p127 = pneg %p121
      %p128 = scmp.eq.s32.totalorder %s14, 1
      %p129 = por %p127, %p128
      %p130 = scmp.ne.s32.totalorder %s122, %s125
      %p131 = scmp.eq.s32.totalorder %s14, 0
      %p132 = por %p130, %p131
      %p133 = scmp.ne.s32.totalorder %s122, %s125
      %p134 = scmp.eq.s32.totalorder %s19, 1
      %p135 = por %p133, %p134
      %p136 = scmp.ne.s32.totalorder %s125, %s126
      %p137 = scmp.eq.s32.totalorder %s19, 0
      %p138 = por %p136, %p137
      %p139 = scmp.ne.s32.totalorder %s125, %s126
      %p140 = scmp.eq.s32.totalorder %s20, 1
      %p141 = por %p139, %p140
      %p143 = scmp.ne.s32.totalorder %s126, %s142
      %p144 = scmp.eq.s32.totalorder %s20, 0
      %p145 = por %p143, %p144
      %s146 = ssub.s32 %s21, %s33
      %s147 = ssub.s32 %s22, %s29
      %s148 = sor.u32 %s146, %s147
      %p149 = scmp.eq.s32.totalorder %s148, 0
      %s151 = sadd.s32 %s150, 1
      %s152 = scalar_select %p149, %s150, %s151
      %p155 = pneg %p149
      %p156 = scmp.eq.s32.totalorder %s14, 1
      %p157 = por %p155, %p156
      %p158 = scmp.ne.s32.totalorder %s150, %s153
      %p159 = scmp.eq.s32.totalorder %s14, 0
      %p160 = por %p158, %p159
      %p161 = scmp.ne.s32.totalorder %s150, %s153
      %p162 = scmp.eq.s32.totalorder %s19, 1
      %p163 = por %p161, %p162
      %p164 = scmp.ne.s32.totalorder %s153, %s154
      %p165 = scmp.eq.s32.totalorder %s19, 0
      %p166 = por %p164, %p165
      %p167 = scmp.ne.s32.totalorder %s153, %s154
      %p168 = scmp.eq.s32.totalorder %s20, 1
      %p169 = por %p167, %p168
      %p171 = scmp.ne.s32.totalorder %s154, %s170
      %p172 = scmp.eq.s32.totalorder %s20, 0
      %p173 = por %p171, %p172
      %p174 = scmp.le.s32.totalorder 1, %s14
      %p175 = scmp.lt.s32.totalorder %s14, 3
      %p176 = pnand %p174, %p175
      %p177 = pneg %p176
      // Predicated region
      $region9: #{decov_net_individual.6} parent=5 // pred_check
        _
      $region10: #{decov_net_individual.6} parent=5 // pred_check_branch
        %179 = sbr.rel (%p176) target = $region12
      $region11: #{decov_net_individual.6} parent=5 // pred_region
        %s180 = ssub.s32 %s14, 1
        // Predicated region
        $region13: #{decov_net_individual.6} parent=11 // pred_check
          %p181 = pneg %p47
        $region14: #{decov_net_individual.6} parent=11 // pred_check_branch
          %183 = sbr.rel (%p181) target = $region16
        $region15: #{decov_net_individual.6} parent=11 // pred_region
          %s185 = ssub.s32 32, 32
          %186 = vsyncadd [#allocation3], %s185
          %s188 = sshll.u32 %s0, 4
          %s189 = int_to_ptr.vmem [resolvable:$true] %s188
          %191 = dma.vmem_to_smem %s189, 32, [#allocation2], [#allocation3]
        $region16: #{decov_net_individual.6} parent=11 // pred_fallthru
          _
        // Predicated region
        $region17: #{decov_net_individual.6} parent=11 // pred_check
          %p192 = pneg %p68
        $region18: #{decov_net_individual.6} parent=11 // pred_check_branch
          %194 = sbr.rel (%p192) target = $region20
        $region19: #{decov_net_individual.6} parent=11 // pred_region
          %s196 = ssub.s32 16, 16
          %197 = vsyncadd [#allocation5], %s196
          %s199 = sshll.u32 %s1, 4
          %s200 = int_to_ptr.vmem [resolvable:$true] %s199
          %202 = dma.vmem_to_smem %s200, 16, [#allocation4], [#allocation5]
        $region20: #{decov_net_individual.6} parent=11 // pred_fallthru
          _
        // Predicated region
        $region21: #{decov_net_individual.6} parent=11 // pred_check
          %p203 = pneg %p89
        $region22: #{decov_net_individual.6} parent=11 // pred_check_branch
          %205 = sbr.rel (%p203) target = $region24
        $region23: #{decov_net_individual.6} parent=11 // pred_region
          %s207 = ssub.s32 32, 32
          %208 = vsyncadd [#allocation5], %s207
          %s210 = sshll.u32 %s2, 4
          %s211 = int_to_ptr.vmem [resolvable:$true] %s210
          %213 = dma.vmem_to_smem %s211, 32, [#allocation6], [#allocation5]
        $region24: #{decov_net_individual.6} parent=11 // pred_fallthru
          _
        // Predicated region
        $region25: #{decov_net_individual.6} parent=11 // pred_check
          %p214 = pneg %p110
        $region26: #{decov_net_individual.6} parent=11 // pred_check_branch
          %216 = sbr.rel (%p214) target = $region28
        $region27: #{decov_net_individual.6} parent=11 // pred_region
          %s218 = ssub.s32 16, 16
          %219 = vsyncadd [#allocation8], %s218
          %s221 = sshll.u32 %s3, 4
          %s222 = int_to_ptr.vmem [resolvable:$true] %s221
          %224 = dma.vmem_to_smem %s222, 16, [#allocation7], [#allocation8]
        $region28: #{decov_net_individual.6} parent=11 // pred_fallthru
          _
      $region12: #{decov_net_individual.6} parent=5 // pred_fallthru
        _
      %p225 = scmp.lt.s32.totalorder %s14, 2
      // Predicated region
      $region29: #{decov_net_individual.6} parent=5 // pred_check
        %p226 = pneg %p225
      $region30: #{decov_net_individual.6} parent=5 // pred_check_branch
        %228 = sbr.rel (%p226) target = $region32
      $region31: #{decov_net_individual.6} parent=5 // pred_region
        // Predicated region
        $region33: #{decov_net_individual.6} parent=31 // pred_check
          %p229 = pneg %p132
        $region34: #{decov_net_individual.6} parent=31 // pred_check_branch
          %231 = sbr.rel (%p229) target = $region36
        $region35: #{decov_net_individual.6} parent=31 // pred_region
          %p232 = scmp.lt.s32.totalorder %s21, 1
          %s233 = scalar_select %p232, %s21, 1
          %p234 = scmp.lt.s32.totalorder %s22, 0
          %s235 = scalar_select %p234, %s22, 0
          %s236 = smul.addr %s235, 6
          %s237 = smul.addr %s233, 6
          %s238 = sadd.s32 %s236, %s237
          %s239 = smul.addr %s238, 8
          %s240 = scalar_lea.vmem %s4, %s239
        $region36: #{decov_net_individual.6} parent=31 // pred_fallthru
          _
      $region32: #{decov_net_individual.6} parent=5 // pred_fallthru
        _
      %p241 = scmp.le.s32.totalorder 1, %s14
      %p242 = scmp.lt.s32.totalorder %s14, 3
      %p243 = pnand %p241, %p242
      %p244 = pneg %p243
      // Predicated region
      $region37: #{decov_net_individual.6} parent=5 // pred_check
        _
      $region38: #{decov_net_individual.6} parent=5 // pred_check_branch
        %246 = sbr.rel (%p243) target = $region40
      $region39: #{decov_net_individual.6} parent=5 // pred_region
        %s247 = ssub.s32 %s14, 1
        // Predicated region
        $region41: #{decov_net_individual.6} parent=39 // pred_check
          %p248 = pneg %p47
        $region42: #{decov_net_individual.6} parent=39 // pred_check_branch
          %250 = sbr.rel (%p248) target = $region44
        $region43: #{decov_net_individual.6} parent=39 // pred_region
          %251 = dma.done [#allocation3], 32
        $region44: #{decov_net_individual.6} parent=39 // pred_fallthru
          _
        // Predicated region
        $region45: #{decov_net_individual.6} parent=39 // pred_check
          %p252 = pneg %p68
        $region46: #{decov_net_individual.6} parent=39 // pred_check_branch
          %254 = sbr.rel (%p252) target = $region48
        $region47: #{decov_net_individual.6} parent=39 // pred_region
          %255 = dma.done [#allocation5], 16
        $region48: #{decov_net_individual.6} parent=39 // pred_fallthru
          _
        // Predicated region
        $region49: #{decov_net_individual.6} parent=39 // pred_check
          %p256 = pneg %p89
        $region50: #{decov_net_individual.6} parent=39 // pred_check_branch
          %258 = sbr.rel (%p256) target = $region52
        $region51: #{decov_net_individual.6} parent=39 // pred_region
          %259 = dma.done [#allocation5], 32
        $region52: #{decov_net_individual.6} parent=39 // pred_fallthru
          _
        // Predicated region
        $region53: #{decov_net_individual.6} parent=39 // pred_check
          %p260 = pneg %p110
        $region54: #{decov_net_individual.6} parent=39 // pred_check_branch
          %262 = sbr.rel (%p260) target = $region56
        $region55: #{decov_net_individual.6} parent=39 // pred_region
          %263 = dma.done [#allocation8], 16
        $region56: #{decov_net_individual.6} parent=39 // pred_fallthru
          _
        %264 = sfence
        %p265 = pneg %p47
        %p266 = pneg %p44
        %p267 = pneg %p68
        %p268 = pneg %p65
        %p269 = pneg %p89
        %p270 = pneg %p86
        %p271 = pneg %p110
        %p272 = pneg %p107
        %p273 = scmp.lt.s32.totalorder %s23, 1
        %s274 = scalar_select %p273, %s23, 1
        %p275 = scmp.lt.s32.totalorder %s24, 0
        %s276 = scalar_select %p275, %s24, 0
        %s277 = smul.addr %s276, 6
        %s278 = smul.addr %s274, 6
        %s279 = sadd.s32 %s277, %s278
        %s280 = smul.addr %s279, 8
        %s281 = scalar_lea.vmem %s4, %s280
        %p282 = pneg %p138
        %p283 = pneg %p135
        %p284 = pneg %p166
        %p285 = pneg %p163
        %p286 = scmp.lt.s32.totalorder %s23, 1
        %s287 = scalar_select %p286, %s23, 1
        %p288 = scmp.lt.s32.totalorder %s24, 0
        %s289 = scalar_select %p288, %s24, 0
        %s290 = smul.addr %s289, 6
        %s291 = smul.addr %s287, 6
        %s292 = sadd.s32 %s290, %s291
        %s293 = smul.addr %s292, 8
        %s294 = scalar_lea.vmem %s5, %s293
        %p295 = scmp.lt.s32.totalorder %s23, 1
        %s296 = scalar_select %p295, %s23, 1
        %p297 = scmp.lt.s32.totalorder %s24, 0
        %s298 = scalar_select %p297, %s24, 0
        %s299 = smul.addr %s298, 6
        %s300 = smul.addr %s296, 6
        %s301 = sadd.s32 %s299, %s300
        %s302 = smul.addr %s301, 8
        %s303 = scalar_lea.vmem %s4, %s302
        %p304 = scmp.lt.s32.totalorder %s23, 1
        %s305 = scalar_select %p304, %s23, 1
        %p306 = scmp.lt.s32.totalorder %s24, 0
        %s307 = scalar_select %p306, %s24, 0
        %s308 = smul.addr %s307, 6
        %s309 = smul.addr %s305, 6
        %s310 = sadd.s32 %s308, %s309
        %s311 = smul.addr %s310, 8
        %s312 = scalar_lea.vmem %s5, %s311
        %v313 = vld [vmem:[%s303] sm:$0xff]
        %v314 = vld [vmem:[%s303 + $0x8] sm:$0xff]
        %v315 = vld [vmem:[%s303 + $0x10] sm:$0xff]
        %v316 = vld [vmem:[%s303 + $0x18] sm:$0xff]
        %v317 = vld [vmem:[%s303 + $0x20] sm:$0xff]
        %v318 = vld [vmem:[%s303 + $0x28] sm:$0xff]
        %v319 = vsub.f32 %v313, 5e-06
        %v320 = vsub.f32 %v314, 5e-06
        %v321 = vsub.f32 %v315, 5e-06
        %v322 = vsub.f32 %v316, 5e-06
        %v323 = vsub.f32 %v317, 5e-06
        %v324 = vsub.f32 %v318, 5e-06
        %v325 = vmax.f32 %v319, 0.0
        %v326 = vmax.f32 %v320, 0.0
        %v327 = vmax.f32 %v321, 0.0
        %v328 = vmax.f32 %v322, 0.0
        %v329 = vmax.f32 %v323, 0.0
        %v330 = vmax.f32 %v324, 0.0
        %v331 = vsub.f32 0.0, %v313
        %v332 = vsub.f32 0.0, %v314
        %v333 = vsub.f32 0.0, %v315
        %v334 = vsub.f32 0.0, %v316
        %v335 = vsub.f32 0.0, %v317
        %v336 = vsub.f32 0.0, %v318
        %v337 = vsub.f32 %v331, 5e-06
        %v338 = vsub.f32 %v332, 5e-06
        %v339 = vsub.f32 %v333, 5e-06
        %v340 = vsub.f32 %v334, 5e-06
        %v341 = vsub.f32 %v335, 5e-06
        %v342 = vsub.f32 %v336, 5e-06
        %v343 = vmax.f32 %v337, 0.0
        %v344 = vmax.f32 %v338, 0.0
        %v345 = vmax.f32 %v339, 0.0
        %v346 = vmax.f32 %v340, 0.0
        %v347 = vmax.f32 %v341, 0.0
        %v348 = vmax.f32 %v342, 0.0
        %v349 = vsub.f32 %v325, %v343
        %v350 = vsub.f32 %v326, %v344
        %v351 = vsub.f32 %v327, %v345
        %v352 = vsub.f32 %v328, %v346
        %v353 = vsub.f32 %v329, %v347
        %v354 = vsub.f32 %v330, %v348
        %v355 = vlaneseq
        %v356 = vshrl.u32 %v355, 7
        %v357 = vadd.s32 %v356, 8
        %v358 = vadd.s32 %v356, 16
        %v359 = vadd.s32 %v356, 24
        %v360 = vadd.s32 %v356, 32
        %v361 = vadd.s32 %v356, 40
        %v362 = vlaneseq
        %v363 = vand.u32 %v362, 127
        %vm364 = vcmp.lt.s32.totalorder %v356, 39
        %vm365 = vcmp.lt.s32.totalorder %v357, 39
        %vm366 = vcmp.lt.s32.totalorder %v358, 39
        %vm367 = vcmp.lt.s32.totalorder %v359, 39
        %vm368 = vcmp.lt.s32.totalorder %v360, 39
        %vm369 = vcmp.lt.s32.totalorder %v361, 39
        %vm370 = vcmp.lt.s32.totalorder %v363, 39
        %vm371 = vmand %vm364, %vm370
        %vm372 = vmand %vm365, %vm370
        %vm373 = vmand %vm366, %vm370
        %vm374 = vmand %vm367, %vm370
        %vm375 = vmand %vm368, %vm370
        %vm376 = vmand %vm369, %vm370
        %377 = vrot.lane.b32.xlu0 %v349, 3
        %v378 = vpop.permute.xlu0 %377
        %379 = vrot.lane.b32.xlu0 %v350, 3
        %v380 = vpop.permute.xlu0 %379
        %381 = vrot.lane.b32.xlu0 %v351, 3
        %v382 = vpop.permute.xlu0 %381
        %383 = vrot.lane.b32.xlu0 %v352, 3
        %v384 = vpop.permute.xlu0 %383
        %385 = vrot.lane.b32.xlu0 %v353, 3
        %v386 = vpop.permute.xlu0 %385
        %387 = vrot.lane.b32.xlu0 %v354, 3
        %v388 = vpop.permute.xlu0 %387
        %v389 = vrot.slane %v378, 5
        %v390 = vrot.slane %v380, 5
        %v391 = vrot.slane %v382, 5
        %v392 = vrot.slane %v384, 5
        %v393 = vrot.slane %v386, 5
        %v394 = vrot.slane %v388, 5
        %vm395 = vcmp.lt.s32.totalorder %v356, 3
        %v396 = vsel %vm395, %v393, %v394
        %v397 = vsel %vm395, %v392, %v393
        %v398 = vsel %vm395, %v391, %v392
        %v399 = vsel %vm395, %v390, %v391
        %v400 = vsel %vm395, %v389, %v390
        %v401 = vsel %vm395, %v394, %v389
        %s402 = smul.u32 %s23, 128
        %s403 = sld [smem:[#allocation2 + %s402]]
        %v404 = vstv %s403
        %v405 = vmul.f32 %v404, %v401
        %v406 = vmul.f32 %v404, %v400
        %v407 = vmul.f32 %v404, %v399
        %v408 = vmul.f32 %v404, %v398
        %v409 = vmul.f32 %v404, %v397
        %v410 = vmul.f32 %v404, %v396
        %v411 = vadd.f32 %v405, 0.0
        %v412 = vadd.f32 %v406, 0.0
        %v413 = vadd.f32 %v407, 0.0
        %v414 = vadd.f32 %v408, 0.0
        %v415 = vadd.f32 %v409, 0.0
        %v416 = vadd.f32 %v410, 0.0
        %v417 = vrot.slane %v378, 6
        %v418 = vrot.slane %v380, 6
        %v419 = vrot.slane %v382, 6
        %v420 = vrot.slane %v384, 6
        %v421 = vrot.slane %v386, 6
        %v422 = vrot.slane %v388, 6
        %vm423 = vcmp.lt.s32.totalorder %v356, 2
        %v424 = vsel %vm423, %v421, %v422
        %v425 = vsel %vm423, %v420, %v421
        %v426 = vsel %vm423, %v419, %v420
        %v427 = vsel %vm423, %v418, %v419
        %v428 = vsel %vm423, %v417, %v418
        %v429 = vsel %vm423, %v422, %v417
        %s430 = sadd.s32 %s402, 7
        %s431 = sld [smem:[#allocation2 + %s430]]
        %v432 = vstv %s431
        %v433 = vmul.f32 %v432, %v429
        %v434 = vmul.f32 %v432, %v428
        %v435 = vmul.f32 %v432, %v427
        %v436 = vmul.f32 %v432, %v426
        %v437 = vmul.f32 %v432, %v425
        %v438 = vmul.f32 %v432, %v424
        %v439 = vadd.f32 %v411, %v433
        %v440 = vadd.f32 %v412, %v434
        %v441 = vadd.f32 %v413, %v435
        %v442 = vadd.f32 %v414, %v436
        %v443 = vadd.f32 %v415, %v437
        %v444 = vadd.f32 %v416, %v438
        %v445 = vrot.slane %v378, 7
        %v446 = vrot.slane %v380, 7
        %v447 = vrot.slane %v382, 7
        %v448 = vrot.slane %v384, 7
        %v449 = vrot.slane %v386, 7
        %v450 = vrot.slane %v388, 7
        %vm451 = vcmp.lt.s32.totalorder %v356, 1
        %v452 = vsel %vm451, %v449, %v450
        %v453 = vsel %vm451, %v448, %v449
        %v454 = vsel %vm451, %v447, %v448
        %v455 = vsel %vm451, %v446, %v447
        %v456 = vsel %vm451, %v445, %v446
        %v457 = vsel %vm451, %v450, %v445
        %s458 = sadd.s32 %s402, 14
        %s459 = sld [smem:[#allocation2 + %s458]]
        %v460 = vstv %s459
        %v461 = vmul.f32 %v460, %v457
        %v462 = vmul.f32 %v460, %v456
        %v463 = vmul.f32 %v460, %v455
        %v464 = vmul.f32 %v460, %v454
        %v465 = vmul.f32 %v460, %v453
        %v466 = vmul.f32 %v460, %v452
        %v467 = vadd.f32 %v439, %v461
        %v468 = vadd.f32 %v440, %v462
        %v469 = vadd.f32 %v441, %v463
        %v470 = vadd.f32 %v442, %v464
        %v471 = vadd.f32 %v443, %v465
        %v472 = vadd.f32 %v444, %v466
        %s473 = sadd.s32 %s402, 21
        %s474 = sld [smem:[#allocation2 + %s473]]
        %v475 = vstv %s474
        %v476 = vmul.f32 %v475, %v378
        %v477 = vmul.f32 %v475, %v380
        %v478 = vmul.f32 %v475, %v382
        %v479 = vmul.f32 %v475, %v384
        %v480 = vmul.f32 %v475, %v386
        %v481 = vmul.f32 %v475, %v388
        %v482 = vadd.f32 %v467, %v476
        %v483 = vadd.f32 %v468, %v477
        %v484 = vadd.f32 %v469, %v478
        %v485 = vadd.f32 %v470, %v479
        %v486 = vadd.f32 %v471, %v480
        %v487 = vadd.f32 %v472, %v481
        %v488 = vrot.slane %v378, 1
        %v489 = vrot.slane %v380, 1
        %v490 = vrot.slane %v382, 1
        %v491 = vrot.slane %v384, 1
        %v492 = vrot.slane %v386, 1
        %v493 = vrot.slane %v388, 1
        %vm494 = vcmp.lt.s32.totalorder %v356, 7
        %v495 = vsel %vm494, %v492, %v493
        %v496 = vsel %vm494, %v491, %v492
        %v497 = vsel %vm494, %v490, %v491
        %v498 = vsel %vm494, %v489, %v490
        %v499 = vsel %vm494, %v488, %v489
        %v500 = vsel %vm494, %v493, %v488
        %s501 = sadd.s32 %s402, 28
        %s502 = sld [smem:[#allocation2 + %s501]]
        %v503 = vstv %s502
        %v504 = vmul.f32 %v503, %v499
        %v505 = vmul.f32 %v503, %v498
        %v506 = vmul.f32 %v503, %v497
        %v507 = vmul.f32 %v503, %v496
        %v508 = vmul.f32 %v503, %v495
        %v509 = vmul.f32 %v503, %v500
        %v510 = vadd.f32 %v482, %v504
        %v511 = vadd.f32 %v483, %v505
        %v512 = vadd.f32 %v484, %v506
        %v513 = vadd.f32 %v485, %v507
        %v514 = vadd.f32 %v486, %v508
        %v515 = vadd.f32 %v487, %v509
        %v516 = vrot.slane %v378, 2
        %v517 = vrot.slane %v380, 2
        %v518 = vrot.slane %v382, 2
        %v519 = vrot.slane %v384, 2
        %v520 = vrot.slane %v386, 2
        %v521 = vrot.slane %v388, 2
        %vm522 = vcmp.lt.s32.totalorder %v356, 6
        %v523 = vsel %vm522, %v520, %v521
        %v524 = vsel %vm522, %v519, %v520
        %v525 = vsel %vm522, %v518, %v519
        %v526 = vsel %vm522, %v517, %v518
        %v527 = vsel %vm522, %v516, %v517
        %v528 = vsel %vm522, %v521, %v516
        %s529 = sadd.s32 %s402, 35
        %s530 = sld [smem:[#allocation2 + %s529]]
        %v531 = vstv %s530
        %v532 = vmul.f32 %v531, %v527
        %v533 = vmul.f32 %v531, %v526
        %v534 = vmul.f32 %v531, %v525
        %v535 = vmul.f32 %v531, %v524
        %v536 = vmul.f32 %v531, %v523
        %v537 = vmul.f32 %v531, %v528
        %v538 = vadd.f32 %v510, %v532
        %v539 = vadd.f32 %v511, %v533
        %v540 = vadd.f32 %v512, %v534
        %v541 = vadd.f32 %v513, %v535
        %v542 = vadd.f32 %v514, %v536
        %v543 = vadd.f32 %v515, %v537
        %v544 = vrot.slane %v378, 3
        %v545 = vrot.slane %v380, 3
        %v546 = vrot.slane %v382, 3
        %v547 = vrot.slane %v384, 3
        %v548 = vrot.slane %v386, 3
        %v549 = vrot.slane %v388, 3
        %vm550 = vcmp.lt.s32.totalorder %v356, 5
        %v551 = vsel %vm550, %v548, %v549
        %v552 = vsel %vm550, %v547, %v548
        %v553 = vsel %vm550, %v546, %v547
        %v554 = vsel %vm550, %v545, %v546
        %v555 = vsel %vm550, %v544, %v545
        %v556 = vsel %vm550, %v549, %v544
        %s557 = sadd.s32 %s402, 42
        %s558 = sld [smem:[#allocation2 + %s557]]
        %v559 = vstv %s558
        %v560 = vmul.f32 %v559, %v555
        %v561 = vmul.f32 %v559, %v554
        %v562 = vmul.f32 %v559, %v553
        %v563 = vmul.f32 %v559, %v552
        %v564 = vmul.f32 %v559, %v551
        %v565 = vmul.f32 %v559, %v556
        %v566 = vadd.f32 %v538, %v560
        %v567 = vadd.f32 %v539, %v561
        %v568 = vadd.f32 %v540, %v562
        %v569 = vadd.f32 %v541, %v563
        %v570 = vadd.f32 %v542, %v564
        %v571 = vadd.f32 %v543, %v565
        %572 = vrot.lane.b32.xlu0 %v349, 2
        %v573 = vpop.permute.xlu0 %572
        %574 = vrot.lane.b32.xlu0 %v350, 2
        %v575 = vpop.permute.xlu0 %574
        %576 = vrot.lane.b32.xlu0 %v351, 2
        %v577 = vpop.permute.xlu0 %576
        %578 = vrot.lane.b32.xlu0 %v352, 2
        %v579 = vpop.permute.xlu0 %578
        %580 = vrot.lane.b32.xlu0 %v353, 2
        %v581 = vpop.permute.xlu0 %580
        %582 = vrot.lane.b32.xlu0 %v354, 2
        %v583 = vpop.permute.xlu0 %582
        %v584 = vrot.slane %v573, 5
        %v585 = vrot.slane %v575, 5
        %v586 = vrot.slane %v577, 5
        %v587 = vrot.slane %v579, 5
        %v588 = vrot.slane %v581, 5
        %v589 = vrot.slane %v583, 5
        %v590 = vsel %vm395, %v588, %v589
        %v591 = vsel %vm395, %v587, %v588
        %v592 = vsel %vm395, %v586, %v587
        %v593 = vsel %vm395, %v585, %v586
        %v594 = vsel %vm395, %v584, %v585
        %v595 = vsel %vm395, %v589, %v584
        %s596 = sadd.s32 %s402, 1
        %s597 = sld [smem:[#allocation2 + %s596]]
        %v598 = vstv %s597
        %v599 = vmul.f32 %v598, %v595
        %v600 = vmul.f32 %v598, %v594
        %v601 = vmul.f32 %v598, %v593
        %v602 = vmul.f32 %v598, %v592
        %v603 = vmul.f32 %v598, %v591
        %v604 = vmul.f32 %v598, %v590
        %v605 = vadd.f32 %v566, %v599
        %v606 = vadd.f32 %v567, %v600
        %v607 = vadd.f32 %v568, %v601
        %v608 = vadd.f32 %v569, %v602
        %v609 = vadd.f32 %v570, %v603
        %v610 = vadd.f32 %v571, %v604
        %v611 = vrot.slane %v573, 6
        %v612 = vrot.slane %v575, 6
        %v613 = vrot.slane %v577, 6
        %v614 = vrot.slane %v579, 6
        %v615 = vrot.slane %v581, 6
        %v616 = vrot.slane %v583, 6
        %v617 = vsel %vm423, %v615, %v616
        %v618 = vsel %vm423, %v614, %v615
        %v619 = vsel %vm423, %v613, %v614
        %v620 = vsel %vm423, %v612, %v613
        %v621 = vsel %vm423, %v611, %v612
        %v622 = vsel %vm423, %v616, %v611
        %s623 = sadd.s32 %s402, 8
        %s624 = sld [smem:[#allocation2 + %s623]]
        %v625 = vstv %s624
        %v626 = vmul.f32 %v625, %v622
        %v627 = vmul.f32 %v625, %v621
        %v628 = vmul.f32 %v625, %v620
        %v629 = vmul.f32 %v625, %v619
        %v630 = vmul.f32 %v625, %v618
        %v631 = vmul.f32 %v625, %v617
        %v632 = vadd.f32 %v605, %v626
        %v633 = vadd.f32 %v606, %v627
        %v634 = vadd.f32 %v607, %v628
        %v635 = vadd.f32 %v608, %v629
        %v636 = vadd.f32 %v609, %v630
        %v637 = vadd.f32 %v610, %v631
        %v638 = vrot.slane %v573, 7
        %v639 = vrot.slane %v575, 7
        %v640 = vrot.slane %v577, 7
        %v641 = vrot.slane %v579, 7
        %v642 = vrot.slane %v581, 7
        %v643 = vrot.slane %v583, 7
        %v644 = vsel %vm451, %v642, %v643
        %v645 = vsel %vm451, %v641, %v642
        %v646 = vsel %vm451, %v640, %v641
        %v647 = vsel %vm451, %v639, %v640
        %v648 = vsel %vm451, %v638, %v639
        %v649 = vsel %vm451, %v643, %v638
        %s650 = sadd.s32 %s402, 15
        %s651 = sld [smem:[#allocation2 + %s650]]
        %v652 = vstv %s651
        %v653 = vmul.f32 %v652, %v649
        %v654 = vmul.f32 %v652, %v648
        %v655 = vmul.f32 %v652, %v647
        %v656 = vmul.f32 %v652, %v646
        %v657 = vmul.f32 %v652, %v645
        %v658 = vmul.f32 %v652, %v644
        %v659 = vadd.f32 %v632, %v653
        %v660 = vadd.f32 %v633, %v654
        %v661 = vadd.f32 %v634, %v655
        %v662 = vadd.f32 %v635, %v656
        %v663 = vadd.f32 %v636, %v657
        %v664 = vadd.f32 %v637, %v658
        %s665 = sadd.s32 %s402, 22
        %s666 = sld [smem:[#allocation2 + %s665]]
        %v667 = vstv %s666
        %v668 = vmul.f32 %v667, %v573
        %v669 = vmul.f32 %v667, %v575
        %v670 = vmul.f32 %v667, %v577
        %v671 = vmul.f32 %v667, %v579
        %v672 = vmul.f32 %v667, %v581
        %v673 = vmul.f32 %v667, %v583
        %v674 = vadd.f32 %v659, %v668
        %v675 = vadd.f32 %v660, %v669
        %v676 = vadd.f32 %v661, %v670
        %v677 = vadd.f32 %v662, %v671
        %v678 = vadd.f32 %v663, %v672
        %v679 = vadd.f32 %v664, %v673
        %v680 = vrot.slane %v573, 1
        %v681 = vrot.slane %v575, 1
        %v682 = vrot.slane %v577, 1
        %v683 = vrot.slane %v579, 1
        %v684 = vrot.slane %v581, 1
        %v685 = vrot.slane %v583, 1
        %v686 = vsel %vm494, %v684, %v685
        %v687 = vsel %vm494, %v683, %v684
        %v688 = vsel %vm494, %v682, %v683
        %v689 = vsel %vm494, %v681, %v682
        %v690 = vsel %vm494, %v680, %v681
        %v691 = vsel %vm494, %v685, %v680
        %s692 = sadd.s32 %s402, 29
        %s693 = sld [smem:[#allocation2 + %s692]]
        %v694 = vstv %s693
        %v695 = vmul.f32 %v694, %v690
        %v696 = vmul.f32 %v694, %v689
        %v697 = vmul.f32 %v694, %v688
        %v698 = vmul.f32 %v694, %v687
        %v699 = vmul.f32 %v694, %v686
        %v700 = vmul.f32 %v694, %v691
        %v701 = vadd.f32 %v674, %v695
        %v702 = vadd.f32 %v675, %v696
        %v703 = vadd.f32 %v676, %v697
        %v704 = vadd.f32 %v677, %v698
        %v705 = vadd.f32 %v678, %v699
        %v706 = vadd.f32 %v679, %v700
        %v707 = vrot.slane %v573, 2
        %v708 = vrot.slane %v575, 2
        %v709 = vrot.slane %v577, 2
        %v710 = vrot.slane %v579, 2
        %v711 = vrot.slane %v581, 2
        %v712 = vrot.slane %v583, 2
        %v713 = vsel %vm522, %v711, %v712
        %v714 = vsel %vm522, %v710, %v711
        %v715 = vsel %vm522, %v709, %v710
        %v716 = vsel %vm522, %v708, %v709
        %v717 = vsel %vm522, %v707, %v708
        %v718 = vsel %vm522, %v712, %v707
        %s719 = sadd.s32 %s402, 36
        %s720 = sld [smem:[#allocation2 + %s719]]
        %v721 = vstv %s720
        %v722 = vmul.f32 %v721, %v717
        %v723 = vmul.f32 %v721, %v716
        %v724 = vmul.f32 %v721, %v715
        %v725 = vmul.f32 %v721, %v714
        %v726 = vmul.f32 %v721, %v713
        %v727 = vmul.f32 %v721, %v718
        %v728 = vadd.f32 %v701, %v722
        %v729 = vadd.f32 %v702, %v723
        %v730 = vadd.f32 %v703, %v724
        %v731 = vadd.f32 %v704, %v725
        %v732 = vadd.f32 %v705, %v726
        %v733 = vadd.f32 %v706, %v727
        %v734 = vrot.slane %v573, 3
        %v735 = vrot.slane %v575, 3
        %v736 = vrot.slane %v577, 3
        %v737 = vrot.slane %v579, 3
        %v738 = vrot.slane %v581, 3
        %v739 = vrot.slane %v583, 3
        %v740 = vsel %vm550, %v738, %v739
        %v741 = vsel %vm550, %v737, %v738
        %v742 = vsel %vm550, %v736, %v737
        %v743 = vsel %vm550, %v735, %v736
        %v744 = vsel %vm550, %v734, %v735
        %v745 = vsel %vm550, %v739, %v734
        %s746 = sadd.s32 %s402, 43
        %s747 = sld [smem:[#allocation2 + %s746]]
        %v748 = vstv %s747
        %v749 = vmul.f32 %v748, %v744
        %v750 = vmul.f32 %v748, %v743
        %v751 = vmul.f32 %v748, %v742
        %v752 = vmul.f32 %v748, %v741
        %v753 = vmul.f32 %v748, %v740
        %v754 = vmul.f32 %v748, %v745
        %v755 = vadd.f32 %v728, %v749
        %v756 = vadd.f32 %v729, %v750
        %v757 = vadd.f32 %v730, %v751
        %v758 = vadd.f32 %v731, %v752
        %v759 = vadd.f32 %v732, %v753
        %v760 = vadd.f32 %v733, %v754
        %761 = vrot.lane.b32.xlu0 %v349, 1
        %v762 = vpop.permute.xlu0 %761
        %763 = vrot.lane.b32.xlu0 %v350, 1
        %v764 = vpop.permute.xlu0 %763
        %765 = vrot.lane.b32.xlu0 %v351, 1
        %v766 = vpop.permute.xlu0 %765
        %767 = vrot.lane.b32.xlu0 %v352, 1
        %v768 = vpop.permute.xlu0 %767
        %769 = vrot.lane.b32.xlu0 %v353, 1
        %v770 = vpop.permute.xlu0 %769
        %771 = vrot.lane.b32.xlu0 %v354, 1
        %v772 = vpop.permute.xlu0 %771
        %v773 = vrot.slane %v762, 5
        %v774 = vrot.slane %v764, 5
        %v775 = vrot.slane %v766, 5
        %v776 = vrot.slane %v768, 5
        %v777 = vrot.slane %v770, 5
        %v778 = vrot.slane %v772, 5
        %v779 = vsel %vm395, %v777, %v778
        %v780 = vsel %vm395, %v776, %v777
        %v781 = vsel %vm395, %v775, %v776
        %v782 = vsel %vm395, %v774, %v775
        %v783 = vsel %vm395, %v773, %v774
        %v784 = vsel %vm395, %v778, %v773
        %s785 = sadd.s32 %s402, 2
        %s786 = sld [smem:[#allocation2 + %s785]]
        %v787 = vstv %s786
        %v788 = vmul.f32 %v787, %v784
        %v789 = vmul.f32 %v787, %v783
        %v790 = vmul.f32 %v787, %v782
        %v791 = vmul.f32 %v787, %v781
        %v792 = vmul.f32 %v787, %v780
        %v793 = vmul.f32 %v787, %v779
        %v794 = vadd.f32 %v755, %v788
        %v795 = vadd.f32 %v756, %v789
        %v796 = vadd.f32 %v757, %v790
        %v797 = vadd.f32 %v758, %v791
        %v798 = vadd.f32 %v759, %v792
        %v799 = vadd.f32 %v760, %v793
        %v800 = vrot.slane %v762, 6
        %v801 = vrot.slane %v764, 6
        %v802 = vrot.slane %v766, 6
        %v803 = vrot.slane %v768, 6
        %v804 = vrot.slane %v770, 6
        %v805 = vrot.slane %v772, 6
        %v806 = vsel %vm423, %v804, %v805
        %v807 = vsel %vm423, %v803, %v804
        %v808 = vsel %vm423, %v802, %v803
        %v809 = vsel %vm423, %v801, %v802
        %v810 = vsel %vm423, %v800, %v801
        %v811 = vsel %vm423, %v805, %v800
        %s812 = sadd.s32 %s402, 9
        %s813 = sld [smem:[#allocation2 + %s812]]
        %v814 = vstv %s813
        %v815 = vmul.f32 %v814, %v811
        %v816 = vmul.f32 %v814, %v810
        %v817 = vmul.f32 %v814, %v809
        %v818 = vmul.f32 %v814, %v808
        %v819 = vmul.f32 %v814, %v807
        %v820 = vmul.f32 %v814, %v806
        %v821 = vadd.f32 %v794, %v815
        %v822 = vadd.f32 %v795, %v816
        %v823 = vadd.f32 %v796, %v817
        %v824 = vadd.f32 %v797, %v818
        %v825 = vadd.f32 %v798, %v819
        %v826 = vadd.f32 %v799, %v820
        %v827 = vrot.slane %v762, 7
        %v828 = vrot.slane %v764, 7
        %v829 = vrot.slane %v766, 7
        %v830 = vrot.slane %v768, 7
        %v831 = vrot.slane %v770, 7
        %v832 = vrot.slane %v772, 7
        %v833 = vsel %vm451, %v831, %v832
        %v834 = vsel %vm451, %v830, %v831
        %v835 = vsel %vm451, %v829, %v830
        %v836 = vsel %vm451, %v828, %v829
        %v837 = vsel %vm451, %v827, %v828
        %v838 = vsel %vm451, %v832, %v827
        %s839 = sadd.s32 %s402, 16
        %s840 = sld [smem:[#allocation2 + %s839]]
        %v841 = vstv %s840
        %v842 = vmul.f32 %v841, %v838
        %v843 = vmul.f32 %v841, %v837
        %v844 = vmul.f32 %v841, %v836
        %v845 = vmul.f32 %v841, %v835
        %v846 = vmul.f32 %v841, %v834
        %v847 = vmul.f32 %v841, %v833
        %v848 = vadd.f32 %v821, %v842
        %v849 = vadd.f32 %v822, %v843
        %v850 = vadd.f32 %v823, %v844
        %v851 = vadd.f32 %v824, %v845
        %v852 = vadd.f32 %v825, %v846
        %v853 = vadd.f32 %v826, %v847
        %s854 = sadd.s32 %s402, 23
        %s855 = sld [smem:[#allocation2 + %s854]]
        %v856 = vstv %s855
        %v857 = vmul.f32 %v856, %v762
        %v858 = vmul.f32 %v856, %v764
        %v859 = vmul.f32 %v856, %v766
        %v860 = vmul.f32 %v856, %v768
        %v861 = vmul.f32 %v856, %v770
        %v862 = vmul.f32 %v856, %v772
        %v863 = vadd.f32 %v848, %v857
        %v864 = vadd.f32 %v849, %v858
        %v865 = vadd.f32 %v850, %v859
        %v866 = vadd.f32 %v851, %v860
        %v867 = vadd.f32 %v852, %v861
        %v868 = vadd.f32 %v853, %v862
        %v869 = vrot.slane %v762, 1
        %v870 = vrot.slane %v764, 1
        %v871 = vrot.slane %v766, 1
        %v872 = vrot.slane %v768, 1
        %v873 = vrot.slane %v770, 1
        %v874 = vrot.slane %v772, 1
        %v875 = vsel %vm494, %v873, %v874
        %v876 = vsel %vm494, %v872, %v873
        %v877 = vsel %vm494, %v871, %v872
        %v878 = vsel %vm494, %v870, %v871
        %v879 = vsel %vm494, %v869, %v870
        %v880 = vsel %vm494, %v874, %v869
        %s881 = sadd.s32 %s402, 30
        %s882 = sld [smem:[#allocation2 + %s881]]
        %v883 = vstv %s882
        %v884 = vmul.f32 %v883, %v879
        %v885 = vmul.f32 %v883, %v878
        %v886 = vmul.f32 %v883, %v877
        %v887 = vmul.f32 %v883, %v876
        %v888 = vmul.f32 %v883, %v875
        %v889 = vmul.f32 %v883, %v880
        %v890 = vadd.f32 %v863, %v884
        %v891 = vadd.f32 %v864, %v885
        %v892 = vadd.f32 %v865, %v886
        %v893 = vadd.f32 %v866, %v887
        %v894 = vadd.f32 %v867, %v888
        %v895 = vadd.f32 %v868, %v889
        %v896 = vrot.slane %v762, 2
        %v897 = vrot.slane %v764, 2
        %v898 = vrot.slane %v766, 2
        %v899 = vrot.slane %v768, 2
        %v900 = vrot.slane %v770, 2
        %v901 = vrot.slane %v772, 2
        %v902 = vsel %vm522, %v900, %v901
        %v903 = vsel %vm522, %v899, %v900
        %v904 = vsel %vm522, %v898, %v899
        %v905 = vsel %vm522, %v897, %v898
        %v906 = vsel %vm522, %v896, %v897
        %v907 = vsel %vm522, %v901, %v896
        %s908 = sadd.s32 %s402, 37
        %s909 = sld [smem:[#allocation2 + %s908]]
        %v910 = vstv %s909
        %v911 = vmul.f32 %v910, %v906
        %v912 = vmul.f32 %v910, %v905
        %v913 = vmul.f32 %v910, %v904
        %v914 = vmul.f32 %v910, %v903
        %v915 = vmul.f32 %v910, %v902
        %v916 = vmul.f32 %v910, %v907
        %v917 = vadd.f32 %v890, %v911
        %v918 = vadd.f32 %v891, %v912
        %v919 = vadd.f32 %v892, %v913
        %v920 = vadd.f32 %v893, %v914
        %v921 = vadd.f32 %v894, %v915
        %v922 = vadd.f32 %v895, %v916
        %v923 = vrot.slane %v762, 3
        %v924 = vrot.slane %v764, 3
        %v925 = vrot.slane %v766, 3
        %v926 = vrot.slane %v768, 3
        %v927 = vrot.slane %v770, 3
        %v928 = vrot.slane %v772, 3
        %v929 = vsel %vm550, %v927, %v928
        %v930 = vsel %vm550, %v926, %v927
        %v931 = vsel %vm550, %v925, %v926
        %v932 = vsel %vm550, %v924, %v925
        %v933 = vsel %vm550, %v923, %v924
        %v934 = vsel %vm550, %v928, %v923
        %s935 = sadd.s32 %s402, 44
        %s936 = sld [smem:[#allocation2 + %s935]]
        %v937 = vstv %s936
        %v938 = vmul.f32 %v937, %v933
        %v939 = vmul.f32 %v937, %v932
        %v940 = vmul.f32 %v937, %v931
        %v941 = vmul.f32 %v937, %v930
        %v942 = vmul.f32 %v937, %v929
        %v943 = vmul.f32 %v937, %v934
        %v944 = vadd.f32 %v917, %v938
        %v945 = vadd.f32 %v918, %v939
        %v946 = vadd.f32 %v919, %v940
        %v947 = vadd.f32 %v920, %v941
        %v948 = vadd.f32 %v921, %v942
        %v949 = vadd.f32 %v922, %v943
        %v950 = vrot.slane %v349, 5
        %v951 = vrot.slane %v350, 5
        %v952 = vrot.slane %v351, 5
        %v953 = vrot.slane %v352, 5
        %v954 = vrot.slane %v353, 5
        %v955 = vrot.slane %v354, 5
        %v956 = vsel %vm395, %v954, %v955
        %v957 = vsel %vm395, %v953, %v954
        %v958 = vsel %vm395, %v952, %v953
        %v959 = vsel %vm395, %v951, %v952
        %v960 = vsel %vm395, %v950, %v951
        %v961 = vsel %vm395, %v955, %v950
        %s962 = sadd.s32 %s402, 3
        %s963 = sld [smem:[#allocation2 + %s962]]
        %v964 = vstv %s963
        %v965 = vmul.f32 %v964, %v961
        %v966 = vmul.f32 %v964, %v960
        %v967 = vmul.f32 %v964, %v959
        %v968 = vmul.f32 %v964, %v958
        %v969 = vmul.f32 %v964, %v957
        %v970 = vmul.f32 %v964, %v956
        %v971 = vadd.f32 %v944, %v965
        %v972 = vadd.f32 %v945, %v966
        %v973 = vadd.f32 %v946, %v967
        %v974 = vadd.f32 %v947, %v968
        %v975 = vadd.f32 %v948, %v969
        %v976 = vadd.f32 %v949, %v970
        %v977 = vrot.slane %v349, 6
        %v978 = vrot.slane %v350, 6
        %v979 = vrot.slane %v351, 6
        %v980 = vrot.slane %v352, 6
        %v981 = vrot.slane %v353, 6
        %v982 = vrot.slane %v354, 6
        %v983 = vsel %vm423, %v981, %v982
        %v984 = vsel %vm423, %v980, %v981
        %v985 = vsel %vm423, %v979, %v980
        %v986 = vsel %vm423, %v978, %v979
        %v987 = vsel %vm423, %v977, %v978
        %v988 = vsel %vm423, %v982, %v977
        %s989 = sadd.s32 %s402, 10
        %s990 = sld [smem:[#allocation2 + %s989]]
        %v991 = vstv %s990
        %v992 = vmul.f32 %v991, %v988
        %v993 = vmul.f32 %v991, %v987
        %v994 = vmul.f32 %v991, %v986
        %v995 = vmul.f32 %v991, %v985
        %v996 = vmul.f32 %v991, %v984
        %v997 = vmul.f32 %v991, %v983
        %v998 = vadd.f32 %v971, %v992
        %v999 = vadd.f32 %v972, %v993
        %v1000 = vadd.f32 %v973, %v994
        %v1001 = vadd.f32 %v974, %v995
        %v1002 = vadd.f32 %v975, %v996
        %v1003 = vadd.f32 %v976, %v997
        %v1004 = vrot.slane %v349, 7
        %v1005 = vrot.slane %v350, 7
        %v1006 = vrot.slane %v351, 7
        %v1007 = vrot.slane %v352, 7
        %v1008 = vrot.slane %v353, 7
        %v1009 = vrot.slane %v354, 7
        %v1010 = vsel %vm451, %v1008, %v1009
        %v1011 = vsel %vm451, %v1007, %v1008
        %v1012 = vsel %vm451, %v1006, %v1007
        %v1013 = vsel %vm451, %v1005, %v1006
        %v1014 = vsel %vm451, %v1004, %v1005
        %v1015 = vsel %vm451, %v1009, %v1004
        %s1016 = sadd.s32 %s402, 17
        %s1017 = sld [smem:[#allocation2 + %s1016]]
        %v1018 = vstv %s1017
        %v1019 = vmul.f32 %v1018, %v1015
        %v1020 = vmul.f32 %v1018, %v1014
        %v1021 = vmul.f32 %v1018, %v1013
        %v1022 = vmul.f32 %v1018, %v1012
        %v1023 = vmul.f32 %v1018, %v1011
        %v1024 = vmul.f32 %v1018, %v1010
        %v1025 = vadd.f32 %v998, %v1019
        %v1026 = vadd.f32 %v999, %v1020
        %v1027 = vadd.f32 %v1000, %v1021
        %v1028 = vadd.f32 %v1001, %v1022
        %v1029 = vadd.f32 %v1002, %v1023
        %v1030 = vadd.f32 %v1003, %v1024
        %s1031 = sadd.s32 %s402, 24
        %s1032 = sld [smem:[#allocation2 + %s1031]]
        %v1033 = vstv %s1032
        %v1034 = vmul.f32 %v1033, %v349
        %v1035 = vmul.f32 %v1033, %v350
        %v1036 = vmul.f32 %v1033, %v351
        %v1037 = vmul.f32 %v1033, %v352
        %v1038 = vmul.f32 %v1033, %v353
        %v1039 = vmul.f32 %v1033, %v354
        %v1040 = vadd.f32 %v1025, %v1034
        %v1041 = vadd.f32 %v1026, %v1035
        %v1042 = vadd.f32 %v1027, %v1036
        %v1043 = vadd.f32 %v1028, %v1037
        %v1044 = vadd.f32 %v1029, %v1038
        %v1045 = vadd.f32 %v1030, %v1039
        %v1046 = vrot.slane %v349, 1
        %v1047 = vrot.slane %v350, 1
        %v1048 = vrot.slane %v351, 1
        %v1049 = vrot.slane %v352, 1
        %v1050 = vrot.slane %v353, 1
        %v1051 = vrot.slane %v354, 1
        %v1052 = vsel %vm494, %v1050, %v1051
        %v1053 = vsel %vm494, %v1049, %v1050
        %v1054 = vsel %vm494, %v1048, %v1049
        %v1055 = vsel %vm494, %v1047, %v1048
        %v1056 = vsel %vm494, %v1046, %v1047
        %v1057 = vsel %vm494, %v1051, %v1046
        %s1058 = sadd.s32 %s402, 31
        %s1059 = sld [smem:[#allocation2 + %s1058]]
        %v1060 = vstv %s1059
        %v1061 = vmul.f32 %v1060, %v1056
        %v1062 = vmul.f32 %v1060, %v1055
        %v1063 = vmul.f32 %v1060, %v1054
        %v1064 = vmul.f32 %v1060, %v1053
        %v1065 = vmul.f32 %v1060, %v1052
        %v1066 = vmul.f32 %v1060, %v1057
        %v1067 = vadd.f32 %v1040, %v1061
        %v1068 = vadd.f32 %v1041, %v1062
        %v1069 = vadd.f32 %v1042, %v1063
        %v1070 = vadd.f32 %v1043, %v1064
        %v1071 = vadd.f32 %v1044, %v1065
        %v1072 = vadd.f32 %v1045, %v1066
        %v1073 = vrot.slane %v349, 2
        %v1074 = vrot.slane %v350, 2
        %v1075 = vrot.slane %v351, 2
        %v1076 = vrot.slane %v352, 2
        %v1077 = vrot.slane %v353, 2
        %v1078 = vrot.slane %v354, 2
        %v1079 = vsel %vm522, %v1077, %v1078
        %v1080 = vsel %vm522, %v1076, %v1077
        %v1081 = vsel %vm522, %v1075, %v1076
        %v1082 = vsel %vm522, %v1074, %v1075
        %v1083 = vsel %vm522, %v1073, %v1074
        %v1084 = vsel %vm522, %v1078, %v1073
        %s1085 = sadd.s32 %s402, 38
        %s1086 = sld [smem:[#allocation2 + %s1085]]
        %v1087 = vstv %s1086
        %v1088 = vmul.f32 %v1087, %v1083
        %v1089 = vmul.f32 %v1087, %v1082
        %v1090 = vmul.f32 %v1087, %v1081
        %v1091 = vmul.f32 %v1087, %v1080
        %v1092 = vmul.f32 %v1087, %v1079
        %v1093 = vmul.f32 %v1087, %v1084
        %v1094 = vadd.f32 %v1067, %v1088
        %v1095 = vadd.f32 %v1068, %v1089
        %v1096 = vadd.f32 %v1069, %v1090
        %v1097 = vadd.f32 %v1070, %v1091
        %v1098 = vadd.f32 %v1071, %v1092
        %v1099 = vadd.f32 %v1072, %v1093
        %v1100 = vrot.slane %v349, 3
        %v1101 = vrot.slane %v350, 3
        %v1102 = vrot.slane %v351, 3
        %v1103 = vrot.slane %v352, 3
        %v1104 = vrot.slane %v353, 3
        %v1105 = vrot.slane %v354, 3
        %v1106 = vsel %vm550, %v1104, %v1105
        %v1107 = vsel %vm550, %v1103, %v1104
        %v1108 = vsel %vm550, %v1102, %v1103
        %v1109 = vsel %vm550, %v1101, %v1102
        %v1110 = vsel %vm550, %v1100, %v1101
        %v1111 = vsel %vm550, %v1105, %v1100
        %s1112 = sadd.s32 %s402, 45
        %s1113 = sld [smem:[#allocation2 + %s1112]]
        %v1114 = vstv %s1113
        %v1115 = vmul.f32 %v1114, %v1110
        %v1116 = vmul.f32 %v1114, %v1109
        %v1117 = vmul.f32 %v1114, %v1108
        %v1118 = vmul.f32 %v1114, %v1107
        %v1119 = vmul.f32 %v1114, %v1106
        %v1120 = vmul.f32 %v1114, %v1111
        %v1121 = vadd.f32 %v1094, %v1115
        %v1122 = vadd.f32 %v1095, %v1116
        %v1123 = vadd.f32 %v1096, %v1117
        %v1124 = vadd.f32 %v1097, %v1118
        %v1125 = vadd.f32 %v1098, %v1119
        %v1126 = vadd.f32 %v1099, %v1120
        %1127 = vrot.lane.b32.xlu0 %v349, 127
        %v1128 = vpop.permute.xlu0 %1127
        %1129 = vrot.lane.b32.xlu0 %v350, 127
        %v1130 = vpop.permute.xlu0 %1129
        %1131 = vrot.lane.b32.xlu0 %v351, 127
        %v1132 = vpop.permute.xlu0 %1131
        %1133 = vrot.lane.b32.xlu0 %v352, 127
        %v1134 = vpop.permute.xlu0 %1133
        %1135 = vrot.lane.b32.xlu0 %v353, 127
        %v1136 = vpop.permute.xlu0 %1135
        %1137 = vrot.lane.b32.xlu0 %v354, 127
        %v1138 = vpop.permute.xlu0 %1137
        %v1139 = vrot.slane %v1128, 5
        %v1140 = vrot.slane %v1130, 5
        %v1141 = vrot.slane %v1132, 5
        %v1142 = vrot.slane %v1134, 5
        %v1143 = vrot.slane %v1136, 5
        %v1144 = vrot.slane %v1138, 5
        %v1145 = vsel %vm395, %v1143, %v1144
        %v1146 = vsel %vm395, %v1142, %v1143
        %v1147 = vsel %vm395, %v1141, %v1142
        %v1148 = vsel %vm395, %v1140, %v1141
        %v1149 = vsel %vm395, %v1139, %v1140
        %v1150 = vsel %vm395, %v1144, %v1139
        %s1151 = sadd.s32 %s402, 4
        %s1152 = sld [smem:[#allocation2 + %s1151]]
        %v1153 = vstv %s1152
        %v1154 = vmul.f32 %v1153, %v1150
        %v1155 = vmul.f32 %v1153, %v1149
        %v1156 = vmul.f32 %v1153, %v1148
        %v1157 = vmul.f32 %v1153, %v1147
        %v1158 = vmul.f32 %v1153, %v1146
        %v1159 = vmul.f32 %v1153, %v1145
        %v1160 = vadd.f32 %v1121, %v1154
        %v1161 = vadd.f32 %v1122, %v1155
        %v1162 = vadd.f32 %v1123, %v1156
        %v1163 = vadd.f32 %v1124, %v1157
        %v1164 = vadd.f32 %v1125, %v1158
        %v1165 = vadd.f32 %v1126, %v1159
        %v1166 = vrot.slane %v1128, 6
        %v1167 = vrot.slane %v1130, 6
        %v1168 = vrot.slane %v1132, 6
        %v1169 = vrot.slane %v1134, 6
        %v1170 = vrot.slane %v1136, 6
        %v1171 = vrot.slane %v1138, 6
        %v1172 = vsel %vm423, %v1170, %v1171
        %v1173 = vsel %vm423, %v1169, %v1170
        %v1174 = vsel %vm423, %v1168, %v1169
        %v1175 = vsel %vm423, %v1167, %v1168
        %v1176 = vsel %vm423, %v1166, %v1167
        %v1177 = vsel %vm423, %v1171, %v1166
        %s1178 = sadd.s32 %s402, 11
        %s1179 = sld [smem:[#allocation2 + %s1178]]
        %v1180 = vstv %s1179
        %v1181 = vmul.f32 %v1180, %v1177
        %v1182 = vmul.f32 %v1180, %v1176
        %v1183 = vmul.f32 %v1180, %v1175
        %v1184 = vmul.f32 %v1180, %v1174
        %v1185 = vmul.f32 %v1180, %v1173
        %v1186 = vmul.f32 %v1180, %v1172
        %v1187 = vadd.f32 %v1160, %v1181
        %v1188 = vadd.f32 %v1161, %v1182
        %v1189 = vadd.f32 %v1162, %v1183
        %v1190 = vadd.f32 %v1163, %v1184
        %v1191 = vadd.f32 %v1164, %v1185
        %v1192 = vadd.f32 %v1165, %v1186
        %v1193 = vrot.slane %v1128, 7
        %v1194 = vrot.slane %v1130, 7
        %v1195 = vrot.slane %v1132, 7
        %v1196 = vrot.slane %v1134, 7
        %v1197 = vrot.slane %v1136, 7
        %v1198 = vrot.slane %v1138, 7
        %v1199 = vsel %vm451, %v1197, %v1198
        %v1200 = vsel %vm451, %v1196, %v1197
        %v1201 = vsel %vm451, %v1195, %v1196
        %v1202 = vsel %vm451, %v1194, %v1195
        %v1203 = vsel %vm451, %v1193, %v1194
        %v1204 = vsel %vm451, %v1198, %v1193
        %s1205 = sadd.s32 %s402, 18
        %s1206 = sld [smem:[#allocation2 + %s1205]]
        %v1207 = vstv %s1206
        %v1208 = vmul.f32 %v1207, %v1204
        %v1209 = vmul.f32 %v1207, %v1203
        %v1210 = vmul.f32 %v1207, %v1202
        %v1211 = vmul.f32 %v1207, %v1201
        %v1212 = vmul.f32 %v1207, %v1200
        %v1213 = vmul.f32 %v1207, %v1199
        %v1214 = vadd.f32 %v1187, %v1208
        %v1215 = vadd.f32 %v1188, %v1209
        %v1216 = vadd.f32 %v1189, %v1210
        %v1217 = vadd.f32 %v1190, %v1211
        %v1218 = vadd.f32 %v1191, %v1212
        %v1219 = vadd.f32 %v1192, %v1213
        %s1220 = sadd.s32 %s402, 25
        %s1221 = sld [smem:[#allocation2 + %s1220]]
        %v1222 = vstv %s1221
        %v1223 = vmul.f32 %v1222, %v1128
        %v1224 = vmul.f32 %v1222, %v1130
        %v1225 = vmul.f32 %v1222, %v1132
        %v1226 = vmul.f32 %v1222, %v1134
        %v1227 = vmul.f32 %v1222, %v1136
        %v1228 = vmul.f32 %v1222, %v1138
        %v1229 = vadd.f32 %v1214, %v1223
        %v1230 = vadd.f32 %v1215, %v1224
        %v1231 = vadd.f32 %v1216, %v1225
        %v1232 = vadd.f32 %v1217, %v1226
        %v1233 = vadd.f32 %v1218, %v1227
        %v1234 = vadd.f32 %v1219, %v1228
        %v1235 = vrot.slane %v1128, 1
        %v1236 = vrot.slane %v1130, 1
        %v1237 = vrot.slane %v1132, 1
        %v1238 = vrot.slane %v1134, 1
        %v1239 = vrot.slane %v1136, 1
        %v1240 = vrot.slane %v1138, 1
        %v1241 = vsel %vm494, %v1239, %v1240
        %v1242 = vsel %vm494, %v1238, %v1239
        %v1243 = vsel %vm494, %v1237, %v1238
        %v1244 = vsel %vm494, %v1236, %v1237
        %v1245 = vsel %vm494, %v1235, %v1236
        %v1246 = vsel %vm494, %v1240, %v1235
        %s1247 = sadd.s32 %s402, 32
        %s1248 = sld [smem:[#allocation2 + %s1247]]
        %v1249 = vstv %s1248
        %v1250 = vmul.f32 %v1249, %v1245
        %v1251 = vmul.f32 %v1249, %v1244
        %v1252 = vmul.f32 %v1249, %v1243
        %v1253 = vmul.f32 %v1249, %v1242
        %v1254 = vmul.f32 %v1249, %v1241
        %v1255 = vmul.f32 %v1249, %v1246
        %v1256 = vadd.f32 %v1229, %v1250
        %v1257 = vadd.f32 %v1230, %v1251
        %v1258 = vadd.f32 %v1231, %v1252
        %v1259 = vadd.f32 %v1232, %v1253
        %v1260 = vadd.f32 %v1233, %v1254
        %v1261 = vadd.f32 %v1234, %v1255
        %v1262 = vrot.slane %v1128, 2
        %v1263 = vrot.slane %v1130, 2
        %v1264 = vrot.slane %v1132, 2
        %v1265 = vrot.slane %v1134, 2
        %v1266 = vrot.slane %v1136, 2
        %v1267 = vrot.slane %v1138, 2
        %v1268 = vsel %vm522, %v1266, %v1267
        %v1269 = vsel %vm522, %v1265, %v1266
        %v1270 = vsel %vm522, %v1264, %v1265
        %v1271 = vsel %vm522, %v1263, %v1264
        %v1272 = vsel %vm522, %v1262, %v1263
        %v1273 = vsel %vm522, %v1267, %v1262
        %s1274 = sadd.s32 %s402, 39
        %s1275 = sld [smem:[#allocation2 + %s1274]]
        %v1276 = vstv %s1275
        %v1277 = vmul.f32 %v1276, %v1272
        %v1278 = vmul.f32 %v1276, %v1271
        %v1279 = vmul.f32 %v1276, %v1270
        %v1280 = vmul.f32 %v1276, %v1269
        %v1281 = vmul.f32 %v1276, %v1268
        %v1282 = vmul.f32 %v1276, %v1273
        %v1283 = vadd.f32 %v1256, %v1277
        %v1284 = vadd.f32 %v1257, %v1278
        %v1285 = vadd.f32 %v1258, %v1279
        %v1286 = vadd.f32 %v1259, %v1280
        %v1287 = vadd.f32 %v1260, %v1281
        %v1288 = vadd.f32 %v1261, %v1282
        %v1289 = vrot.slane %v1128, 3
        %v1290 = vrot.slane %v1130, 3
        %v1291 = vrot.slane %v1132, 3
        %v1292 = vrot.slane %v1134, 3
        %v1293 = vrot.slane %v1136, 3
        %v1294 = vrot.slane %v1138, 3
        %v1295 = vsel %vm550, %v1293, %v1294
        %v1296 = vsel %vm550, %v1292, %v1293
        %v1297 = vsel %vm550, %v1291, %v1292
        %v1298 = vsel %vm550, %v1290, %v1291
        %v1299 = vsel %vm550, %v1289, %v1290
        %v1300 = vsel %vm550, %v1294, %v1289
        %s1301 = sadd.s32 %s402, 46
        %s1302 = sld [smem:[#allocation2 + %s1301]]
        %v1303 = vstv %s1302
        %v1304 = vmul.f32 %v1303, %v1299
        %v1305 = vmul.f32 %v1303, %v1298
        %v1306 = vmul.f32 %v1303, %v1297
        %v1307 = vmul.f32 %v1303, %v1296
        %v1308 = vmul.f32 %v1303, %v1295
        %v1309 = vmul.f32 %v1303, %v1300
        %v1310 = vadd.f32 %v1283, %v1304
        %v1311 = vadd.f32 %v1284, %v1305
        %v1312 = vadd.f32 %v1285, %v1306
        %v1313 = vadd.f32 %v1286, %v1307
        %v1314 = vadd.f32 %v1287, %v1308
        %v1315 = vadd.f32 %v1288, %v1309
        %1316 = vrot.lane.b32.xlu0 %v349, 126
        %v1317 = vpop.permute.xlu0 %1316
        %1318 = vrot.lane.b32.xlu0 %v350, 126
        %v1319 = vpop.permute.xlu0 %1318
        %1320 = vrot.lane.b32.xlu0 %v351, 126
        %v1321 = vpop.permute.xlu0 %1320
        %1322 = vrot.lane.b32.xlu0 %v352, 126
        %v1323 = vpop.permute.xlu0 %1322
        %1324 = vrot.lane.b32.xlu0 %v353, 126
        %v1325 = vpop.permute.xlu0 %1324
        %1326 = vrot.lane.b32.xlu0 %v354, 126
        %v1327 = vpop.permute.xlu0 %1326
        %v1328 = vrot.slane %v1317, 5
        %v1329 = vrot.slane %v1319, 5
        %v1330 = vrot.slane %v1321, 5
        %v1331 = vrot.slane %v1323, 5
        %v1332 = vrot.slane %v1325, 5
        %v1333 = vrot.slane %v1327, 5
        %v1334 = vsel %vm395, %v1332, %v1333
        %v1335 = vsel %vm395, %v1331, %v1332
        %v1336 = vsel %vm395, %v1330, %v1331
        %v1337 = vsel %vm395, %v1329, %v1330
        %v1338 = vsel %vm395, %v1328, %v1329
        %v1339 = vsel %vm395, %v1333, %v1328
        %s1340 = sadd.s32 %s402, 5
        %s1341 = sld [smem:[#allocation2 + %s1340]]
        %v1342 = vstv %s1341
        %v1343 = vmul.f32 %v1342, %v1339
        %v1344 = vmul.f32 %v1342, %v1338
        %v1345 = vmul.f32 %v1342, %v1337
        %v1346 = vmul.f32 %v1342, %v1336
        %v1347 = vmul.f32 %v1342, %v1335
        %v1348 = vmul.f32 %v1342, %v1334
        %v1349 = vadd.f32 %v1310, %v1343
        %v1350 = vadd.f32 %v1311, %v1344
        %v1351 = vadd.f32 %v1312, %v1345
        %v1352 = vadd.f32 %v1313, %v1346
        %v1353 = vadd.f32 %v1314, %v1347
        %v1354 = vadd.f32 %v1315, %v1348
        %v1355 = vrot.slane %v1317, 6
        %v1356 = vrot.slane %v1319, 6
        %v1357 = vrot.slane %v1321, 6
        %v1358 = vrot.slane %v1323, 6
        %v1359 = vrot.slane %v1325, 6
        %v1360 = vrot.slane %v1327, 6
        %v1361 = vsel %vm423, %v1359, %v1360
        %v1362 = vsel %vm423, %v1358, %v1359
        %v1363 = vsel %vm423, %v1357, %v1358
        %v1364 = vsel %vm423, %v1356, %v1357
        %v1365 = vsel %vm423, %v1355, %v1356
        %v1366 = vsel %vm423, %v1360, %v1355
        %s1367 = sadd.s32 %s402, 12
        %s1368 = sld [smem:[#allocation2 + %s1367]]
        %v1369 = vstv %s1368
        %v1370 = vmul.f32 %v1369, %v1366
        %v1371 = vmul.f32 %v1369, %v1365
        %v1372 = vmul.f32 %v1369, %v1364
        %v1373 = vmul.f32 %v1369, %v1363
        %v1374 = vmul.f32 %v1369, %v1362
        %v1375 = vmul.f32 %v1369, %v1361
        %v1376 = vadd.f32 %v1349, %v1370
        %v1377 = vadd.f32 %v1350, %v1371
        %v1378 = vadd.f32 %v1351, %v1372
        %v1379 = vadd.f32 %v1352, %v1373
        %v1380 = vadd.f32 %v1353, %v1374
        %v1381 = vadd.f32 %v1354, %v1375
        %v1382 = vrot.slane %v1317, 7
        %v1383 = vrot.slane %v1319, 7
        %v1384 = vrot.slane %v1321, 7
        %v1385 = vrot.slane %v1323, 7
        %v1386 = vrot.slane %v1325, 7
        %v1387 = vrot.slane %v1327, 7
        %v1388 = vsel %vm451, %v1386, %v1387
        %v1389 = vsel %vm451, %v1385, %v1386
        %v1390 = vsel %vm451, %v1384, %v1385
        %v1391 = vsel %vm451, %v1383, %v1384
        %v1392 = vsel %vm451, %v1382, %v1383
        %v1393 = vsel %vm451, %v1387, %v1382
        %s1394 = sadd.s32 %s402, 19
        %s1395 = sld [smem:[#allocation2 + %s1394]]
        %v1396 = vstv %s1395
        %v1397 = vmul.f32 %v1396, %v1393
        %v1398 = vmul.f32 %v1396, %v1392
        %v1399 = vmul.f32 %v1396, %v1391
        %v1400 = vmul.f32 %v1396, %v1390
        %v1401 = vmul.f32 %v1396, %v1389
        %v1402 = vmul.f32 %v1396, %v1388
        %v1403 = vadd.f32 %v1376, %v1397
        %v1404 = vadd.f32 %v1377, %v1398
        %v1405 = vadd.f32 %v1378, %v1399
        %v1406 = vadd.f32 %v1379, %v1400
        %v1407 = vadd.f32 %v1380, %v1401
        %v1408 = vadd.f32 %v1381, %v1402
        %s1409 = sadd.s32 %s402, 26
        %s1410 = sld [smem:[#allocation2 + %s1409]]
        %v1411 = vstv %s1410
        %v1412 = vmul.f32 %v1411, %v1317
        %v1413 = vmul.f32 %v1411, %v1319
        %v1414 = vmul.f32 %v1411, %v1321
        %v1415 = vmul.f32 %v1411, %v1323
        %v1416 = vmul.f32 %v1411, %v1325
        %v1417 = vmul.f32 %v1411, %v1327
        %v1418 = vadd.f32 %v1403, %v1412
        %v1419 = vadd.f32 %v1404, %v1413
        %v1420 = vadd.f32 %v1405, %v1414
        %v1421 = vadd.f32 %v1406, %v1415
        %v1422 = vadd.f32 %v1407, %v1416
        %v1423 = vadd.f32 %v1408, %v1417
        %v1424 = vrot.slane %v1317, 1
        %v1425 = vrot.slane %v1319, 1
        %v1426 = vrot.slane %v1321, 1
        %v1427 = vrot.slane %v1323, 1
        %v1428 = vrot.slane %v1325, 1
        %v1429 = vrot.slane %v1327, 1
        %v1430 = vsel %vm494, %v1428, %v1429
        %v1431 = vsel %vm494, %v1427, %v1428
        %v1432 = vsel %vm494, %v1426, %v1427
        %v1433 = vsel %vm494, %v1425, %v1426
        %v1434 = vsel %vm494, %v1424, %v1425
        %v1435 = vsel %vm494, %v1429, %v1424
        %s1436 = sadd.s32 %s402, 33
        %s1437 = sld [smem:[#allocation2 + %s1436]]
        %v1438 = vstv %s1437
        %v1439 = vmul.f32 %v1438, %v1434
        %v1440 = vmul.f32 %v1438, %v1433
        %v1441 = vmul.f32 %v1438, %v1432
        %v1442 = vmul.f32 %v1438, %v1431
        %v1443 = vmul.f32 %v1438, %v1430
        %v1444 = vmul.f32 %v1438, %v1435
        %v1445 = vadd.f32 %v1418, %v1439
        %v1446 = vadd.f32 %v1419, %v1440
        %v1447 = vadd.f32 %v1420, %v1441
        %v1448 = vadd.f32 %v1421, %v1442
        %v1449 = vadd.f32 %v1422, %v1443
        %v1450 = vadd.f32 %v1423, %v1444
        %v1451 = vrot.slane %v1317, 2
        %v1452 = vrot.slane %v1319, 2
        %v1453 = vrot.slane %v1321, 2
        %v1454 = vrot.slane %v1323, 2
        %v1455 = vrot.slane %v1325, 2
        %v1456 = vrot.slane %v1327, 2
        %v1457 = vsel %vm522, %v1455, %v1456
        %v1458 = vsel %vm522, %v1454, %v1455
        %v1459 = vsel %vm522, %v1453, %v1454
        %v1460 = vsel %vm522, %v1452, %v1453
        %v1461 = vsel %vm522, %v1451, %v1452
        %v1462 = vsel %vm522, %v1456, %v1451
        %s1463 = sadd.s32 %s402, 40
        %s1464 = sld [smem:[#allocation2 + %s1463]]
        %v1465 = vstv %s1464
        %v1466 = vmul.f32 %v1465, %v1461
        %v1467 = vmul.f32 %v1465, %v1460
        %v1468 = vmul.f32 %v1465, %v1459
        %v1469 = vmul.f32 %v1465, %v1458
        %v1470 = vmul.f32 %v1465, %v1457
        %v1471 = vmul.f32 %v1465, %v1462
        %v1472 = vadd.f32 %v1445, %v1466
        %v1473 = vadd.f32 %v1446, %v1467
        %v1474 = vadd.f32 %v1447, %v1468
        %v1475 = vadd.f32 %v1448, %v1469
        %v1476 = vadd.f32 %v1449, %v1470
        %v1477 = vadd.f32 %v1450, %v1471
        %v1478 = vrot.slane %v1317, 3
        %v1479 = vrot.slane %v1319, 3
        %v1480 = vrot.slane %v1321, 3
        %v1481 = vrot.slane %v1323, 3
        %v1482 = vrot.slane %v1325, 3
        %v1483 = vrot.slane %v1327, 3
        %v1484 = vsel %vm550, %v1482, %v1483
        %v1485 = vsel %vm550, %v1481, %v1482
        %v1486 = vsel %vm550, %v1480, %v1481
        %v1487 = vsel %vm550, %v1479, %v1480
        %v1488 = vsel %vm550, %v1478, %v1479
        %v1489 = vsel %vm550, %v1483, %v1478
        %s1490 = sadd.s32 %s402, 47
        %s1491 = sld [smem:[#allocation2 + %s1490]]
        %v1492 = vstv %s1491
        %v1493 = vmul.f32 %v1492, %v1488
        %v1494 = vmul.f32 %v1492, %v1487
        %v1495 = vmul.f32 %v1492, %v1486
        %v1496 = vmul.f32 %v1492, %v1485
        %v1497 = vmul.f32 %v1492, %v1484
        %v1498 = vmul.f32 %v1492, %v1489
        %v1499 = vadd.f32 %v1472, %v1493
        %v1500 = vadd.f32 %v1473, %v1494
        %v1501 = vadd.f32 %v1474, %v1495
        %v1502 = vadd.f32 %v1475, %v1496
        %v1503 = vadd.f32 %v1476, %v1497
        %v1504 = vadd.f32 %v1477, %v1498
        %1505 = vrot.lane.b32.xlu0 %v349, 125
        %v1506 = vpop.permute.xlu0 %1505
        %1507 = vrot.lane.b32.xlu0 %v350, 125
        %v1508 = vpop.permute.xlu0 %1507
        %1509 = vrot.lane.b32.xlu0 %v351, 125
        %v1510 = vpop.permute.xlu0 %1509
        %1511 = vrot.lane.b32.xlu0 %v352, 125
        %v1512 = vpop.permute.xlu0 %1511
        %1513 = vrot.lane.b32.xlu0 %v353, 125
        %v1514 = vpop.permute.xlu0 %1513
        %1515 = vrot.lane.b32.xlu0 %v354, 125
        %v1516 = vpop.permute.xlu0 %1515
        %v1517 = vrot.slane %v1506, 5
        %v1518 = vrot.slane %v1508, 5
        %v1519 = vrot.slane %v1510, 5
        %v1520 = vrot.slane %v1512, 5
        %v1521 = vrot.slane %v1514, 5
        %v1522 = vrot.slane %v1516, 5
        %v1523 = vsel %vm395, %v1521, %v1522
        %v1524 = vsel %vm395, %v1520, %v1521
        %v1525 = vsel %vm395, %v1519, %v1520
        %v1526 = vsel %vm395, %v1518, %v1519
        %v1527 = vsel %vm395, %v1517, %v1518
        %v1528 = vsel %vm395, %v1522, %v1517
        %s1529 = sadd.s32 %s402, 6
        %s1530 = sld [smem:[#allocation2 + %s1529]]
        %v1531 = vstv %s1530
        %v1532 = vmul.f32 %v1531, %v1528
        %v1533 = vmul.f32 %v1531, %v1527
        %v1534 = vmul.f32 %v1531, %v1526
        %v1535 = vmul.f32 %v1531, %v1525
        %v1536 = vmul.f32 %v1531, %v1524
        %v1537 = vmul.f32 %v1531, %v1523
        %v1538 = vadd.f32 %v1499, %v1532
        %v1539 = vadd.f32 %v1500, %v1533
        %v1540 = vadd.f32 %v1501, %v1534
        %v1541 = vadd.f32 %v1502, %v1535
        %v1542 = vadd.f32 %v1503, %v1536
        %v1543 = vadd.f32 %v1504, %v1537
        %v1544 = vrot.slane %v1506, 6
        %v1545 = vrot.slane %v1508, 6
        %v1546 = vrot.slane %v1510, 6
        %v1547 = vrot.slane %v1512, 6
        %v1548 = vrot.slane %v1514, 6
        %v1549 = vrot.slane %v1516, 6
        %v1550 = vsel %vm423, %v1548, %v1549
        %v1551 = vsel %vm423, %v1547, %v1548
        %v1552 = vsel %vm423, %v1546, %v1547
        %v1553 = vsel %vm423, %v1545, %v1546
        %v1554 = vsel %vm423, %v1544, %v1545
        %v1555 = vsel %vm423, %v1549, %v1544
        %s1556 = sadd.s32 %s402, 13
        %s1557 = sld [smem:[#allocation2 + %s1556]]
        %v1558 = vstv %s1557
        %v1559 = vmul.f32 %v1558, %v1555
        %v1560 = vmul.f32 %v1558, %v1554
        %v1561 = vmul.f32 %v1558, %v1553
        %v1562 = vmul.f32 %v1558, %v1552
        %v1563 = vmul.f32 %v1558, %v1551
        %v1564 = vmul.f32 %v1558, %v1550
        %v1565 = vadd.f32 %v1538, %v1559
        %v1566 = vadd.f32 %v1539, %v1560
        %v1567 = vadd.f32 %v1540, %v1561
        %v1568 = vadd.f32 %v1541, %v1562
        %v1569 = vadd.f32 %v1542, %v1563
        %v1570 = vadd.f32 %v1543, %v1564
        %v1571 = vrot.slane %v1506, 7
        %v1572 = vrot.slane %v1508, 7
        %v1573 = vrot.slane %v1510, 7
        %v1574 = vrot.slane %v1512, 7
        %v1575 = vrot.slane %v1514, 7
        %v1576 = vrot.slane %v1516, 7
        %v1577 = vsel %vm451, %v1575, %v1576
        %v1578 = vsel %vm451, %v1574, %v1575
        %v1579 = vsel %vm451, %v1573, %v1574
        %v1580 = vsel %vm451, %v1572, %v1573
        %v1581 = vsel %vm451, %v1571, %v1572
        %v1582 = vsel %vm451, %v1576, %v1571
        %s1583 = sadd.s32 %s402, 20
        %s1584 = sld [smem:[#allocation2 + %s1583]]
        %v1585 = vstv %s1584
        %v1586 = vmul.f32 %v1585, %v1582
        %v1587 = vmul.f32 %v1585, %v1581
        %v1588 = vmul.f32 %v1585, %v1580
        %v1589 = vmul.f32 %v1585, %v1579
        %v1590 = vmul.f32 %v1585, %v1578
        %v1591 = vmul.f32 %v1585, %v1577
        %v1592 = vadd.f32 %v1565, %v1586
        %v1593 = vadd.f32 %v1566, %v1587
        %v1594 = vadd.f32 %v1567, %v1588
        %v1595 = vadd.f32 %v1568, %v1589
        %v1596 = vadd.f32 %v1569, %v1590
        %v1597 = vadd.f32 %v1570, %v1591
        %s1598 = sadd.s32 %s402, 27
        %s1599 = sld [smem:[#allocation2 + %s1598]]
        %v1600 = vstv %s1599
        %v1601 = vmul.f32 %v1600, %v1506
        %v1602 = vmul.f32 %v1600, %v1508
        %v1603 = vmul.f32 %v1600, %v1510
        %v1604 = vmul.f32 %v1600, %v1512
        %v1605 = vmul.f32 %v1600, %v1514
        %v1606 = vmul.f32 %v1600, %v1516
        %v1607 = vadd.f32 %v1592, %v1601
        %v1608 = vadd.f32 %v1593, %v1602
        %v1609 = vadd.f32 %v1594, %v1603
        %v1610 = vadd.f32 %v1595, %v1604
        %v1611 = vadd.f32 %v1596, %v1605
        %v1612 = vadd.f32 %v1597, %v1606
        %v1613 = vrot.slane %v1506, 1
        %v1614 = vrot.slane %v1508, 1
        %v1615 = vrot.slane %v1510, 1
        %v1616 = vrot.slane %v1512, 1
        %v1617 = vrot.slane %v1514, 1
        %v1618 = vrot.slane %v1516, 1
        %v1619 = vsel %vm494, %v1617, %v1618
        %v1620 = vsel %vm494, %v1616, %v1617
        %v1621 = vsel %vm494, %v1615, %v1616
        %v1622 = vsel %vm494, %v1614, %v1615
        %v1623 = vsel %vm494, %v1613, %v1614
        %v1624 = vsel %vm494, %v1618, %v1613
        %s1625 = sadd.s32 %s402, 34
        %s1626 = sld [smem:[#allocation2 + %s1625]]
        %v1627 = vstv %s1626
        %v1628 = vmul.f32 %v1627, %v1623
        %v1629 = vmul.f32 %v1627, %v1622
        %v1630 = vmul.f32 %v1627, %v1621
        %v1631 = vmul.f32 %v1627, %v1620
        %v1632 = vmul.f32 %v1627, %v1619
        %v1633 = vmul.f32 %v1627, %v1624
        %v1634 = vadd.f32 %v1607, %v1628
        %v1635 = vadd.f32 %v1608, %v1629
        %v1636 = vadd.f32 %v1609, %v1630
        %v1637 = vadd.f32 %v1610, %v1631
        %v1638 = vadd.f32 %v1611, %v1632
        %v1639 = vadd.f32 %v1612, %v1633
        %v1640 = vrot.slane %v1506, 2
        %v1641 = vrot.slane %v1508, 2
        %v1642 = vrot.slane %v1510, 2
        %v1643 = vrot.slane %v1512, 2
        %v1644 = vrot.slane %v1514, 2
        %v1645 = vrot.slane %v1516, 2
        %v1646 = vsel %vm522, %v1644, %v1645
        %v1647 = vsel %vm522, %v1643, %v1644
        %v1648 = vsel %vm522, %v1642, %v1643
        %v1649 = vsel %vm522, %v1641, %v1642
        %v1650 = vsel %vm522, %v1640, %v1641
        %v1651 = vsel %vm522, %v1645, %v1640
        %s1652 = sadd.s32 %s402, 41
        %s1653 = sld [smem:[#allocation2 + %s1652]]
        %v1654 = vstv %s1653
        %v1655 = vmul.f32 %v1654, %v1650
        %v1656 = vmul.f32 %v1654, %v1649
        %v1657 = vmul.f32 %v1654, %v1648
        %v1658 = vmul.f32 %v1654, %v1647
        %v1659 = vmul.f32 %v1654, %v1646
        %v1660 = vmul.f32 %v1654, %v1651
        %v1661 = vadd.f32 %v1634, %v1655
        %v1662 = vadd.f32 %v1635, %v1656
        %v1663 = vadd.f32 %v1636, %v1657
        %v1664 = vadd.f32 %v1637, %v1658
        %v1665 = vadd.f32 %v1638, %v1659
        %v1666 = vadd.f32 %v1639, %v1660
        %v1667 = vrot.slane %v1506, 3
        %v1668 = vrot.slane %v1508, 3
        %v1669 = vrot.slane %v1510, 3
        %v1670 = vrot.slane %v1512, 3
        %v1671 = vrot.slane %v1514, 3
        %v1672 = vrot.slane %v1516, 3
        %v1673 = vsel %vm550, %v1671, %v1672
        %v1674 = vsel %vm550, %v1670, %v1671
        %v1675 = vsel %vm550, %v1669, %v1670
        %v1676 = vsel %vm550, %v1668, %v1669
        %v1677 = vsel %vm550, %v1667, %v1668
        %v1678 = vsel %vm550, %v1672, %v1667
        %s1679 = sadd.s32 %s402, 48
        %s1680 = sld [smem:[#allocation2 + %s1679]]
        %v1681 = vstv %s1680
        %v1682 = vmul.f32 %v1681, %v1677
        %v1683 = vmul.f32 %v1681, %v1676
        %v1684 = vmul.f32 %v1681, %v1675
        %v1685 = vmul.f32 %v1681, %v1674
        %v1686 = vmul.f32 %v1681, %v1673
        %v1687 = vmul.f32 %v1681, %v1678
        %v1688 = vadd.f32 %v1661, %v1682
        %v1689 = vadd.f32 %v1662, %v1683
        %v1690 = vadd.f32 %v1663, %v1684
        %v1691 = vadd.f32 %v1664, %v1685
        %v1692 = vadd.f32 %v1665, %v1686
        %v1693 = vadd.f32 %v1666, %v1687
        %s1694 = sld [smem:[#allocation4 + %s23]]
        %v1695 = vstv %s1694
        %v1696 = vadd.f32 %v1688, %v1695
        %v1697 = vadd.f32 %v1689, %v1695
        %v1698 = vadd.f32 %v1690, %v1695
        %v1699 = vadd.f32 %v1691, %v1695
        %v1700 = vadd.f32 %v1692, %v1695
        %v1701 = vadd.f32 %v1693, %v1695
        %v1702 = vmax.f32 %v1696, 0.0
        %v1703 = vmax.f32 %v1697, 0.0
        %v1704 = vmax.f32 %v1698, 0.0
        %v1705 = vmax.f32 %v1699, 0.0
        %v1706 = vmax.f32 %v1700, 0.0
        %v1707 = vmax.f32 %v1701, 0.0
        %v1708 = vsel %vm371, %v1702, 0.0
        %v1709 = vsel %vm372, %v1703, 0.0
        %v1710 = vsel %vm373, %v1704, 0.0
        %v1711 = vsel %vm374, %v1705, 0.0
        %v1712 = vsel %vm375, %v1706, 0.0
        %v1713 = vsel %vm376, %v1707, 0.0
        %1714 = vrot.lane.b32.xlu0 %v1708, 3
        %v1715 = vpop.permute.xlu0 %1714
        %1716 = vrot.lane.b32.xlu0 %v1709, 3
        %v1717 = vpop.permute.xlu0 %1716
        %1718 = vrot.lane.b32.xlu0 %v1710, 3
        %v1719 = vpop.permute.xlu0 %1718
        %1720 = vrot.lane.b32.xlu0 %v1711, 3
        %v1721 = vpop.permute.xlu0 %1720
        %1722 = vrot.lane.b32.xlu0 %v1712, 3
        %v1723 = vpop.permute.xlu0 %1722
        %1724 = vrot.lane.b32.xlu0 %v1713, 3
        %v1725 = vpop.permute.xlu0 %1724
        %v1726 = vrot.slane %v1715, 5
        %v1727 = vrot.slane %v1717, 5
        %v1728 = vrot.slane %v1719, 5
        %v1729 = vrot.slane %v1721, 5
        %v1730 = vrot.slane %v1723, 5
        %v1731 = vrot.slane %v1725, 5
        %v1732 = vsel %vm395, %v1730, %v1731
        %v1733 = vsel %vm395, %v1729, %v1730
        %v1734 = vsel %vm395, %v1728, %v1729
        %v1735 = vsel %vm395, %v1727, %v1728
        %v1736 = vsel %vm395, %v1726, %v1727
        %v1737 = vsel %vm395, %v1731, %v1726
        %s1738 = sld [smem:[#allocation6 + %s402]]
        %v1739 = vstv %s1738
        %v1740 = vmul.f32 %v1739, %v1737
        %v1741 = vmul.f32 %v1739, %v1736
        %v1742 = vmul.f32 %v1739, %v1735
        %v1743 = vmul.f32 %v1739, %v1734
        %v1744 = vmul.f32 %v1739, %v1733
        %v1745 = vmul.f32 %v1739, %v1732
        %v1746 = vadd.f32 %v1740, 0.0
        %v1747 = vadd.f32 %v1741, 0.0
        %v1748 = vadd.f32 %v1742, 0.0
        %v1749 = vadd.f32 %v1743, 0.0
        %v1750 = vadd.f32 %v1744, 0.0
        %v1751 = vadd.f32 %v1745, 0.0
        %v1752 = vrot.slane %v1715, 6
        %v1753 = vrot.slane %v1717, 6
        %v1754 = vrot.slane %v1719, 6
        %v1755 = vrot.slane %v1721, 6
        %v1756 = vrot.slane %v1723, 6
        %v1757 = vrot.slane %v1725, 6
        %v1758 = vsel %vm423, %v1756, %v1757
        %v1759 = vsel %vm423, %v1755, %v1756
        %v1760 = vsel %vm423, %v1754, %v1755
        %v1761 = vsel %vm423, %v1753, %v1754
        %v1762 = vsel %vm423, %v1752, %v1753
        %v1763 = vsel %vm423, %v1757, %v1752
        %s1764 = sld [smem:[#allocation6 + %s430]]
        %v1765 = vstv %s1764
        %v1766 = vmul.f32 %v1765, %v1763
        %v1767 = vmul.f32 %v1765, %v1762
        %v1768 = vmul.f32 %v1765, %v1761
        %v1769 = vmul.f32 %v1765, %v1760
        %v1770 = vmul.f32 %v1765, %v1759
        %v1771 = vmul.f32 %v1765, %v1758
        %v1772 = vadd.f32 %v1746, %v1766
        %v1773 = vadd.f32 %v1747, %v1767
        %v1774 = vadd.f32 %v1748, %v1768
        %v1775 = vadd.f32 %v1749, %v1769
        %v1776 = vadd.f32 %v1750, %v1770
        %v1777 = vadd.f32 %v1751, %v1771
        %v1778 = vrot.slane %v1715, 7
        %v1779 = vrot.slane %v1717, 7
        %v1780 = vrot.slane %v1719, 7
        %v1781 = vrot.slane %v1721, 7
        %v1782 = vrot.slane %v1723, 7
        %v1783 = vrot.slane %v1725, 7
        %v1784 = vsel %vm451, %v1782, %v1783
        %v1785 = vsel %vm451, %v1781, %v1782
        %v1786 = vsel %vm451, %v1780, %v1781
        %v1787 = vsel %vm451, %v1779, %v1780
        %v1788 = vsel %vm451, %v1778, %v1779
        %v1789 = vsel %vm451, %v1783, %v1778
        %s1790 = sld [smem:[#allocation6 + %s458]]
        %v1791 = vstv %s1790
        %v1792 = vmul.f32 %v1791, %v1789
        %v1793 = vmul.f32 %v1791, %v1788
        %v1794 = vmul.f32 %v1791, %v1787
        %v1795 = vmul.f32 %v1791, %v1786
        %v1796 = vmul.f32 %v1791, %v1785
        %v1797 = vmul.f32 %v1791, %v1784
        %v1798 = vadd.f32 %v1772, %v1792
        %v1799 = vadd.f32 %v1773, %v1793
        %v1800 = vadd.f32 %v1774, %v1794
        %v1801 = vadd.f32 %v1775, %v1795
        %v1802 = vadd.f32 %v1776, %v1796
        %v1803 = vadd.f32 %v1777, %v1797
        %s1804 = sld [smem:[#allocation6 + %s473]]
        %v1805 = vstv %s1804
        %v1806 = vmul.f32 %v1805, %v1715
        %v1807 = vmul.f32 %v1805, %v1717
        %v1808 = vmul.f32 %v1805, %v1719
        %v1809 = vmul.f32 %v1805, %v1721
        %v1810 = vmul.f32 %v1805, %v1723
        %v1811 = vmul.f32 %v1805, %v1725
        %v1812 = vadd.f32 %v1798, %v1806
        %v1813 = vadd.f32 %v1799, %v1807
        %v1814 = vadd.f32 %v1800, %v1808
        %v1815 = vadd.f32 %v1801, %v1809
        %v1816 = vadd.f32 %v1802, %v1810
        %v1817 = vadd.f32 %v1803, %v1811
        %v1818 = vrot.slane %v1715, 1
        %v1819 = vrot.slane %v1717, 1
        %v1820 = vrot.slane %v1719, 1
        %v1821 = vrot.slane %v1721, 1
        %v1822 = vrot.slane %v1723, 1
        %v1823 = vrot.slane %v1725, 1
        %v1824 = vsel %vm494, %v1822, %v1823
        %v1825 = vsel %vm494, %v1821, %v1822
        %v1826 = vsel %vm494, %v1820, %v1821
        %v1827 = vsel %vm494, %v1819, %v1820
        %v1828 = vsel %vm494, %v1818, %v1819
        %v1829 = vsel %vm494, %v1823, %v1818
        %s1830 = sld [smem:[#allocation6 + %s501]]
        %v1831 = vstv %s1830
        %v1832 = vmul.f32 %v1831, %v1828
        %v1833 = vmul.f32 %v1831, %v1827
        %v1834 = vmul.f32 %v1831, %v1826
        %v1835 = vmul.f32 %v1831, %v1825
        %v1836 = vmul.f32 %v1831, %v1824
        %v1837 = vmul.f32 %v1831, %v1829
        %v1838 = vadd.f32 %v1812, %v1832
        %v1839 = vadd.f32 %v1813, %v1833
        %v1840 = vadd.f32 %v1814, %v1834
        %v1841 = vadd.f32 %v1815, %v1835
        %v1842 = vadd.f32 %v1816, %v1836
        %v1843 = vadd.f32 %v1817, %v1837
        %v1844 = vrot.slane %v1715, 2
        %v1845 = vrot.slane %v1717, 2
        %v1846 = vrot.slane %v1719, 2
        %v1847 = vrot.slane %v1721, 2
        %v1848 = vrot.slane %v1723, 2
        %v1849 = vrot.slane %v1725, 2
        %v1850 = vsel %vm522, %v1848, %v1849
        %v1851 = vsel %vm522, %v1847, %v1848
        %v1852 = vsel %vm522, %v1846, %v1847
        %v1853 = vsel %vm522, %v1845, %v1846
        %v1854 = vsel %vm522, %v1844, %v1845
        %v1855 = vsel %vm522, %v1849, %v1844
        %s1856 = sld [smem:[#allocation6 + %s529]]
        %v1857 = vstv %s1856
        %v1858 = vmul.f32 %v1857, %v1854
        %v1859 = vmul.f32 %v1857, %v1853
        %v1860 = vmul.f32 %v1857, %v1852
        %v1861 = vmul.f32 %v1857, %v1851
        %v1862 = vmul.f32 %v1857, %v1850
        %v1863 = vmul.f32 %v1857, %v1855
        %v1864 = vadd.f32 %v1838, %v1858
        %v1865 = vadd.f32 %v1839, %v1859
        %v1866 = vadd.f32 %v1840, %v1860
        %v1867 = vadd.f32 %v1841, %v1861
        %v1868 = vadd.f32 %v1842, %v1862
        %v1869 = vadd.f32 %v1843, %v1863
        %v1870 = vrot.slane %v1715, 3
        %v1871 = vrot.slane %v1717, 3
        %v1872 = vrot.slane %v1719, 3
        %v1873 = vrot.slane %v1721, 3
        %v1874 = vrot.slane %v1723, 3
        %v1875 = vrot.slane %v1725, 3
        %v1876 = vsel %vm550, %v1874, %v1875
        %v1877 = vsel %vm550, %v1873, %v1874
        %v1878 = vsel %vm550, %v1872, %v1873
        %v1879 = vsel %vm550, %v1871, %v1872
        %v1880 = vsel %vm550, %v1870, %v1871
        %v1881 = vsel %vm550, %v1875, %v1870
        %s1882 = sld [smem:[#allocation6 + %s557]]
        %v1883 = vstv %s1882
        %v1884 = vmul.f32 %v1883, %v1880
        %v1885 = vmul.f32 %v1883, %v1879
        %v1886 = vmul.f32 %v1883, %v1878
        %v1887 = vmul.f32 %v1883, %v1877
        %v1888 = vmul.f32 %v1883, %v1876
        %v1889 = vmul.f32 %v1883, %v1881
        %v1890 = vadd.f32 %v1864, %v1884
        %v1891 = vadd.f32 %v1865, %v1885
        %v1892 = vadd.f32 %v1866, %v1886
        %v1893 = vadd.f32 %v1867, %v1887
        %v1894 = vadd.f32 %v1868, %v1888
        %v1895 = vadd.f32 %v1869, %v1889
        %1896 = vrot.lane.b32.xlu0 %v1708, 2
        %v1897 = vpop.permute.xlu0 %1896
        %1898 = vrot.lane.b32.xlu0 %v1709, 2
        %v1899 = vpop.permute.xlu0 %1898
        %1900 = vrot.lane.b32.xlu0 %v1710, 2
        %v1901 = vpop.permute.xlu0 %1900
        %1902 = vrot.lane.b32.xlu0 %v1711, 2
        %v1903 = vpop.permute.xlu0 %1902
        %1904 = vrot.lane.b32.xlu0 %v1712, 2
        %v1905 = vpop.permute.xlu0 %1904
        %1906 = vrot.lane.b32.xlu0 %v1713, 2
        %v1907 = vpop.permute.xlu0 %1906
        %v1908 = vrot.slane %v1897, 5
        %v1909 = vrot.slane %v1899, 5
        %v1910 = vrot.slane %v1901, 5
        %v1911 = vrot.slane %v1903, 5
        %v1912 = vrot.slane %v1905, 5
        %v1913 = vrot.slane %v1907, 5
        %v1914 = vsel %vm395, %v1912, %v1913
        %v1915 = vsel %vm395, %v1911, %v1912
        %v1916 = vsel %vm395, %v1910, %v1911
        %v1917 = vsel %vm395, %v1909, %v1910
        %v1918 = vsel %vm395, %v1908, %v1909
        %v1919 = vsel %vm395, %v1913, %v1908
        %s1920 = sld [smem:[#allocation6 + %s596]]
        %v1921 = vstv %s1920
        %v1922 = vmul.f32 %v1921, %v1919
        %v1923 = vmul.f32 %v1921, %v1918
        %v1924 = vmul.f32 %v1921, %v1917
        %v1925 = vmul.f32 %v1921, %v1916
        %v1926 = vmul.f32 %v1921, %v1915
        %v1927 = vmul.f32 %v1921, %v1914
        %v1928 = vadd.f32 %v1890, %v1922
        %v1929 = vadd.f32 %v1891, %v1923
        %v1930 = vadd.f32 %v1892, %v1924
        %v1931 = vadd.f32 %v1893, %v1925
        %v1932 = vadd.f32 %v1894, %v1926
        %v1933 = vadd.f32 %v1895, %v1927
        %v1934 = vrot.slane %v1897, 6
        %v1935 = vrot.slane %v1899, 6
        %v1936 = vrot.slane %v1901, 6
        %v1937 = vrot.slane %v1903, 6
        %v1938 = vrot.slane %v1905, 6
        %v1939 = vrot.slane %v1907, 6
        %v1940 = vsel %vm423, %v1938, %v1939
        %v1941 = vsel %vm423, %v1937, %v1938
        %v1942 = vsel %vm423, %v1936, %v1937
        %v1943 = vsel %vm423, %v1935, %v1936
        %v1944 = vsel %vm423, %v1934, %v1935
        %v1945 = vsel %vm423, %v1939, %v1934
        %s1946 = sld [smem:[#allocation6 + %s623]]
        %v1947 = vstv %s1946
        %v1948 = vmul.f32 %v1947, %v1945
        %v1949 = vmul.f32 %v1947, %v1944
        %v1950 = vmul.f32 %v1947, %v1943
        %v1951 = vmul.f32 %v1947, %v1942
        %v1952 = vmul.f32 %v1947, %v1941
        %v1953 = vmul.f32 %v1947, %v1940
        %v1954 = vadd.f32 %v1928, %v1948
        %v1955 = vadd.f32 %v1929, %v1949
        %v1956 = vadd.f32 %v1930, %v1950
        %v1957 = vadd.f32 %v1931, %v1951
        %v1958 = vadd.f32 %v1932, %v1952
        %v1959 = vadd.f32 %v1933, %v1953
        %v1960 = vrot.slane %v1897, 7
        %v1961 = vrot.slane %v1899, 7
        %v1962 = vrot.slane %v1901, 7
        %v1963 = vrot.slane %v1903, 7
        %v1964 = vrot.slane %v1905, 7
        %v1965 = vrot.slane %v1907, 7
        %v1966 = vsel %vm451, %v1964, %v1965
        %v1967 = vsel %vm451, %v1963, %v1964
        %v1968 = vsel %vm451, %v1962, %v1963
        %v1969 = vsel %vm451, %v1961, %v1962
        %v1970 = vsel %vm451, %v1960, %v1961
        %v1971 = vsel %vm451, %v1965, %v1960
        %s1972 = sld [smem:[#allocation6 + %s650]]
        %v1973 = vstv %s1972
        %v1974 = vmul.f32 %v1973, %v1971
        %v1975 = vmul.f32 %v1973, %v1970
        %v1976 = vmul.f32 %v1973, %v1969
        %v1977 = vmul.f32 %v1973, %v1968
        %v1978 = vmul.f32 %v1973, %v1967
        %v1979 = vmul.f32 %v1973, %v1966
        %v1980 = vadd.f32 %v1954, %v1974
        %v1981 = vadd.f32 %v1955, %v1975
        %v1982 = vadd.f32 %v1956, %v1976
        %v1983 = vadd.f32 %v1957, %v1977
        %v1984 = vadd.f32 %v1958, %v1978
        %v1985 = vadd.f32 %v1959, %v1979
        %s1986 = sld [smem:[#allocation6 + %s665]]
        %v1987 = vstv %s1986
        %v1988 = vmul.f32 %v1987, %v1897
        %v1989 = vmul.f32 %v1987, %v1899
        %v1990 = vmul.f32 %v1987, %v1901
        %v1991 = vmul.f32 %v1987, %v1903
        %v1992 = vmul.f32 %v1987, %v1905
        %v1993 = vmul.f32 %v1987, %v1907
        %v1994 = vadd.f32 %v1980, %v1988
        %v1995 = vadd.f32 %v1981, %v1989
        %v1996 = vadd.f32 %v1982, %v1990
        %v1997 = vadd.f32 %v1983, %v1991
        %v1998 = vadd.f32 %v1984, %v1992
        %v1999 = vadd.f32 %v1985, %v1993
        %v2000 = vrot.slane %v1897, 1
        %v2001 = vrot.slane %v1899, 1
        %v2002 = vrot.slane %v1901, 1
        %v2003 = vrot.slane %v1903, 1
        %v2004 = vrot.slane %v1905, 1
        %v2005 = vrot.slane %v1907, 1
        %v2006 = vsel %vm494, %v2004, %v2005
        %v2007 = vsel %vm494, %v2003, %v2004
        %v2008 = vsel %vm494, %v2002, %v2003
        %v2009 = vsel %vm494, %v2001, %v2002
        %v2010 = vsel %vm494, %v2000, %v2001
        %v2011 = vsel %vm494, %v2005, %v2000
        %s2012 = sld [smem:[#allocation6 + %s692]]
        %v2013 = vstv %s2012
        %v2014 = vmul.f32 %v2013, %v2010
        %v2015 = vmul.f32 %v2013, %v2009
        %v2016 = vmul.f32 %v2013, %v2008
        %v2017 = vmul.f32 %v2013, %v2007
        %v2018 = vmul.f32 %v2013, %v2006
        %v2019 = vmul.f32 %v2013, %v2011
        %v2020 = vadd.f32 %v1994, %v2014
        %v2021 = vadd.f32 %v1995, %v2015
        %v2022 = vadd.f32 %v1996, %v2016
        %v2023 = vadd.f32 %v1997, %v2017
        %v2024 = vadd.f32 %v1998, %v2018
        %v2025 = vadd.f32 %v1999, %v2019
        %v2026 = vrot.slane %v1897, 2
        %v2027 = vrot.slane %v1899, 2
        %v2028 = vrot.slane %v1901, 2
        %v2029 = vrot.slane %v1903, 2
        %v2030 = vrot.slane %v1905, 2
        %v2031 = vrot.slane %v1907, 2
        %v2032 = vsel %vm522, %v2030, %v2031
        %v2033 = vsel %vm522, %v2029, %v2030
        %v2034 = vsel %vm522, %v2028, %v2029
        %v2035 = vsel %vm522, %v2027, %v2028
        %v2036 = vsel %vm522, %v2026, %v2027
        %v2037 = vsel %vm522, %v2031, %v2026
        %s2038 = sld [smem:[#allocation6 + %s719]]
        %v2039 = vstv %s2038
        %v2040 = vmul.f32 %v2039, %v2036
        %v2041 = vmul.f32 %v2039, %v2035
        %v2042 = vmul.f32 %v2039, %v2034
        %v2043 = vmul.f32 %v2039, %v2033
        %v2044 = vmul.f32 %v2039, %v2032
        %v2045 = vmul.f32 %v2039, %v2037
        %v2046 = vadd.f32 %v2020, %v2040
        %v2047 = vadd.f32 %v2021, %v2041
        %v2048 = vadd.f32 %v2022, %v2042
        %v2049 = vadd.f32 %v2023, %v2043
        %v2050 = vadd.f32 %v2024, %v2044
        %v2051 = vadd.f32 %v2025, %v2045
        %v2052 = vrot.slane %v1897, 3
        %v2053 = vrot.slane %v1899, 3
        %v2054 = vrot.slane %v1901, 3
        %v2055 = vrot.slane %v1903, 3
        %v2056 = vrot.slane %v1905, 3
        %v2057 = vrot.slane %v1907, 3
        %v2058 = vsel %vm550, %v2056, %v2057
        %v2059 = vsel %vm550, %v2055, %v2056
        %v2060 = vsel %vm550, %v2054, %v2055
        %v2061 = vsel %vm550, %v2053, %v2054
        %v2062 = vsel %vm550, %v2052, %v2053
        %v2063 = vsel %vm550, %v2057, %v2052
        %s2064 = sld [smem:[#allocation6 + %s746]]
        %v2065 = vstv %s2064
        %v2066 = vmul.f32 %v2065, %v2062
        %v2067 = vmul.f32 %v2065, %v2061
        %v2068 = vmul.f32 %v2065, %v2060
        %v2069 = vmul.f32 %v2065, %v2059
        %v2070 = vmul.f32 %v2065, %v2058
        %v2071 = vmul.f32 %v2065, %v2063
        %v2072 = vadd.f32 %v2046, %v2066
        %v2073 = vadd.f32 %v2047, %v2067
        %v2074 = vadd.f32 %v2048, %v2068
        %v2075 = vadd.f32 %v2049, %v2069
        %v2076 = vadd.f32 %v2050, %v2070
        %v2077 = vadd.f32 %v2051, %v2071
        %2078 = vrot.lane.b32.xlu0 %v1708, 1
        %v2079 = vpop.permute.xlu0 %2078
        %2080 = vrot.lane.b32.xlu0 %v1709, 1
        %v2081 = vpop.permute.xlu0 %2080
        %2082 = vrot.lane.b32.xlu0 %v1710, 1
        %v2083 = vpop.permute.xlu0 %2082
        %2084 = vrot.lane.b32.xlu0 %v1711, 1
        %v2085 = vpop.permute.xlu0 %2084
        %2086 = vrot.lane.b32.xlu0 %v1712, 1
        %v2087 = vpop.permute.xlu0 %2086
        %2088 = vrot.lane.b32.xlu0 %v1713, 1
        %v2089 = vpop.permute.xlu0 %2088
        %v2090 = vrot.slane %v2079, 5
        %v2091 = vrot.slane %v2081, 5
        %v2092 = vrot.slane %v2083, 5
        %v2093 = vrot.slane %v2085, 5
        %v2094 = vrot.slane %v2087, 5
        %v2095 = vrot.slane %v2089, 5
        %v2096 = vsel %vm395, %v2094, %v2095
        %v2097 = vsel %vm395, %v2093, %v2094
        %v2098 = vsel %vm395, %v2092, %v2093
        %v2099 = vsel %vm395, %v2091, %v2092
        %v2100 = vsel %vm395, %v2090, %v2091
        %v2101 = vsel %vm395, %v2095, %v2090
        %s2102 = sld [smem:[#allocation6 + %s785]]
        %v2103 = vstv %s2102
        %v2104 = vmul.f32 %v2103, %v2101
        %v2105 = vmul.f32 %v2103, %v2100
        %v2106 = vmul.f32 %v2103, %v2099
        %v2107 = vmul.f32 %v2103, %v2098
        %v2108 = vmul.f32 %v2103, %v2097
        %v2109 = vmul.f32 %v2103, %v2096
        %v2110 = vadd.f32 %v2072, %v2104
        %v2111 = vadd.f32 %v2073, %v2105
        %v2112 = vadd.f32 %v2074, %v2106
        %v2113 = vadd.f32 %v2075, %v2107
        %v2114 = vadd.f32 %v2076, %v2108
        %v2115 = vadd.f32 %v2077, %v2109
        %v2116 = vrot.slane %v2079, 6
        %v2117 = vrot.slane %v2081, 6
        %v2118 = vrot.slane %v2083, 6
        %v2119 = vrot.slane %v2085, 6
        %v2120 = vrot.slane %v2087, 6
        %v2121 = vrot.slane %v2089, 6
        %v2122 = vsel %vm423, %v2120, %v2121
        %v2123 = vsel %vm423, %v2119, %v2120
        %v2124 = vsel %vm423, %v2118, %v2119
        %v2125 = vsel %vm423, %v2117, %v2118
        %v2126 = vsel %vm423, %v2116, %v2117
        %v2127 = vsel %vm423, %v2121, %v2116
        %s2128 = sld [smem:[#allocation6 + %s812]]
        %v2129 = vstv %s2128
        %v2130 = vmul.f32 %v2129, %v2127
        %v2131 = vmul.f32 %v2129, %v2126
        %v2132 = vmul.f32 %v2129, %v2125
        %v2133 = vmul.f32 %v2129, %v2124
        %v2134 = vmul.f32 %v2129, %v2123
        %v2135 = vmul.f32 %v2129, %v2122
        %v2136 = vadd.f32 %v2110, %v2130
        %v2137 = vadd.f32 %v2111, %v2131
        %v2138 = vadd.f32 %v2112, %v2132
        %v2139 = vadd.f32 %v2113, %v2133
        %v2140 = vadd.f32 %v2114, %v2134
        %v2141 = vadd.f32 %v2115, %v2135
        %v2142 = vrot.slane %v2079, 7
        %v2143 = vrot.slane %v2081, 7
        %v2144 = vrot.slane %v2083, 7
        %v2145 = vrot.slane %v2085, 7
        %v2146 = vrot.slane %v2087, 7
        %v2147 = vrot.slane %v2089, 7
        %v2148 = vsel %vm451, %v2146, %v2147
        %v2149 = vsel %vm451, %v2145, %v2146
        %v2150 = vsel %vm451, %v2144, %v2145
        %v2151 = vsel %vm451, %v2143, %v2144
        %v2152 = vsel %vm451, %v2142, %v2143
        %v2153 = vsel %vm451, %v2147, %v2142
        %s2154 = sld [smem:[#allocation6 + %s839]]
        %v2155 = vstv %s2154
        %v2156 = vmul.f32 %v2155, %v2153
        %v2157 = vmul.f32 %v2155, %v2152
        %v2158 = vmul.f32 %v2155, %v2151
        %v2159 = vmul.f32 %v2155, %v2150
        %v2160 = vmul.f32 %v2155, %v2149
        %v2161 = vmul.f32 %v2155, %v2148
        %v2162 = vadd.f32 %v2136, %v2156
        %v2163 = vadd.f32 %v2137, %v2157
        %v2164 = vadd.f32 %v2138, %v2158
        %v2165 = vadd.f32 %v2139, %v2159
        %v2166 = vadd.f32 %v2140, %v2160
        %v2167 = vadd.f32 %v2141, %v2161
        %s2168 = sld [smem:[#allocation6 + %s854]]
        %v2169 = vstv %s2168
        %v2170 = vmul.f32 %v2169, %v2079
        %v2171 = vmul.f32 %v2169, %v2081
        %v2172 = vmul.f32 %v2169, %v2083
        %v2173 = vmul.f32 %v2169, %v2085
        %v2174 = vmul.f32 %v2169, %v2087
        %v2175 = vmul.f32 %v2169, %v2089
        %v2176 = vadd.f32 %v2162, %v2170
        %v2177 = vadd.f32 %v2163, %v2171
        %v2178 = vadd.f32 %v2164, %v2172
        %v2179 = vadd.f32 %v2165, %v2173
        %v2180 = vadd.f32 %v2166, %v2174
        %v2181 = vadd.f32 %v2167, %v2175
        %v2182 = vrot.slane %v2079, 1
        %v2183 = vrot.slane %v2081, 1
        %v2184 = vrot.slane %v2083, 1
        %v2185 = vrot.slane %v2085, 1
        %v2186 = vrot.slane %v2087, 1
        %v2187 = vrot.slane %v2089, 1
        %v2188 = vsel %vm494, %v2186, %v2187
        %v2189 = vsel %vm494, %v2185, %v2186
        %v2190 = vsel %vm494, %v2184, %v2185
        %v2191 = vsel %vm494, %v2183, %v2184
        %v2192 = vsel %vm494, %v2182, %v2183
        %v2193 = vsel %vm494, %v2187, %v2182
        %s2194 = sld [smem:[#allocation6 + %s881]]
        %v2195 = vstv %s2194
        %v2196 = vmul.f32 %v2195, %v2192
        %v2197 = vmul.f32 %v2195, %v2191
        %v2198 = vmul.f32 %v2195, %v2190
        %v2199 = vmul.f32 %v2195, %v2189
        %v2200 = vmul.f32 %v2195, %v2188
        %v2201 = vmul.f32 %v2195, %v2193
        %v2202 = vadd.f32 %v2176, %v2196
        %v2203 = vadd.f32 %v2177, %v2197
        %v2204 = vadd.f32 %v2178, %v2198
        %v2205 = vadd.f32 %v2179, %v2199
        %v2206 = vadd.f32 %v2180, %v2200
        %v2207 = vadd.f32 %v2181, %v2201
        %v2208 = vrot.slane %v2079, 2
        %v2209 = vrot.slane %v2081, 2
        %v2210 = vrot.slane %v2083, 2
        %v2211 = vrot.slane %v2085, 2
        %v2212 = vrot.slane %v2087, 2
        %v2213 = vrot.slane %v2089, 2
        %v2214 = vsel %vm522, %v2212, %v2213
        %v2215 = vsel %vm522, %v2211, %v2212
        %v2216 = vsel %vm522, %v2210, %v2211
        %v2217 = vsel %vm522, %v2209, %v2210
        %v2218 = vsel %vm522, %v2208, %v2209
        %v2219 = vsel %vm522, %v2213, %v2208
        %s2220 = sld [smem:[#allocation6 + %s908]]
        %v2221 = vstv %s2220
        %v2222 = vmul.f32 %v2221, %v2218
        %v2223 = vmul.f32 %v2221, %v2217
        %v2224 = vmul.f32 %v2221, %v2216
        %v2225 = vmul.f32 %v2221, %v2215
        %v2226 = vmul.f32 %v2221, %v2214
        %v2227 = vmul.f32 %v2221, %v2219
        %v2228 = vadd.f32 %v2202, %v2222
        %v2229 = vadd.f32 %v2203, %v2223
        %v2230 = vadd.f32 %v2204, %v2224
        %v2231 = vadd.f32 %v2205, %v2225
        %v2232 = vadd.f32 %v2206, %v2226
        %v2233 = vadd.f32 %v2207, %v2227
        %v2234 = vrot.slane %v2079, 3
        %v2235 = vrot.slane %v2081, 3
        %v2236 = vrot.slane %v2083, 3
        %v2237 = vrot.slane %v2085, 3
        %v2238 = vrot.slane %v2087, 3
        %v2239 = vrot.slane %v2089, 3
        %v2240 = vsel %vm550, %v2238, %v2239
        %v2241 = vsel %vm550, %v2237, %v2238
        %v2242 = vsel %vm550, %v2236, %v2237
        %v2243 = vsel %vm550, %v2235, %v2236
        %v2244 = vsel %vm550, %v2234, %v2235
        %v2245 = vsel %vm550, %v2239, %v2234
        %s2246 = sld [smem:[#allocation6 + %s935]]
        %v2247 = vstv %s2246
        %v2248 = vmul.f32 %v2247, %v2244
        %v2249 = vmul.f32 %v2247, %v2243
        %v2250 = vmul.f32 %v2247, %v2242
        %v2251 = vmul.f32 %v2247, %v2241
        %v2252 = vmul.f32 %v2247, %v2240
        %v2253 = vmul.f32 %v2247, %v2245
        %v2254 = vadd.f32 %v2228, %v2248
        %v2255 = vadd.f32 %v2229, %v2249
        %v2256 = vadd.f32 %v2230, %v2250
        %v2257 = vadd.f32 %v2231, %v2251
        %v2258 = vadd.f32 %v2232, %v2252
        %v2259 = vadd.f32 %v2233, %v2253
        %v2260 = vrot.slane %v1708, 5
        %v2261 = vrot.slane %v1709, 5
        %v2262 = vrot.slane %v1710, 5
        %v2263 = vrot.slane %v1711, 5
        %v2264 = vrot.slane %v1712, 5
        %v2265 = vrot.slane %v1713, 5
        %v2266 = vsel %vm395, %v2264, %v2265
        %v2267 = vsel %vm395, %v2263, %v2264
        %v2268 = vsel %vm395, %v2262, %v2263
        %v2269 = vsel %vm395, %v2261, %v2262
        %v2270 = vsel %vm395, %v2260, %v2261
        %v2271 = vsel %vm395, %v2265, %v2260
        %s2272 = sld [smem:[#allocation6 + %s962]]
        %v2273 = vstv %s2272
        %v2274 = vmul.f32 %v2273, %v2271
        %v2275 = vmul.f32 %v2273, %v2270
        %v2276 = vmul.f32 %v2273, %v2269
        %v2277 = vmul.f32 %v2273, %v2268
        %v2278 = vmul.f32 %v2273, %v2267
        %v2279 = vmul.f32 %v2273, %v2266
        %v2280 = vadd.f32 %v2254, %v2274
        %v2281 = vadd.f32 %v2255, %v2275
        %v2282 = vadd.f32 %v2256, %v2276
        %v2283 = vadd.f32 %v2257, %v2277
        %v2284 = vadd.f32 %v2258, %v2278
        %v2285 = vadd.f32 %v2259, %v2279
        %v2286 = vrot.slane %v1708, 6
        %v2287 = vrot.slane %v1709, 6
        %v2288 = vrot.slane %v1710, 6
        %v2289 = vrot.slane %v1711, 6
        %v2290 = vrot.slane %v1712, 6
        %v2291 = vrot.slane %v1713, 6
        %v2292 = vsel %vm423, %v2290, %v2291
        %v2293 = vsel %vm423, %v2289, %v2290
        %v2294 = vsel %vm423, %v2288, %v2289
        %v2295 = vsel %vm423, %v2287, %v2288
        %v2296 = vsel %vm423, %v2286, %v2287
        %v2297 = vsel %vm423, %v2291, %v2286
        %s2298 = sld [smem:[#allocation6 + %s989]]
        %v2299 = vstv %s2298
        %v2300 = vmul.f32 %v2299, %v2297
        %v2301 = vmul.f32 %v2299, %v2296
        %v2302 = vmul.f32 %v2299, %v2295
        %v2303 = vmul.f32 %v2299, %v2294
        %v2304 = vmul.f32 %v2299, %v2293
        %v2305 = vmul.f32 %v2299, %v2292
        %v2306 = vadd.f32 %v2280, %v2300
        %v2307 = vadd.f32 %v2281, %v2301
        %v2308 = vadd.f32 %v2282, %v2302
        %v2309 = vadd.f32 %v2283, %v2303
        %v2310 = vadd.f32 %v2284, %v2304
        %v2311 = vadd.f32 %v2285, %v2305
        %v2312 = vrot.slane %v1708, 7
        %v2313 = vrot.slane %v1709, 7
        %v2314 = vrot.slane %v1710, 7
        %v2315 = vrot.slane %v1711, 7
        %v2316 = vrot.slane %v1712, 7
        %v2317 = vrot.slane %v1713, 7
        %v2318 = vsel %vm451, %v2316, %v2317
        %v2319 = vsel %vm451, %v2315, %v2316
        %v2320 = vsel %vm451, %v2314, %v2315
        %v2321 = vsel %vm451, %v2313, %v2314
        %v2322 = vsel %vm451, %v2312, %v2313
        %v2323 = vsel %vm451, %v2317, %v2312
        %s2324 = sld [smem:[#allocation6 + %s1016]]
        %v2325 = vstv %s2324
        %v2326 = vmul.f32 %v2325, %v2323
        %v2327 = vmul.f32 %v2325, %v2322
        %v2328 = vmul.f32 %v2325, %v2321
        %v2329 = vmul.f32 %v2325, %v2320
        %v2330 = vmul.f32 %v2325, %v2319
        %v2331 = vmul.f32 %v2325, %v2318
        %v2332 = vadd.f32 %v2306, %v2326
        %v2333 = vadd.f32 %v2307, %v2327
        %v2334 = vadd.f32 %v2308, %v2328
        %v2335 = vadd.f32 %v2309, %v2329
        %v2336 = vadd.f32 %v2310, %v2330
        %v2337 = vadd.f32 %v2311, %v2331
        %s2338 = sld [smem:[#allocation6 + %s1031]]
        %v2339 = vstv %s2338
        %v2340 = vmul.f32 %v2339, %v1708
        %v2341 = vmul.f32 %v2339, %v1709
        %v2342 = vmul.f32 %v2339, %v1710
        %v2343 = vmul.f32 %v2339, %v1711
        %v2344 = vmul.f32 %v2339, %v1712
        %v2345 = vmul.f32 %v2339, %v1713
        %v2346 = vadd.f32 %v2332, %v2340
        %v2347 = vadd.f32 %v2333, %v2341
        %v2348 = vadd.f32 %v2334, %v2342
        %v2349 = vadd.f32 %v2335, %v2343
        %v2350 = vadd.f32 %v2336, %v2344
        %v2351 = vadd.f32 %v2337, %v2345
        %v2352 = vrot.slane %v1708, 1
        %v2353 = vrot.slane %v1709, 1
        %v2354 = vrot.slane %v1710, 1
        %v2355 = vrot.slane %v1711, 1
        %v2356 = vrot.slane %v1712, 1
        %v2357 = vrot.slane %v1713, 1
        %v2358 = vsel %vm494, %v2356, %v2357
        %v2359 = vsel %vm494, %v2355, %v2356
        %v2360 = vsel %vm494, %v2354, %v2355
        %v2361 = vsel %vm494, %v2353, %v2354
        %v2362 = vsel %vm494, %v2352, %v2353
        %v2363 = vsel %vm494, %v2357, %v2352
        %s2364 = sld [smem:[#allocation6 + %s1058]]
        %v2365 = vstv %s2364
        %v2366 = vmul.f32 %v2365, %v2362
        %v2367 = vmul.f32 %v2365, %v2361
        %v2368 = vmul.f32 %v2365, %v2360
        %v2369 = vmul.f32 %v2365, %v2359
        %v2370 = vmul.f32 %v2365, %v2358
        %v2371 = vmul.f32 %v2365, %v2363
        %v2372 = vadd.f32 %v2346, %v2366
        %v2373 = vadd.f32 %v2347, %v2367
        %v2374 = vadd.f32 %v2348, %v2368
        %v2375 = vadd.f32 %v2349, %v2369
        %v2376 = vadd.f32 %v2350, %v2370
        %v2377 = vadd.f32 %v2351, %v2371
        %v2378 = vrot.slane %v1708, 2
        %v2379 = vrot.slane %v1709, 2
        %v2380 = vrot.slane %v1710, 2
        %v2381 = vrot.slane %v1711, 2
        %v2382 = vrot.slane %v1712, 2
        %v2383 = vrot.slane %v1713, 2
        %v2384 = vsel %vm522, %v2382, %v2383
        %v2385 = vsel %vm522, %v2381, %v2382
        %v2386 = vsel %vm522, %v2380, %v2381
        %v2387 = vsel %vm522, %v2379, %v2380
        %v2388 = vsel %vm522, %v2378, %v2379
        %v2389 = vsel %vm522, %v2383, %v2378
        %s2390 = sld [smem:[#allocation6 + %s1085]]
        %v2391 = vstv %s2390
        %v2392 = vmul.f32 %v2391, %v2388
        %v2393 = vmul.f32 %v2391, %v2387
        %v2394 = vmul.f32 %v2391, %v2386
        %v2395 = vmul.f32 %v2391, %v2385
        %v2396 = vmul.f32 %v2391, %v2384
        %v2397 = vmul.f32 %v2391, %v2389
        %v2398 = vadd.f32 %v2372, %v2392
        %v2399 = vadd.f32 %v2373, %v2393
        %v2400 = vadd.f32 %v2374, %v2394
        %v2401 = vadd.f32 %v2375, %v2395
        %v2402 = vadd.f32 %v2376, %v2396
        %v2403 = vadd.f32 %v2377, %v2397
        %v2404 = vrot.slane %v1708, 3
        %v2405 = vrot.slane %v1709, 3
        %v2406 = vrot.slane %v1710, 3
        %v2407 = vrot.slane %v1711, 3
        %v2408 = vrot.slane %v1712, 3
        %v2409 = vrot.slane %v1713, 3
        %v2410 = vsel %vm550, %v2408, %v2409
        %v2411 = vsel %vm550, %v2407, %v2408
        %v2412 = vsel %vm550, %v2406, %v2407
        %v2413 = vsel %vm550, %v2405, %v2406
        %v2414 = vsel %vm550, %v2404, %v2405
        %v2415 = vsel %vm550, %v2409, %v2404
        %s2416 = sld [smem:[#allocation6 + %s1112]]
        %v2417 = vstv %s2416
        %v2418 = vmul.f32 %v2417, %v2414
        %v2419 = vmul.f32 %v2417, %v2413
        %v2420 = vmul.f32 %v2417, %v2412
        %v2421 = vmul.f32 %v2417, %v2411
        %v2422 = vmul.f32 %v2417, %v2410
        %v2423 = vmul.f32 %v2417, %v2415
        %v2424 = vadd.f32 %v2398, %v2418
        %v2425 = vadd.f32 %v2399, %v2419
        %v2426 = vadd.f32 %v2400, %v2420
        %v2427 = vadd.f32 %v2401, %v2421
        %v2428 = vadd.f32 %v2402, %v2422
        %v2429 = vadd.f32 %v2403, %v2423
        %2430 = vrot.lane.b32.xlu0 %v1708, 127
        %v2431 = vpop.permute.xlu0 %2430
        %2432 = vrot.lane.b32.xlu0 %v1709, 127
        %v2433 = vpop.permute.xlu0 %2432
        %2434 = vrot.lane.b32.xlu0 %v1710, 127
        %v2435 = vpop.permute.xlu0 %2434
        %2436 = vrot.lane.b32.xlu0 %v1711, 127
        %v2437 = vpop.permute.xlu0 %2436
        %2438 = vrot.lane.b32.xlu0 %v1712, 127
        %v2439 = vpop.permute.xlu0 %2438
        %2440 = vrot.lane.b32.xlu0 %v1713, 127
        %v2441 = vpop.permute.xlu0 %2440
        %v2442 = vrot.slane %v2431, 5
        %v2443 = vrot.slane %v2433, 5
        %v2444 = vrot.slane %v2435, 5
        %v2445 = vrot.slane %v2437, 5
        %v2446 = vrot.slane %v2439, 5
        %v2447 = vrot.slane %v2441, 5
        %v2448 = vsel %vm395, %v2446, %v2447
        %v2449 = vsel %vm395, %v2445, %v2446
        %v2450 = vsel %vm395, %v2444, %v2445
        %v2451 = vsel %vm395, %v2443, %v2444
        %v2452 = vsel %vm395, %v2442, %v2443
        %v2453 = vsel %vm395, %v2447, %v2442
        %s2454 = sld [smem:[#allocation6 + %s1151]]
        %v2455 = vstv %s2454
        %v2456 = vmul.f32 %v2455, %v2453
        %v2457 = vmul.f32 %v2455, %v2452
        %v2458 = vmul.f32 %v2455, %v2451
        %v2459 = vmul.f32 %v2455, %v2450
        %v2460 = vmul.f32 %v2455, %v2449
        %v2461 = vmul.f32 %v2455, %v2448
        %v2462 = vadd.f32 %v2424, %v2456
        %v2463 = vadd.f32 %v2425, %v2457
        %v2464 = vadd.f32 %v2426, %v2458
        %v2465 = vadd.f32 %v2427, %v2459
        %v2466 = vadd.f32 %v2428, %v2460
        %v2467 = vadd.f32 %v2429, %v2461
        %v2468 = vrot.slane %v2431, 6
        %v2469 = vrot.slane %v2433, 6
        %v2470 = vrot.slane %v2435, 6
        %v2471 = vrot.slane %v2437, 6
        %v2472 = vrot.slane %v2439, 6
        %v2473 = vrot.slane %v2441, 6
        %v2474 = vsel %vm423, %v2472, %v2473
        %v2475 = vsel %vm423, %v2471, %v2472
        %v2476 = vsel %vm423, %v2470, %v2471
        %v2477 = vsel %vm423, %v2469, %v2470
        %v2478 = vsel %vm423, %v2468, %v2469
        %v2479 = vsel %vm423, %v2473, %v2468
        %s2480 = sld [smem:[#allocation6 + %s1178]]
        %v2481 = vstv %s2480
        %v2482 = vmul.f32 %v2481, %v2479
        %v2483 = vmul.f32 %v2481, %v2478
        %v2484 = vmul.f32 %v2481, %v2477
        %v2485 = vmul.f32 %v2481, %v2476
        %v2486 = vmul.f32 %v2481, %v2475
        %v2487 = vmul.f32 %v2481, %v2474
        %v2488 = vadd.f32 %v2462, %v2482
        %v2489 = vadd.f32 %v2463, %v2483
        %v2490 = vadd.f32 %v2464, %v2484
        %v2491 = vadd.f32 %v2465, %v2485
        %v2492 = vadd.f32 %v2466, %v2486
        %v2493 = vadd.f32 %v2467, %v2487
        %v2494 = vrot.slane %v2431, 7
        %v2495 = vrot.slane %v2433, 7
        %v2496 = vrot.slane %v2435, 7
        %v2497 = vrot.slane %v2437, 7
        %v2498 = vrot.slane %v2439, 7
        %v2499 = vrot.slane %v2441, 7
        %v2500 = vsel %vm451, %v2498, %v2499
        %v2501 = vsel %vm451, %v2497, %v2498
        %v2502 = vsel %vm451, %v2496, %v2497
        %v2503 = vsel %vm451, %v2495, %v2496
        %v2504 = vsel %vm451, %v2494, %v2495
        %v2505 = vsel %vm451, %v2499, %v2494
        %s2506 = sld [smem:[#allocation6 + %s1205]]
        %v2507 = vstv %s2506
        %v2508 = vmul.f32 %v2507, %v2505
        %v2509 = vmul.f32 %v2507, %v2504
        %v2510 = vmul.f32 %v2507, %v2503
        %v2511 = vmul.f32 %v2507, %v2502
        %v2512 = vmul.f32 %v2507, %v2501
        %v2513 = vmul.f32 %v2507, %v2500
        %v2514 = vadd.f32 %v2488, %v2508
        %v2515 = vadd.f32 %v2489, %v2509
        %v2516 = vadd.f32 %v2490, %v2510
        %v2517 = vadd.f32 %v2491, %v2511
        %v2518 = vadd.f32 %v2492, %v2512
        %v2519 = vadd.f32 %v2493, %v2513
        %s2520 = sld [smem:[#allocation6 + %s1220]]
        %v2521 = vstv %s2520
        %v2522 = vmul.f32 %v2521, %v2431
        %v2523 = vmul.f32 %v2521, %v2433
        %v2524 = vmul.f32 %v2521, %v2435
        %v2525 = vmul.f32 %v2521, %v2437
        %v2526 = vmul.f32 %v2521, %v2439
        %v2527 = vmul.f32 %v2521, %v2441
        %v2528 = vadd.f32 %v2514, %v2522
        %v2529 = vadd.f32 %v2515, %v2523
        %v2530 = vadd.f32 %v2516, %v2524
        %v2531 = vadd.f32 %v2517, %v2525
        %v2532 = vadd.f32 %v2518, %v2526
        %v2533 = vadd.f32 %v2519, %v2527
        %v2534 = vrot.slane %v2431, 1
        %v2535 = vrot.slane %v2433, 1
        %v2536 = vrot.slane %v2435, 1
        %v2537 = vrot.slane %v2437, 1
        %v2538 = vrot.slane %v2439, 1
        %v2539 = vrot.slane %v2441, 1
        %v2540 = vsel %vm494, %v2538, %v2539
        %v2541 = vsel %vm494, %v2537, %v2538
        %v2542 = vsel %vm494, %v2536, %v2537
        %v2543 = vsel %vm494, %v2535, %v2536
        %v2544 = vsel %vm494, %v2534, %v2535
        %v2545 = vsel %vm494, %v2539, %v2534
        %s2546 = sld [smem:[#allocation6 + %s1247]]
        %v2547 = vstv %s2546
        %v2548 = vmul.f32 %v2547, %v2544
        %v2549 = vmul.f32 %v2547, %v2543
        %v2550 = vmul.f32 %v2547, %v2542
        %v2551 = vmul.f32 %v2547, %v2541
        %v2552 = vmul.f32 %v2547, %v2540
        %v2553 = vmul.f32 %v2547, %v2545
        %v2554 = vadd.f32 %v2528, %v2548
        %v2555 = vadd.f32 %v2529, %v2549
        %v2556 = vadd.f32 %v2530, %v2550
        %v2557 = vadd.f32 %v2531, %v2551
        %v2558 = vadd.f32 %v2532, %v2552
        %v2559 = vadd.f32 %v2533, %v2553
        %v2560 = vrot.slane %v2431, 2
        %v2561 = vrot.slane %v2433, 2
        %v2562 = vrot.slane %v2435, 2
        %v2563 = vrot.slane %v2437, 2
        %v2564 = vrot.slane %v2439, 2
        %v2565 = vrot.slane %v2441, 2
        %v2566 = vsel %vm522, %v2564, %v2565
        %v2567 = vsel %vm522, %v2563, %v2564
        %v2568 = vsel %vm522, %v2562, %v2563
        %v2569 = vsel %vm522, %v2561, %v2562
        %v2570 = vsel %vm522, %v2560, %v2561
        %v2571 = vsel %vm522, %v2565, %v2560
        %s2572 = sld [smem:[#allocation6 + %s1274]]
        %v2573 = vstv %s2572
        %v2574 = vmul.f32 %v2573, %v2570
        %v2575 = vmul.f32 %v2573, %v2569
        %v2576 = vmul.f32 %v2573, %v2568
        %v2577 = vmul.f32 %v2573, %v2567
        %v2578 = vmul.f32 %v2573, %v2566
        %v2579 = vmul.f32 %v2573, %v2571
        %v2580 = vadd.f32 %v2554, %v2574
        %v2581 = vadd.f32 %v2555, %v2575
        %v2582 = vadd.f32 %v2556, %v2576
        %v2583 = vadd.f32 %v2557, %v2577
        %v2584 = vadd.f32 %v2558, %v2578
        %v2585 = vadd.f32 %v2559, %v2579
        %v2586 = vrot.slane %v2431, 3
        %v2587 = vrot.slane %v2433, 3
        %v2588 = vrot.slane %v2435, 3
        %v2589 = vrot.slane %v2437, 3
        %v2590 = vrot.slane %v2439, 3
        %v2591 = vrot.slane %v2441, 3
        %v2592 = vsel %vm550, %v2590, %v2591
        %v2593 = vsel %vm550, %v2589, %v2590
        %v2594 = vsel %vm550, %v2588, %v2589
        %v2595 = vsel %vm550, %v2587, %v2588
        %v2596 = vsel %vm550, %v2586, %v2587
        %v2597 = vsel %vm550, %v2591, %v2586
        %s2598 = sld [smem:[#allocation6 + %s1301]]
        %v2599 = vstv %s2598
        %v2600 = vmul.f32 %v2599, %v2596
        %v2601 = vmul.f32 %v2599, %v2595
        %v2602 = vmul.f32 %v2599, %v2594
        %v2603 = vmul.f32 %v2599, %v2593
        %v2604 = vmul.f32 %v2599, %v2592
        %v2605 = vmul.f32 %v2599, %v2597
        %v2606 = vadd.f32 %v2580, %v2600
        %v2607 = vadd.f32 %v2581, %v2601
        %v2608 = vadd.f32 %v2582, %v2602
        %v2609 = vadd.f32 %v2583, %v2603
        %v2610 = vadd.f32 %v2584, %v2604
        %v2611 = vadd.f32 %v2585, %v2605
        %2612 = vrot.lane.b32.xlu0 %v1708, 126
        %v2613 = vpop.permute.xlu0 %2612
        %2614 = vrot.lane.b32.xlu0 %v1709, 126
        %v2615 = vpop.permute.xlu0 %2614
        %2616 = vrot.lane.b32.xlu0 %v1710, 126
        %v2617 = vpop.permute.xlu0 %2616
        %2618 = vrot.lane.b32.xlu0 %v1711, 126
        %v2619 = vpop.permute.xlu0 %2618
        %2620 = vrot.lane.b32.xlu0 %v1712, 126
        %v2621 = vpop.permute.xlu0 %2620
        %2622 = vrot.lane.b32.xlu0 %v1713, 126
        %v2623 = vpop.permute.xlu0 %2622
        %v2624 = vrot.slane %v2613, 5
        %v2625 = vrot.slane %v2615, 5
        %v2626 = vrot.slane %v2617, 5
        %v2627 = vrot.slane %v2619, 5
        %v2628 = vrot.slane %v2621, 5
        %v2629 = vrot.slane %v2623, 5
        %v2630 = vsel %vm395, %v2628, %v2629
        %v2631 = vsel %vm395, %v2627, %v2628
        %v2632 = vsel %vm395, %v2626, %v2627
        %v2633 = vsel %vm395, %v2625, %v2626
        %v2634 = vsel %vm395, %v2624, %v2625
        %v2635 = vsel %vm395, %v2629, %v2624
        %s2636 = sld [smem:[#allocation6 + %s1340]]
        %v2637 = vstv %s2636
        %v2638 = vmul.f32 %v2637, %v2635
        %v2639 = vmul.f32 %v2637, %v2634
        %v2640 = vmul.f32 %v2637, %v2633
        %v2641 = vmul.f32 %v2637, %v2632
        %v2642 = vmul.f32 %v2637, %v2631
        %v2643 = vmul.f32 %v2637, %v2630
        %v2644 = vadd.f32 %v2606, %v2638
        %v2645 = vadd.f32 %v2607, %v2639
        %v2646 = vadd.f32 %v2608, %v2640
        %v2647 = vadd.f32 %v2609, %v2641
        %v2648 = vadd.f32 %v2610, %v2642
        %v2649 = vadd.f32 %v2611, %v2643
        %v2650 = vrot.slane %v2613, 6
        %v2651 = vrot.slane %v2615, 6
        %v2652 = vrot.slane %v2617, 6
        %v2653 = vrot.slane %v2619, 6
        %v2654 = vrot.slane %v2621, 6
        %v2655 = vrot.slane %v2623, 6
        %v2656 = vsel %vm423, %v2654, %v2655
        %v2657 = vsel %vm423, %v2653, %v2654
        %v2658 = vsel %vm423, %v2652, %v2653
        %v2659 = vsel %vm423, %v2651, %v2652
        %v2660 = vsel %vm423, %v2650, %v2651
        %v2661 = vsel %vm423, %v2655, %v2650
        %s2662 = sld [smem:[#allocation6 + %s1367]]
        %v2663 = vstv %s2662
        %v2664 = vmul.f32 %v2663, %v2661
        %v2665 = vmul.f32 %v2663, %v2660
        %v2666 = vmul.f32 %v2663, %v2659
        %v2667 = vmul.f32 %v2663, %v2658
        %v2668 = vmul.f32 %v2663, %v2657
        %v2669 = vmul.f32 %v2663, %v2656
        %v2670 = vadd.f32 %v2644, %v2664
        %v2671 = vadd.f32 %v2645, %v2665
        %v2672 = vadd.f32 %v2646, %v2666
        %v2673 = vadd.f32 %v2647, %v2667
        %v2674 = vadd.f32 %v2648, %v2668
        %v2675 = vadd.f32 %v2649, %v2669
        %v2676 = vrot.slane %v2613, 7
        %v2677 = vrot.slane %v2615, 7
        %v2678 = vrot.slane %v2617, 7
        %v2679 = vrot.slane %v2619, 7
        %v2680 = vrot.slane %v2621, 7
        %v2681 = vrot.slane %v2623, 7
        %v2682 = vsel %vm451, %v2680, %v2681
        %v2683 = vsel %vm451, %v2679, %v2680
        %v2684 = vsel %vm451, %v2678, %v2679
        %v2685 = vsel %vm451, %v2677, %v2678
        %v2686 = vsel %vm451, %v2676, %v2677
        %v2687 = vsel %vm451, %v2681, %v2676
        %s2688 = sld [smem:[#allocation6 + %s1394]]
        %v2689 = vstv %s2688
        %v2690 = vmul.f32 %v2689, %v2687
        %v2691 = vmul.f32 %v2689, %v2686
        %v2692 = vmul.f32 %v2689, %v2685
        %v2693 = vmul.f32 %v2689, %v2684
        %v2694 = vmul.f32 %v2689, %v2683
        %v2695 = vmul.f32 %v2689, %v2682
        %v2696 = vadd.f32 %v2670, %v2690
        %v2697 = vadd.f32 %v2671, %v2691
        %v2698 = vadd.f32 %v2672, %v2692
        %v2699 = vadd.f32 %v2673, %v2693
        %v2700 = vadd.f32 %v2674, %v2694
        %v2701 = vadd.f32 %v2675, %v2695
        %s2702 = sld [smem:[#allocation6 + %s1409]]
        %v2703 = vstv %s2702
        %v2704 = vmul.f32 %v2703, %v2613
        %v2705 = vmul.f32 %v2703, %v2615
        %v2706 = vmul.f32 %v2703, %v2617
        %v2707 = vmul.f32 %v2703, %v2619
        %v2708 = vmul.f32 %v2703, %v2621
        %v2709 = vmul.f32 %v2703, %v2623
        %v2710 = vadd.f32 %v2696, %v2704
        %v2711 = vadd.f32 %v2697, %v2705
        %v2712 = vadd.f32 %v2698, %v2706
        %v2713 = vadd.f32 %v2699, %v2707
        %v2714 = vadd.f32 %v2700, %v2708
        %v2715 = vadd.f32 %v2701, %v2709
        %v2716 = vrot.slane %v2613, 1
        %v2717 = vrot.slane %v2615, 1
        %v2718 = vrot.slane %v2617, 1
        %v2719 = vrot.slane %v2619, 1
        %v2720 = vrot.slane %v2621, 1
        %v2721 = vrot.slane %v2623, 1
        %v2722 = vsel %vm494, %v2720, %v2721
        %v2723 = vsel %vm494, %v2719, %v2720
        %v2724 = vsel %vm494, %v2718, %v2719
        %v2725 = vsel %vm494, %v2717, %v2718
        %v2726 = vsel %vm494, %v2716, %v2717
        %v2727 = vsel %vm494, %v2721, %v2716
        %s2728 = sld [smem:[#allocation6 + %s1436]]
        %v2729 = vstv %s2728
        %v2730 = vmul.f32 %v2729, %v2726
        %v2731 = vmul.f32 %v2729, %v2725
        %v2732 = vmul.f32 %v2729, %v2724
        %v2733 = vmul.f32 %v2729, %v2723
        %v2734 = vmul.f32 %v2729, %v2722
        %v2735 = vmul.f32 %v2729, %v2727
        %v2736 = vadd.f32 %v2710, %v2730
        %v2737 = vadd.f32 %v2711, %v2731
        %v2738 = vadd.f32 %v2712, %v2732
        %v2739 = vadd.f32 %v2713, %v2733
        %v2740 = vadd.f32 %v2714, %v2734
        %v2741 = vadd.f32 %v2715, %v2735
        %v2742 = vrot.slane %v2613, 2
        %v2743 = vrot.slane %v2615, 2
        %v2744 = vrot.slane %v2617, 2
        %v2745 = vrot.slane %v2619, 2
        %v2746 = vrot.slane %v2621, 2
        %v2747 = vrot.slane %v2623, 2
        %v2748 = vsel %vm522, %v2746, %v2747
        %v2749 = vsel %vm522, %v2745, %v2746
        %v2750 = vsel %vm522, %v2744, %v2745
        %v2751 = vsel %vm522, %v2743, %v2744
        %v2752 = vsel %vm522, %v2742, %v2743
        %v2753 = vsel %vm522, %v2747, %v2742
        %s2754 = sld [smem:[#allocation6 + %s1463]]
        %v2755 = vstv %s2754
        %v2756 = vmul.f32 %v2755, %v2752
        %v2757 = vmul.f32 %v2755, %v2751
        %v2758 = vmul.f32 %v2755, %v2750
        %v2759 = vmul.f32 %v2755, %v2749
        %v2760 = vmul.f32 %v2755, %v2748
        %v2761 = vmul.f32 %v2755, %v2753
        %v2762 = vadd.f32 %v2736, %v2756
        %v2763 = vadd.f32 %v2737, %v2757
        %v2764 = vadd.f32 %v2738, %v2758
        %v2765 = vadd.f32 %v2739, %v2759
        %v2766 = vadd.f32 %v2740, %v2760
        %v2767 = vadd.f32 %v2741, %v2761
        %v2768 = vrot.slane %v2613, 3
        %v2769 = vrot.slane %v2615, 3
        %v2770 = vrot.slane %v2617, 3
        %v2771 = vrot.slane %v2619, 3
        %v2772 = vrot.slane %v2621, 3
        %v2773 = vrot.slane %v2623, 3
        %v2774 = vsel %vm550, %v2772, %v2773
        %v2775 = vsel %vm550, %v2771, %v2772
        %v2776 = vsel %vm550, %v2770, %v2771
        %v2777 = vsel %vm550, %v2769, %v2770
        %v2778 = vsel %vm550, %v2768, %v2769
        %v2779 = vsel %vm550, %v2773, %v2768
        %s2780 = sld [smem:[#allocation6 + %s1490]]
        %v2781 = vstv %s2780
        %v2782 = vmul.f32 %v2781, %v2778
        %v2783 = vmul.f32 %v2781, %v2777
        %v2784 = vmul.f32 %v2781, %v2776
        %v2785 = vmul.f32 %v2781, %v2775
        %v2786 = vmul.f32 %v2781, %v2774
        %v2787 = vmul.f32 %v2781, %v2779
        %v2788 = vadd.f32 %v2762, %v2782
        %v2789 = vadd.f32 %v2763, %v2783
        %v2790 = vadd.f32 %v2764, %v2784
        %v2791 = vadd.f32 %v2765, %v2785
        %v2792 = vadd.f32 %v2766, %v2786
        %v2793 = vadd.f32 %v2767, %v2787
        %2794 = vrot.lane.b32.xlu0 %v1708, 125
        %v2795 = vpop.permute.xlu0 %2794
        %2796 = vrot.lane.b32.xlu0 %v1709, 125
        %v2797 = vpop.permute.xlu0 %2796
        %2798 = vrot.lane.b32.xlu0 %v1710, 125
        %v2799 = vpop.permute.xlu0 %2798
        %2800 = vrot.lane.b32.xlu0 %v1711, 125
        %v2801 = vpop.permute.xlu0 %2800
        %2802 = vrot.lane.b32.xlu0 %v1712, 125
        %v2803 = vpop.permute.xlu0 %2802
        %2804 = vrot.lane.b32.xlu0 %v1713, 125
        %v2805 = vpop.permute.xlu0 %2804
        %v2806 = vrot.slane %v2795, 5
        %v2807 = vrot.slane %v2797, 5
        %v2808 = vrot.slane %v2799, 5
        %v2809 = vrot.slane %v2801, 5
        %v2810 = vrot.slane %v2803, 5
        %v2811 = vrot.slane %v2805, 5
        %v2812 = vsel %vm395, %v2810, %v2811
        %v2813 = vsel %vm395, %v2809, %v2810
        %v2814 = vsel %vm395, %v2808, %v2809
        %v2815 = vsel %vm395, %v2807, %v2808
        %v2816 = vsel %vm395, %v2806, %v2807
        %v2817 = vsel %vm395, %v2811, %v2806
        %s2818 = sld [smem:[#allocation6 + %s1529]]
        %v2819 = vstv %s2818
        %v2820 = vmul.f32 %v2819, %v2817
        %v2821 = vmul.f32 %v2819, %v2816
        %v2822 = vmul.f32 %v2819, %v2815
        %v2823 = vmul.f32 %v2819, %v2814
        %v2824 = vmul.f32 %v2819, %v2813
        %v2825 = vmul.f32 %v2819, %v2812
        %v2826 = vadd.f32 %v2788, %v2820
        %v2827 = vadd.f32 %v2789, %v2821
        %v2828 = vadd.f32 %v2790, %v2822
        %v2829 = vadd.f32 %v2791, %v2823
        %v2830 = vadd.f32 %v2792, %v2824
        %v2831 = vadd.f32 %v2793, %v2825
        %v2832 = vrot.slane %v2795, 6
        %v2833 = vrot.slane %v2797, 6
        %v2834 = vrot.slane %v2799, 6
        %v2835 = vrot.slane %v2801, 6
        %v2836 = vrot.slane %v2803, 6
        %v2837 = vrot.slane %v2805, 6
        %v2838 = vsel %vm423, %v2836, %v2837
        %v2839 = vsel %vm423, %v2835, %v2836
        %v2840 = vsel %vm423, %v2834, %v2835
        %v2841 = vsel %vm423, %v2833, %v2834
        %v2842 = vsel %vm423, %v2832, %v2833
        %v2843 = vsel %vm423, %v2837, %v2832
        %s2844 = sld [smem:[#allocation6 + %s1556]]
        %v2845 = vstv %s2844
        %v2846 = vmul.f32 %v2845, %v2843
        %v2847 = vmul.f32 %v2845, %v2842
        %v2848 = vmul.f32 %v2845, %v2841
        %v2849 = vmul.f32 %v2845, %v2840
        %v2850 = vmul.f32 %v2845, %v2839
        %v2851 = vmul.f32 %v2845, %v2838
        %v2852 = vadd.f32 %v2826, %v2846
        %v2853 = vadd.f32 %v2827, %v2847
        %v2854 = vadd.f32 %v2828, %v2848
        %v2855 = vadd.f32 %v2829, %v2849
        %v2856 = vadd.f32 %v2830, %v2850
        %v2857 = vadd.f32 %v2831, %v2851
        %v2858 = vrot.slane %v2795, 7
        %v2859 = vrot.slane %v2797, 7
        %v2860 = vrot.slane %v2799, 7
        %v2861 = vrot.slane %v2801, 7
        %v2862 = vrot.slane %v2803, 7
        %v2863 = vrot.slane %v2805, 7
        %v2864 = vsel %vm451, %v2862, %v2863
        %v2865 = vsel %vm451, %v2861, %v2862
        %v2866 = vsel %vm451, %v2860, %v2861
        %v2867 = vsel %vm451, %v2859, %v2860
        %v2868 = vsel %vm451, %v2858, %v2859
        %v2869 = vsel %vm451, %v2863, %v2858
        %s2870 = sld [smem:[#allocation6 + %s1583]]
        %v2871 = vstv %s2870
        %v2872 = vmul.f32 %v2871, %v2869
        %v2873 = vmul.f32 %v2871, %v2868
        %v2874 = vmul.f32 %v2871, %v2867
        %v2875 = vmul.f32 %v2871, %v2866
        %v2876 = vmul.f32 %v2871, %v2865
        %v2877 = vmul.f32 %v2871, %v2864
        %v2878 = vadd.f32 %v2852, %v2872
        %v2879 = vadd.f32 %v2853, %v2873
        %v2880 = vadd.f32 %v2854, %v2874
        %v2881 = vadd.f32 %v2855, %v2875
        %v2882 = vadd.f32 %v2856, %v2876
        %v2883 = vadd.f32 %v2857, %v2877
        %s2884 = sld [smem:[#allocation6 + %s1598]]
        %v2885 = vstv %s2884
        %v2886 = vmul.f32 %v2885, %v2795
        %v2887 = vmul.f32 %v2885, %v2797
        %v2888 = vmul.f32 %v2885, %v2799
        %v2889 = vmul.f32 %v2885, %v2801
        %v2890 = vmul.f32 %v2885, %v2803
        %v2891 = vmul.f32 %v2885, %v2805
        %v2892 = vadd.f32 %v2878, %v2886
        %v2893 = vadd.f32 %v2879, %v2887
        %v2894 = vadd.f32 %v2880, %v2888
        %v2895 = vadd.f32 %v2881, %v2889
        %v2896 = vadd.f32 %v2882, %v2890
        %v2897 = vadd.f32 %v2883, %v2891
        %v2898 = vrot.slane %v2795, 1
        %v2899 = vrot.slane %v2797, 1
        %v2900 = vrot.slane %v2799, 1
        %v2901 = vrot.slane %v2801, 1
        %v2902 = vrot.slane %v2803, 1
        %v2903 = vrot.slane %v2805, 1
        %v2904 = vsel %vm494, %v2902, %v2903
        %v2905 = vsel %vm494, %v2901, %v2902
        %v2906 = vsel %vm494, %v2900, %v2901
        %v2907 = vsel %vm494, %v2899, %v2900
        %v2908 = vsel %vm494, %v2898, %v2899
        %v2909 = vsel %vm494, %v2903, %v2898
        %s2910 = sld [smem:[#allocation6 + %s1625]]
        %v2911 = vstv %s2910
        %v2912 = vmul.f32 %v2911, %v2908
        %v2913 = vmul.f32 %v2911, %v2907
        %v2914 = vmul.f32 %v2911, %v2906
        %v2915 = vmul.f32 %v2911, %v2905
        %v2916 = vmul.f32 %v2911, %v2904
        %v2917 = vmul.f32 %v2911, %v2909
        %v2918 = vadd.f32 %v2892, %v2912
        %v2919 = vadd.f32 %v2893, %v2913
        %v2920 = vadd.f32 %v2894, %v2914
        %v2921 = vadd.f32 %v2895, %v2915
        %v2922 = vadd.f32 %v2896, %v2916
        %v2923 = vadd.f32 %v2897, %v2917
        %v2924 = vrot.slane %v2795, 2
        %v2925 = vrot.slane %v2797, 2
        %v2926 = vrot.slane %v2799, 2
        %v2927 = vrot.slane %v2801, 2
        %v2928 = vrot.slane %v2803, 2
        %v2929 = vrot.slane %v2805, 2
        %v2930 = vsel %vm522, %v2928, %v2929
        %v2931 = vsel %vm522, %v2927, %v2928
        %v2932 = vsel %vm522, %v2926, %v2927
        %v2933 = vsel %vm522, %v2925, %v2926
        %v2934 = vsel %vm522, %v2924, %v2925
        %v2935 = vsel %vm522, %v2929, %v2924
        %s2936 = sld [smem:[#allocation6 + %s1652]]
        %v2937 = vstv %s2936
        %v2938 = vmul.f32 %v2937, %v2934
        %v2939 = vmul.f32 %v2937, %v2933
        %v2940 = vmul.f32 %v2937, %v2932
        %v2941 = vmul.f32 %v2937, %v2931
        %v2942 = vmul.f32 %v2937, %v2930
        %v2943 = vmul.f32 %v2937, %v2935
        %v2944 = vadd.f32 %v2918, %v2938
        %v2945 = vadd.f32 %v2919, %v2939
        %v2946 = vadd.f32 %v2920, %v2940
        %v2947 = vadd.f32 %v2921, %v2941
        %v2948 = vadd.f32 %v2922, %v2942
        %v2949 = vadd.f32 %v2923, %v2943
        %v2950 = vrot.slane %v2795, 3
        %v2951 = vrot.slane %v2797, 3
        %v2952 = vrot.slane %v2799, 3
        %v2953 = vrot.slane %v2801, 3
        %v2954 = vrot.slane %v2803, 3
        %v2955 = vrot.slane %v2805, 3
        %v2956 = vsel %vm550, %v2954, %v2955
        %v2957 = vsel %vm550, %v2953, %v2954
        %v2958 = vsel %vm550, %v2952, %v2953
        %v2959 = vsel %vm550, %v2951, %v2952
        %v2960 = vsel %vm550, %v2950, %v2951
        %v2961 = vsel %vm550, %v2955, %v2950
        %s2962 = sld [smem:[#allocation6 + %s1679]]
        %v2963 = vstv %s2962
        %v2964 = vmul.f32 %v2963, %v2960
        %v2965 = vmul.f32 %v2963, %v2959
        %v2966 = vmul.f32 %v2963, %v2958
        %v2967 = vmul.f32 %v2963, %v2957
        %v2968 = vmul.f32 %v2963, %v2956
        %v2969 = vmul.f32 %v2963, %v2961
        %v2970 = vadd.f32 %v2944, %v2964
        %v2971 = vadd.f32 %v2945, %v2965
        %v2972 = vadd.f32 %v2946, %v2966
        %v2973 = vadd.f32 %v2947, %v2967
        %v2974 = vadd.f32 %v2948, %v2968
        %v2975 = vadd.f32 %v2949, %v2969
        %s2976 = sld [smem:[#allocation7 + %s23]]
        %v2977 = vstv %s2976
        %v2978 = vadd.f32 %v2970, %v2977
        %v2979 = vadd.f32 %v2971, %v2977
        %v2980 = vadd.f32 %v2972, %v2977
        %v2981 = vadd.f32 %v2973, %v2977
        %v2982 = vadd.f32 %v2974, %v2977
        %v2983 = vadd.f32 %v2975, %v2977
        %v2984 = vsub.f32 0.0, %v2978
        %v2985 = vsub.f32 0.0, %v2979
        %v2986 = vsub.f32 0.0, %v2980
        %v2987 = vsub.f32 0.0, %v2981
        %v2988 = vsub.f32 0.0, %v2982
        %v2989 = vsub.f32 0.0, %v2983
        %v2990 = vmul.f32 %v2984, 1.442695
        %v2991 = vpow.pop %v2990
        %v2992 = vmul.f32 %v2985, 1.442695
        %v2993 = vpow.pop %v2992
        %v2994 = vmul.f32 %v2986, 1.442695
        %v2995 = vpow.pop %v2994
        %v2996 = vmul.f32 %v2987, 1.442695
        %v2997 = vpow.pop %v2996
        %v2998 = vmul.f32 %v2988, 1.442695
        %v2999 = vpow.pop %v2998
        %v3000 = vmul.f32 %v2989, 1.442695
        %v3001 = vpow.pop %v3000
        %v3002 = vadd.f32 %v2991, 1.0
        %v3003 = vadd.f32 %v2993, 1.0
        %v3004 = vadd.f32 %v2995, 1.0
        %v3005 = vadd.f32 %v2997, 1.0
        %v3006 = vadd.f32 %v2999, 1.0
        %v3007 = vadd.f32 %v3001, 1.0
        %v3008 = vrcp.pop %v3002
        %v3009 = vrcp.pop %v3003
        %v3010 = vrcp.pop %v3004
        %v3011 = vrcp.pop %v3005
        %v3012 = vrcp.pop %v3006
        %v3013 = vrcp.pop %v3007
        %v3014 = vmul.f32 %v3008, %v349
        %v3015 = vmul.f32 %v3009, %v350
        %v3016 = vmul.f32 %v3010, %v351
        %v3017 = vmul.f32 %v3011, %v352
        %v3018 = vmul.f32 %v3012, %v353
        %v3019 = vmul.f32 %v3013, %v354
        %3020 = vst [vmem:[%s312] sm:$0xff] %v3014
        %3021 = vst [vmem:[%s312 + $0x8] sm:$0xff] %v3015
        %3022 = vst [vmem:[%s312 + $0x10] sm:$0xff] %v3016
        %3023 = vst [vmem:[%s312 + $0x18] sm:$0xff] %v3017
        %3024 = vst [vmem:[%s312 + $0x20] sm:$0xff] %v3018
        %3025 = vst [vmem:[%s312 + $0x28] sm:$0xff] %v3019
        %p3026 = scmp.lt.s32.totalorder %s23, 1
        %s3027 = scalar_select %p3026, %s23, 1
        %p3028 = scmp.lt.s32.totalorder %s24, 0
        %s3029 = scalar_select %p3028, %s24, 0
        %s3030 = smul.addr %s3029, 6
        %s3031 = smul.addr %s3027, 6
        %s3032 = sadd.s32 %s3030, %s3031
        %s3033 = smul.addr %s3032, 8
        %s3034 = scalar_lea.vmem %s5, %s3033
        // Predicated region
        $region57: #{decov_net_individual.6} parent=39 // pred_check
          %p3035 = pneg %p163
        $region58: #{decov_net_individual.6} parent=39 // pred_check_branch
          %3037 = sbr.rel (%p3035) target = $region60
        $region59: #{decov_net_individual.6} parent=39 // pred_region
          _
        $region60: #{decov_net_individual.6} parent=39 // pred_fallthru
          _
      $region40: #{decov_net_individual.6} parent=5 // pred_fallthru
        _
      %p3038 = scmp.le.s32.totalorder 2, %s14
      // Predicated region
      $region61: #{decov_net_individual.6} parent=5 // pred_check
        %p3039 = pneg %p3038
      $region62: #{decov_net_individual.6} parent=5 // pred_check_branch
        %3041 = sbr.rel (%p3039) target = $region64
      $region63: #{decov_net_individual.6} parent=5 // pred_region
        %s3042 = ssub.s32 %s14, 2
        // Predicated region
        $region65: #{decov_net_individual.6} parent=63 // pred_check
          %p3043 = pneg %p169
        $region66: #{decov_net_individual.6} parent=63 // pred_check_branch
          %3045 = sbr.rel (%p3043) target = $region68
        $region67: #{decov_net_individual.6} parent=63 // pred_region
          %p3046 = scmp.lt.s32.totalorder %s25, 1
          %s3047 = scalar_select %p3046, %s25, 1
          %p3048 = scmp.lt.s32.totalorder %s26, 0
          %s3049 = scalar_select %p3048, %s26, 0
          %s3050 = smul.addr %s3049, 6
          %s3051 = smul.addr %s3047, 6
          %s3052 = sadd.s32 %s3050, %s3051
          %s3053 = smul.addr %s3052, 8
          %s3054 = scalar_lea.vmem %s5, %s3053
        $region68: #{decov_net_individual.6} parent=63 // pred_fallthru
          _
      $region64: #{decov_net_individual.6} parent=5 // pred_fallthru
        _
    $region6: #{decov_net_individual.6} parent=1 // loop_footer
      %s18 = sadd.s32 1, %s14
    $region7: #{decov_net_individual.6} parent=1 // loop_footer_branch
      %13 = sbr.rel target = $region3
    $region8: #{decov_net_individual.6} parent=1 // loop_exit
      _
    %3055 = vsyncpa [#allocation3], 1
    %s3056 = scalar_lea.sflag [#allocation3], 1
    %3057 = vsyncpa %s3056, 1
    %3058 = vsyncpa [#allocation5], 1
    %3059 = vsyncpa [#allocation8], 1

// kernel: decov_net_individual.7
$region0: #{decov_net_individual.7}
  #allocation0 [shape = 'u32[]', space=smem, size = 0x4, offset = 0x4, fixed_abs, tag = 'smem constant byte address 0x4 - core index']
  #allocation1 [shape = 'u32[144,128]{1,0:T(1,128)}', space=vmem, size = 0x12000, scoped, tag = 'internal scratch']
  %s0 = inlined_call_operand.vmem [shape: f32[1,64,64], index: 0, kind: input, shape index: {}]
  %s1 = inlined_call_operand.vmem [shape: f32[1,64,64], index: 1, kind: input, shape index: {}]
  %s2 = inlined_call_operand.vmem [shape: f32[1,64,64], index: 2, kind: input, shape index: {}]
  %s3 = inlined_call_operand.vmem [shape: f32[1,64,64], index: 3, kind: input, shape index: {}]
  %s4 = inlined_call_operand.vmem [shape: f32[2,64,64], index: 4, kind: input, shape index: {}]
  %s5 = inlined_call_operand.vmem [shape: f32[2,64,64], index: 5, kind: input, shape index: {}]
  %s6 = inlined_call_operand.vmem [shape: f32[2,1,64,64], index: 6, kind: input, shape index: {}]
  %s7 = inlined_call_operand.vmem [shape: f32[2,1,64,64], index: 7, kind: input, shape index: {}]
  %s8 = inlined_call_operand.vmem [shape: f32[1,64,64], index: 8, kind: output, shape index: {0}]
  %s9 = inlined_call_operand.vmem [shape: f32[1,64,64], index: 9, kind: output, shape index: {1}]
  %10 = xla_tuple %s8, %s9
  %s11 = sld [smem:[#allocation0]]
  $region50: #{decov_net_individual.7} parent=0
    _
  %s13 = ssub.s32 1, %s11
  %s14 = scalar_select 0, %s13, %s11
  // Predicated region
  $region2: #{decov_net_individual.7} parent=0 // pred_check
    _
  $region3: #{decov_net_individual.7} parent=0 // pred_check_branch
    %16 = sbr.rel (0) target = $region5
  $region4: #{decov_net_individual.7} parent=0 // pred_region
    _
  $region5: #{decov_net_individual.7} parent=0 // pred_fallthru
    _
  // Predicated region
  $region6: #{decov_net_individual.7} parent=0 // pred_check
    _
  $region7: #{decov_net_individual.7} parent=0 // pred_check_branch
    %18 = sbr.rel (0) target = $region9
  $region8: #{decov_net_individual.7} parent=0 // pred_region
    _
  $region9: #{decov_net_individual.7} parent=0 // pred_fallthru
    _
  // Predicated region
  $region10: #{decov_net_individual.7} parent=0 // pred_check
    _
  $region11: #{decov_net_individual.7} parent=0 // pred_check_branch
    %20 = sbr.rel (0) target = $region13
  $region12: #{decov_net_individual.7} parent=0 // pred_region
    _
  $region13: #{decov_net_individual.7} parent=0 // pred_fallthru
    _
  // Predicated region
  $region14: #{decov_net_individual.7} parent=0 // pred_check
    _
  $region15: #{decov_net_individual.7} parent=0 // pred_check_branch
    %22 = sbr.rel (0) target = $region17
  $region16: #{decov_net_individual.7} parent=0 // pred_region
    _
  $region17: #{decov_net_individual.7} parent=0 // pred_fallthru
    _
  // Predicated region
  $region18: #{decov_net_individual.7} parent=0 // pred_check
    _
  $region19: #{decov_net_individual.7} parent=0 // pred_check_branch
    %24 = sbr.rel (0) target = $region21
  $region20: #{decov_net_individual.7} parent=0 // pred_region
    _
  $region21: #{decov_net_individual.7} parent=0 // pred_fallthru
    _
  // Predicated region
  $region22: #{decov_net_individual.7} parent=0 // pred_check
    _
  $region23: #{decov_net_individual.7} parent=0 // pred_check_branch
    %26 = sbr.rel (0) target = $region25
  $region24: #{decov_net_individual.7} parent=0 // pred_region
    _
  $region25: #{decov_net_individual.7} parent=0 // pred_fallthru
    _
  // Predicated region
  $region26: #{decov_net_individual.7} parent=0 // pred_check
    _
  $region27: #{decov_net_individual.7} parent=0 // pred_check_branch
    %28 = sbr.rel (0) target = $region29
  $region28: #{decov_net_individual.7} parent=0 // pred_region
    _
  $region29: #{decov_net_individual.7} parent=0 // pred_fallthru
    _
  // Predicated region
  $region30: #{decov_net_individual.7} parent=0 // pred_check
    _
  $region31: #{decov_net_individual.7} parent=0 // pred_check_branch
    %30 = sbr.rel (0) target = $region33
  $region32: #{decov_net_individual.7} parent=0 // pred_region
    _
  $region33: #{decov_net_individual.7} parent=0 // pred_fallthru
    _
  %v31 = vld [vmem:[%s0] sm:$0xff]
  %v32 = vld [vmem:[%s0 + $0x8] sm:$0xff]
  %v33 = vld [vmem:[%s0 + $0x10] sm:$0xff]
  %v34 = vld [vmem:[%s0 + $0x18] sm:$0xff]
  %v35 = vld [vmem:[%s0 + $0x20] sm:$0xff]
  %v36 = vld [vmem:[%s0 + $0x28] sm:$0xff]
  %v37 = vld [vmem:[%s0 + $0x30] sm:$0xff]
  %v38 = vld [vmem:[%s0 + $0x38] sm:$0xff]
  %v39 = vld [vmem:[%s1] sm:$0xff]
  %v40 = vld [vmem:[%s1 + $0x8] sm:$0xff]
  %v41 = vld [vmem:[%s1 + $0x10] sm:$0xff]
  %v42 = vld [vmem:[%s1 + $0x18] sm:$0xff]
  %v43 = vld [vmem:[%s1 + $0x20] sm:$0xff]
  %v44 = vld [vmem:[%s1 + $0x28] sm:$0xff]
  %v45 = vld [vmem:[%s1 + $0x30] sm:$0xff]
  %v46 = vld [vmem:[%s1 + $0x38] sm:$0xff]
  %v47 = vld [vmem:[%s2] sm:$0xff]
  %v48 = vld [vmem:[%s2 + $0x8] sm:$0xff]
  %v49 = vld [vmem:[%s2 + $0x10] sm:$0xff]
  %v50 = vld [vmem:[%s2 + $0x18] sm:$0xff]
  %v51 = vld [vmem:[%s2 + $0x20] sm:$0xff]
  %v52 = vld [vmem:[%s2 + $0x28] sm:$0xff]
  %v53 = vld [vmem:[%s2 + $0x30] sm:$0xff]
  %v54 = vld [vmem:[%s2 + $0x38] sm:$0xff]
  %v55 = vld [vmem:[%s3] sm:$0xff]
  %v56 = vld [vmem:[%s3 + $0x8] sm:$0xff]
  %v57 = vld [vmem:[%s3 + $0x10] sm:$0xff]
  %v58 = vld [vmem:[%s3 + $0x18] sm:$0xff]
  %v59 = vld [vmem:[%s3 + $0x20] sm:$0xff]
  %v60 = vld [vmem:[%s3 + $0x28] sm:$0xff]
  %v61 = vld [vmem:[%s3 + $0x30] sm:$0xff]
  %v62 = vld [vmem:[%s3 + $0x38] sm:$0xff]
  %v63 = vmul.f32 %v31, %v31
  %v64 = vmul.f32 %v32, %v32
  %v65 = vmul.f32 %v33, %v33
  %v66 = vmul.f32 %v34, %v34
  %v67 = vmul.f32 %v35, %v35
  %v68 = vmul.f32 %v36, %v36
  %v69 = vmul.f32 %v37, %v37
  %v70 = vmul.f32 %v38, %v38
  %v71 = vmul.f32 %v39, %v39
  %v72 = vmul.f32 %v40, %v40
  %v73 = vmul.f32 %v41, %v41
  %v74 = vmul.f32 %v42, %v42
  %v75 = vmul.f32 %v43, %v43
  %v76 = vmul.f32 %v44, %v44
  %v77 = vmul.f32 %v45, %v45
  %v78 = vmul.f32 %v46, %v46
  %v79 = vadd.f32 %v63, %v71
  %v80 = vadd.f32 %v64, %v72
  %v81 = vadd.f32 %v65, %v73
  %v82 = vadd.f32 %v66, %v74
  %v83 = vadd.f32 %v67, %v75
  %v84 = vadd.f32 %v68, %v76
  %v85 = vadd.f32 %v69, %v77
  %v86 = vadd.f32 %v70, %v78
  %v87 = vmul.f32 %v31, %v47
  %v88 = vmul.f32 %v32, %v48
  %v89 = vmul.f32 %v33, %v49
  %v90 = vmul.f32 %v34, %v50
  %v91 = vmul.f32 %v35, %v51
  %v92 = vmul.f32 %v36, %v52
  %v93 = vmul.f32 %v37, %v53
  %v94 = vmul.f32 %v38, %v54
  %v95 = vmul.f32 %v39, %v55
  %v96 = vmul.f32 %v40, %v56
  %v97 = vmul.f32 %v41, %v57
  %v98 = vmul.f32 %v42, %v58
  %v99 = vmul.f32 %v43, %v59
  %v100 = vmul.f32 %v44, %v60
  %v101 = vmul.f32 %v45, %v61
  %v102 = vmul.f32 %v46, %v62
  %v103 = vadd.f32 %v87, %v95
  %v104 = vadd.f32 %v88, %v96
  %v105 = vadd.f32 %v89, %v97
  %v106 = vadd.f32 %v90, %v98
  %v107 = vadd.f32 %v91, %v99
  %v108 = vadd.f32 %v92, %v100
  %v109 = vadd.f32 %v93, %v101
  %v110 = vadd.f32 %v94, %v102
  %v111 = vmul.f32 %v31, %v55
  %v112 = vmul.f32 %v32, %v56
  %v113 = vmul.f32 %v33, %v57
  %v114 = vmul.f32 %v34, %v58
  %v115 = vmul.f32 %v35, %v59
  %v116 = vmul.f32 %v36, %v60
  %v117 = vmul.f32 %v37, %v61
  %v118 = vmul.f32 %v38, %v62
  %v119 = vmul.f32 %v39, %v47
  %v120 = vmul.f32 %v40, %v48
  %v121 = vmul.f32 %v41, %v49
  %v122 = vmul.f32 %v42, %v50
  %v123 = vmul.f32 %v43, %v51
  %v124 = vmul.f32 %v44, %v52
  %v125 = vmul.f32 %v45, %v53
  %v126 = vmul.f32 %v46, %v54
  %v127 = vsub.f32 %v111, %v119
  %v128 = vsub.f32 %v112, %v120
  %v129 = vsub.f32 %v113, %v121
  %v130 = vsub.f32 %v114, %v122
  %v131 = vsub.f32 %v115, %v123
  %v132 = vsub.f32 %v116, %v124
  %v133 = vsub.f32 %v117, %v125
  %v134 = vsub.f32 %v118, %v126
  %v135 = vld [vmem:[%s4] sm:$0xff]
  %v136 = vld [vmem:[%s4 + $0x8] sm:$0xff]
  %v137 = vld [vmem:[%s4 + $0x10] sm:$0xff]
  %v138 = vld [vmem:[%s4 + $0x18] sm:$0xff]
  %v139 = vld [vmem:[%s4 + $0x20] sm:$0xff]
  %v140 = vld [vmem:[%s4 + $0x28] sm:$0xff]
  %v141 = vld [vmem:[%s4 + $0x30] sm:$0xff]
  %v142 = vld [vmem:[%s4 + $0x38] sm:$0xff]
  %v143 = vld [vmem:[%s5] sm:$0xff]
  %v144 = vld [vmem:[%s5 + $0x8] sm:$0xff]
  %v145 = vld [vmem:[%s5 + $0x10] sm:$0xff]
  %v146 = vld [vmem:[%s5 + $0x18] sm:$0xff]
  %v147 = vld [vmem:[%s5 + $0x20] sm:$0xff]
  %v148 = vld [vmem:[%s5 + $0x28] sm:$0xff]
  %v149 = vld [vmem:[%s5 + $0x30] sm:$0xff]
  %v150 = vld [vmem:[%s5 + $0x38] sm:$0xff]
  %v151 = vld [vmem:[%s6] sm:$0xff]
  %v152 = vld [vmem:[%s6 + $0x8] sm:$0xff]
  %v153 = vld [vmem:[%s6 + $0x10] sm:$0xff]
  %v154 = vld [vmem:[%s6 + $0x18] sm:$0xff]
  %v155 = vld [vmem:[%s6 + $0x20] sm:$0xff]
  %v156 = vld [vmem:[%s6 + $0x28] sm:$0xff]
  %v157 = vld [vmem:[%s6 + $0x30] sm:$0xff]
  %v158 = vld [vmem:[%s6 + $0x38] sm:$0xff]
  %v159 = vld [vmem:[%s7] sm:$0xff]
  %v160 = vld [vmem:[%s7 + $0x8] sm:$0xff]
  %v161 = vld [vmem:[%s7 + $0x10] sm:$0xff]
  %v162 = vld [vmem:[%s7 + $0x18] sm:$0xff]
  %v163 = vld [vmem:[%s7 + $0x20] sm:$0xff]
  %v164 = vld [vmem:[%s7 + $0x28] sm:$0xff]
  %v165 = vld [vmem:[%s7 + $0x30] sm:$0xff]
  %v166 = vld [vmem:[%s7 + $0x38] sm:$0xff]
  %v167 = vmul.f32 %v135, %v135
  %v168 = vmul.f32 %v136, %v136
  %v169 = vmul.f32 %v137, %v137
  %v170 = vmul.f32 %v138, %v138
  %v171 = vmul.f32 %v139, %v139
  %v172 = vmul.f32 %v140, %v140
  %v173 = vmul.f32 %v141, %v141
  %v174 = vmul.f32 %v142, %v142
  %v175 = vadd.f32 %v79, %v167
  %v176 = vadd.f32 %v80, %v168
  %v177 = vadd.f32 %v81, %v169
  %v178 = vadd.f32 %v82, %v170
  %v179 = vadd.f32 %v83, %v171
  %v180 = vadd.f32 %v84, %v172
  %v181 = vadd.f32 %v85, %v173
  %v182 = vadd.f32 %v86, %v174
  %v183 = vmul.f32 %v143, %v143
  %v184 = vmul.f32 %v144, %v144
  %v185 = vmul.f32 %v145, %v145
  %v186 = vmul.f32 %v146, %v146
  %v187 = vmul.f32 %v147, %v147
  %v188 = vmul.f32 %v148, %v148
  %v189 = vmul.f32 %v149, %v149
  %v190 = vmul.f32 %v150, %v150
  %v191 = vadd.f32 %v175, %v183
  %v192 = vadd.f32 %v176, %v184
  %v193 = vadd.f32 %v177, %v185
  %v194 = vadd.f32 %v178, %v186
  %v195 = vadd.f32 %v179, %v187
  %v196 = vadd.f32 %v180, %v188
  %v197 = vadd.f32 %v181, %v189
  %v198 = vadd.f32 %v182, %v190
  %v199 = vmul.f32 %v135, %v151
  %v200 = vmul.f32 %v136, %v152
  %v201 = vmul.f32 %v137, %v153
  %v202 = vmul.f32 %v138, %v154
  %v203 = vmul.f32 %v139, %v155
  %v204 = vmul.f32 %v140, %v156
  %v205 = vmul.f32 %v141, %v157
  %v206 = vmul.f32 %v142, %v158
  %v207 = vadd.f32 %v103, %v199
  %v208 = vadd.f32 %v104, %v200
  %v209 = vadd.f32 %v105, %v201
  %v210 = vadd.f32 %v106, %v202
  %v211 = vadd.f32 %v107, %v203
  %v212 = vadd.f32 %v108, %v204
  %v213 = vadd.f32 %v109, %v205
  %v214 = vadd.f32 %v110, %v206
  %v215 = vmul.f32 %v143, %v159
  %v216 = vmul.f32 %v144, %v160
  %v217 = vmul.f32 %v145, %v161
  %v218 = vmul.f32 %v146, %v162
  %v219 = vmul.f32 %v147, %v163
  %v220 = vmul.f32 %v148, %v164
  %v221 = vmul.f32 %v149, %v165
  %v222 = vmul.f32 %v150, %v166
  %v223 = vadd.f32 %v207, %v215
  %v224 = vadd.f32 %v208, %v216
  %v225 = vadd.f32 %v209, %v217
  %v226 = vadd.f32 %v210, %v218
  %v227 = vadd.f32 %v211, %v219
  %v228 = vadd.f32 %v212, %v220
  %v229 = vadd.f32 %v213, %v221
  %v230 = vadd.f32 %v214, %v222
  %v231 = vmul.f32 %v135, %v159
  %v232 = vmul.f32 %v136, %v160
  %v233 = vmul.f32 %v137, %v161
  %v234 = vmul.f32 %v138, %v162
  %v235 = vmul.f32 %v139, %v163
  %v236 = vmul.f32 %v140, %v164
  %v237 = vmul.f32 %v141, %v165
  %v238 = vmul.f32 %v142, %v166
  %v239 = vadd.f32 %v127, %v231
  %v240 = vadd.f32 %v128, %v232
  %v241 = vadd.f32 %v129, %v233
  %v242 = vadd.f32 %v130, %v234
  %v243 = vadd.f32 %v131, %v235
  %v244 = vadd.f32 %v132, %v236
  %v245 = vadd.f32 %v133, %v237
  %v246 = vadd.f32 %v134, %v238
  %v247 = vmul.f32 %v143, %v151
  %v248 = vmul.f32 %v144, %v152
  %v249 = vmul.f32 %v145, %v153
  %v250 = vmul.f32 %v146, %v154
  %v251 = vmul.f32 %v147, %v155
  %v252 = vmul.f32 %v148, %v156
  %v253 = vmul.f32 %v149, %v157
  %v254 = vmul.f32 %v150, %v158
  %v255 = vsub.f32 %v239, %v247
  %v256 = vsub.f32 %v240, %v248
  %v257 = vsub.f32 %v241, %v249
  %v258 = vsub.f32 %v242, %v250
  %v259 = vsub.f32 %v243, %v251
  %v260 = vsub.f32 %v244, %v252
  %v261 = vsub.f32 %v245, %v253
  %v262 = vsub.f32 %v246, %v254
  %s263 = scalar_lea.vmem %s4, 64
  %v264 = vld [vmem:[%s263] sm:$0xff]
  %v265 = vld [vmem:[%s263 + $0x8] sm:$0xff]
  %v266 = vld [vmem:[%s263 + $0x10] sm:$0xff]
  %v267 = vld [vmem:[%s263 + $0x18] sm:$0xff]
  %v268 = vld [vmem:[%s263 + $0x20] sm:$0xff]
  %v269 = vld [vmem:[%s263 + $0x28] sm:$0xff]
  %v270 = vld [vmem:[%s263 + $0x30] sm:$0xff]
  %v271 = vld [vmem:[%s263 + $0x38] sm:$0xff]
  %s272 = scalar_lea.vmem %s5, 64
  %v273 = vld [vmem:[%s272] sm:$0xff]
  %v274 = vld [vmem:[%s272 + $0x8] sm:$0xff]
  %v275 = vld [vmem:[%s272 + $0x10] sm:$0xff]
  %v276 = vld [vmem:[%s272 + $0x18] sm:$0xff]
  %v277 = vld [vmem:[%s272 + $0x20] sm:$0xff]
  %v278 = vld [vmem:[%s272 + $0x28] sm:$0xff]
  %v279 = vld [vmem:[%s272 + $0x30] sm:$0xff]
  %v280 = vld [vmem:[%s272 + $0x38] sm:$0xff]
  %s281 = scalar_lea.vmem %s6, 64
  %v282 = vld [vmem:[%s281] sm:$0xff]
  %v283 = vld [vmem:[%s281 + $0x8] sm:$0xff]
  %v284 = vld [vmem:[%s281 + $0x10] sm:$0xff]
  %v285 = vld [vmem:[%s281 + $0x18] sm:$0xff]
  %v286 = vld [vmem:[%s281 + $0x20] sm:$0xff]
  %v287 = vld [vmem:[%s281 + $0x28] sm:$0xff]
  %v288 = vld [vmem:[%s281 + $0x30] sm:$0xff]
  %v289 = vld [vmem:[%s281 + $0x38] sm:$0xff]
  %s290 = scalar_lea.vmem %s7, 64
  %v291 = vld [vmem:[%s290] sm:$0xff]
  %v292 = vld [vmem:[%s290 + $0x8] sm:$0xff]
  %v293 = vld [vmem:[%s290 + $0x10] sm:$0xff]
  %v294 = vld [vmem:[%s290 + $0x18] sm:$0xff]
  %v295 = vld [vmem:[%s290 + $0x20] sm:$0xff]
  %v296 = vld [vmem:[%s290 + $0x28] sm:$0xff]
  %v297 = vld [vmem:[%s290 + $0x30] sm:$0xff]
  %v298 = vld [vmem:[%s290 + $0x38] sm:$0xff]
  %v299 = vmul.f32 %v264, %v264
  %v300 = vmul.f32 %v265, %v265
  %v301 = vmul.f32 %v266, %v266
  %v302 = vmul.f32 %v267, %v267
  %v303 = vmul.f32 %v268, %v268
  %v304 = vmul.f32 %v269, %v269
  %v305 = vmul.f32 %v270, %v270
  %v306 = vmul.f32 %v271, %v271
  %v307 = vadd.f32 %v191, %v299
  %v308 = vadd.f32 %v192, %v300
  %v309 = vadd.f32 %v193, %v301
  %v310 = vadd.f32 %v194, %v302
  %v311 = vadd.f32 %v195, %v303
  %v312 = vadd.f32 %v196, %v304
  %v313 = vadd.f32 %v197, %v305
  %v314 = vadd.f32 %v198, %v306
  %v315 = vmul.f32 %v273, %v273
  %v316 = vmul.f32 %v274, %v274
  %v317 = vmul.f32 %v275, %v275
  %v318 = vmul.f32 %v276, %v276
  %v319 = vmul.f32 %v277, %v277
  %v320 = vmul.f32 %v278, %v278
  %v321 = vmul.f32 %v279, %v279
  %v322 = vmul.f32 %v280, %v280
  %v323 = vadd.f32 %v307, %v315
  %v324 = vadd.f32 %v308, %v316
  %v325 = vadd.f32 %v309, %v317
  %v326 = vadd.f32 %v310, %v318
  %v327 = vadd.f32 %v311, %v319
  %v328 = vadd.f32 %v312, %v320
  %v329 = vadd.f32 %v313, %v321
  %v330 = vadd.f32 %v314, %v322
  %v331 = vmul.f32 %v264, %v282
  %v332 = vmul.f32 %v265, %v283
  %v333 = vmul.f32 %v266, %v284
  %v334 = vmul.f32 %v267, %v285
  %v335 = vmul.f32 %v268, %v286
  %v336 = vmul.f32 %v269, %v287
  %v337 = vmul.f32 %v270, %v288
  %v338 = vmul.f32 %v271, %v289
  %v339 = vadd.f32 %v223, %v331
  %v340 = vadd.f32 %v224, %v332
  %v341 = vadd.f32 %v225, %v333
  %v342 = vadd.f32 %v226, %v334
  %v343 = vadd.f32 %v227, %v335
  %v344 = vadd.f32 %v228, %v336
  %v345 = vadd.f32 %v229, %v337
  %v346 = vadd.f32 %v230, %v338
  %v347 = vmul.f32 %v273, %v291
  %v348 = vmul.f32 %v274, %v292
  %v349 = vmul.f32 %v275, %v293
  %v350 = vmul.f32 %v276, %v294
  %v351 = vmul.f32 %v277, %v295
  %v352 = vmul.f32 %v278, %v296
  %v353 = vmul.f32 %v279, %v297
  %v354 = vmul.f32 %v280, %v298
  %v355 = vadd.f32 %v339, %v347
  %v356 = vadd.f32 %v340, %v348
  %v357 = vadd.f32 %v341, %v349
  %v358 = vadd.f32 %v342, %v350
  %v359 = vadd.f32 %v343, %v351
  %v360 = vadd.f32 %v344, %v352
  %v361 = vadd.f32 %v345, %v353
  %v362 = vadd.f32 %v346, %v354
  %v363 = vmul.f32 %v264, %v291
  %v364 = vmul.f32 %v265, %v292
  %v365 = vmul.f32 %v266, %v293
  %v366 = vmul.f32 %v267, %v294
  %v367 = vmul.f32 %v268, %v295
  %v368 = vmul.f32 %v269, %v296
  %v369 = vmul.f32 %v270, %v297
  %v370 = vmul.f32 %v271, %v298
  %v371 = vadd.f32 %v255, %v363
  %v372 = vadd.f32 %v256, %v364
  %v373 = vadd.f32 %v257, %v365
  %v374 = vadd.f32 %v258, %v366
  %v375 = vadd.f32 %v259, %v367
  %v376 = vadd.f32 %v260, %v368
  %v377 = vadd.f32 %v261, %v369
  %v378 = vadd.f32 %v262, %v370
  %v379 = vmul.f32 %v273, %v282
  %v380 = vmul.f32 %v274, %v283
  %v381 = vmul.f32 %v275, %v284
  %v382 = vmul.f32 %v276, %v285
  %v383 = vmul.f32 %v277, %v286
  %v384 = vmul.f32 %v278, %v287
  %v385 = vmul.f32 %v279, %v288
  %v386 = vmul.f32 %v280, %v289
  %v387 = vsub.f32 %v371, %v379
  %v388 = vsub.f32 %v372, %v380
  %v389 = vsub.f32 %v373, %v381
  %v390 = vsub.f32 %v374, %v382
  %v391 = vsub.f32 %v375, %v383
  %v392 = vsub.f32 %v376, %v384
  %v393 = vsub.f32 %v377, %v385
  %v394 = vsub.f32 %v378, %v386
  %v395 = vrcp.pop %v323
  %v396 = vrcp.pop %v324
  %v397 = vrcp.pop %v325
  %v398 = vrcp.pop %v326
  %v399 = vrcp.pop %v327
  %v400 = vrcp.pop %v328
  %v401 = vrcp.pop %v329
  %v402 = vrcp.pop %v330
  %v403 = vmul.f32 %v355, %v395
  %v404 = vmul.f32 %v356, %v396
  %v405 = vmul.f32 %v357, %v397
  %v406 = vmul.f32 %v358, %v398
  %v407 = vmul.f32 %v359, %v399
  %v408 = vmul.f32 %v360, %v400
  %v409 = vmul.f32 %v361, %v401
  %v410 = vmul.f32 %v362, %v402
  %vm411 = vcmask 523264
  %412 = vst.msk [vmem:[%s8] sm:$0xff] %vm411, %v403
  %413 = vst.msk [vmem:[%s8 + $0x8] sm:$0xff] %vm411, %v404
  %414 = vst.msk [vmem:[%s8 + $0x10] sm:$0xff] %vm411, %v405
  %415 = vst.msk [vmem:[%s8 + $0x18] sm:$0xff] %vm411, %v406
  %416 = vst.msk [vmem:[%s8 + $0x20] sm:$0xff] %vm411, %v407
  %417 = vst.msk [vmem:[%s8 + $0x28] sm:$0xff] %vm411, %v408
  %418 = vst.msk [vmem:[%s8 + $0x30] sm:$0xff] %vm411, %v409
  %419 = vst.msk [vmem:[%s8 + $0x38] sm:$0xff] %vm411, %v410
  %v420 = vmul.f32 %v387, %v395
  %v421 = vmul.f32 %v388, %v396
  %v422 = vmul.f32 %v389, %v397
  %v423 = vmul.f32 %v390, %v398
  %v424 = vmul.f32 %v391, %v399
  %v425 = vmul.f32 %v392, %v400
  %v426 = vmul.f32 %v393, %v401
  %v427 = vmul.f32 %v394, %v402
  %428 = vst.msk [vmem:[%s9] sm:$0xff] %vm411, %v420
  %429 = vst.msk [vmem:[%s9 + $0x8] sm:$0xff] %vm411, %v421
  %430 = vst.msk [vmem:[%s9 + $0x10] sm:$0xff] %vm411, %v422
  %431 = vst.msk [vmem:[%s9 + $0x18] sm:$0xff] %vm411, %v423
  %432 = vst.msk [vmem:[%s9 + $0x20] sm:$0xff] %vm411, %v424
  %433 = vst.msk [vmem:[%s9 + $0x28] sm:$0xff] %vm411, %v425
  %434 = vst.msk [vmem:[%s9 + $0x30] sm:$0xff] %vm411, %v426
  %435 = vst.msk [vmem:[%s9 + $0x38] sm:$0xff] %vm411, %v427
  // Predicated region
  $region34: #{decov_net_individual.7} parent=0 // pred_check
    _
  $region35: #{decov_net_individual.7} parent=0 // pred_check_branch
    %437 = sbr.rel (0) target = $region37
  $region36: #{decov_net_individual.7} parent=0 // pred_region
    _
  $region37: #{decov_net_individual.7} parent=0 // pred_fallthru
    _
  // Predicated region
  $region38: #{decov_net_individual.7} parent=0 // pred_check
    _
  $region39: #{decov_net_individual.7} parent=0 // pred_check_branch
    %439 = sbr.rel (0) target = $region41
  $region40: #{decov_net_individual.7} parent=0 // pred_region
    _
  $region41: #{decov_net_individual.7} parent=0 // pred_fallthru
    _
  // Predicated region
  $region42: #{decov_net_individual.7} parent=0 // pred_check
    _
  $region43: #{decov_net_individual.7} parent=0 // pred_check_branch
    %441 = sbr.rel (0) target = $region45
  $region44: #{decov_net_individual.7} parent=0 // pred_region
    _
  $region45: #{decov_net_individual.7} parent=0 // pred_fallthru
    _
  // Predicated region
  $region46: #{decov_net_individual.7} parent=0 // pred_check
    _
  $region47: #{decov_net_individual.7} parent=0 // pred_check_branch
    %443 = sbr.rel (0) target = $region49
  $region48: #{decov_net_individual.7} parent=0 // pred_region
    _
  $region49: #{decov_net_individual.7} parent=0 // pred_fallthru
    _

// kernel: decov_net_individual.8
$region0: #{decov_net_individual.8}
  #allocation0 [shape = 'u32[]', space=smem, size = 0x4, offset = 0x4, fixed_abs, tag = 'smem constant byte address 0x4 - core index']
  #allocation1 [shape = 'u32[144,128]{1,0:T(1,128)}', space=vmem, size = 0x12000, scoped, tag = 'internal scratch']
  %s0 = inlined_call_operand.vmem [shape: f32[1,40,40], index: 0, kind: input, shape index: {}]
  %s1 = inlined_call_operand.vmem [shape: f32[1,40,40], index: 1, kind: input, shape index: {}]
  %s2 = inlined_call_operand.vmem [shape: f32[1,40,40], index: 2, kind: input, shape index: {}]
  %s3 = inlined_call_operand.vmem [shape: f32[1,40,40], index: 3, kind: output, shape index: {}]
  %s4 = sld [smem:[#allocation0]]
  $region22: #{decov_net_individual.8} parent=0
    _
  %s6 = ssub.s32 1, %s4
  %s7 = scalar_select 0, %s6, %s4
  // Predicated region
  $region2: #{decov_net_individual.8} parent=0 // pred_check
    _
  $region3: #{decov_net_individual.8} parent=0 // pred_check_branch
    %9 = sbr.rel (0) target = $region5
  $region4: #{decov_net_individual.8} parent=0 // pred_region
    _
  $region5: #{decov_net_individual.8} parent=0 // pred_fallthru
    _
  // Predicated region
  $region6: #{decov_net_individual.8} parent=0 // pred_check
    _
  $region7: #{decov_net_individual.8} parent=0 // pred_check_branch
    %11 = sbr.rel (0) target = $region9
  $region8: #{decov_net_individual.8} parent=0 // pred_region
    _
  $region9: #{decov_net_individual.8} parent=0 // pred_fallthru
    _
  // Predicated region
  $region10: #{decov_net_individual.8} parent=0 // pred_check
    _
  $region11: #{decov_net_individual.8} parent=0 // pred_check_branch
    %13 = sbr.rel (0) target = $region13
  $region12: #{decov_net_individual.8} parent=0 // pred_region
    _
  $region13: #{decov_net_individual.8} parent=0 // pred_fallthru
    _
  %v14 = vld [vmem:[%s0] sm:$0xff]
  %v15 = vld [vmem:[%s0 + $0x8] sm:$0xff]
  %v16 = vld [vmem:[%s0 + $0x10] sm:$0xff]
  %v17 = vld [vmem:[%s0 + $0x18] sm:$0xff]
  %v18 = vld [vmem:[%s0 + $0x20] sm:$0xff]
  %v19 = vld [vmem:[%s1] sm:$0xff]
  %v20 = vld [vmem:[%s1 + $0x8] sm:$0xff]
  %v21 = vld [vmem:[%s1 + $0x10] sm:$0xff]
  %v22 = vld [vmem:[%s1 + $0x18] sm:$0xff]
  %v23 = vld [vmem:[%s1 + $0x20] sm:$0xff]
  %v24 = vmul.f32 %v19, 4.0
  %v25 = vmul.f32 %v20, 4.0
  %v26 = vmul.f32 %v21, 4.0
  %v27 = vmul.f32 %v22, 4.0
  %v28 = vmul.f32 %v23, 4.0
  %v29 = vadd.f32 %v14, %v24
  %v30 = vadd.f32 %v15, %v25
  %v31 = vadd.f32 %v16, %v26
  %v32 = vadd.f32 %v17, %v27
  %v33 = vadd.f32 %v18, %v28
  %v34 = vld [vmem:[%s2] sm:$0xff]
  %v35 = vld [vmem:[%s2 + $0x8] sm:$0xff]
  %v36 = vld [vmem:[%s2 + $0x10] sm:$0xff]
  %v37 = vld [vmem:[%s2 + $0x18] sm:$0xff]
  %v38 = vld [vmem:[%s2 + $0x20] sm:$0xff]
  %v39 = vmul.f32 %v29, %v34
  %v40 = vmul.f32 %v30, %v35
  %v41 = vmul.f32 %v31, %v36
  %v42 = vmul.f32 %v32, %v37
  %v43 = vmul.f32 %v33, %v38
  %vm44 = vcmask 326656
  %45 = vst.msk [vmem:[%s3] sm:$0xff] %vm44, %v39
  %46 = vst.msk [vmem:[%s3 + $0x8] sm:$0xff] %vm44, %v40
  %47 = vst.msk [vmem:[%s3 + $0x10] sm:$0xff] %vm44, %v41
  %48 = vst.msk [vmem:[%s3 + $0x18] sm:$0xff] %vm44, %v42
  %49 = vst.msk [vmem:[%s3 + $0x20] sm:$0xff] %vm44, %v43
  // Predicated region
  $region14: #{decov_net_individual.8} parent=0 // pred_check
    _
  $region15: #{decov_net_individual.8} parent=0 // pred_check_branch
    %51 = sbr.rel (0) target = $region17
  $region16: #{decov_net_individual.8} parent=0 // pred_region
    _
  $region17: #{decov_net_individual.8} parent=0 // pred_fallthru
    _
  // Predicated region
  $region18: #{decov_net_individual.8} parent=0 // pred_check
    _
  $region19: #{decov_net_individual.8} parent=0 // pred_check_branch
    %53 = sbr.rel (0) target = $region21
  $region20: #{decov_net_individual.8} parent=0 // pred_region
    _
  $region21: #{decov_net_individual.8} parent=0 // pred_fallthru
    _

// kernel: decov_net_individual.11
$region0: #{decov_net_individual.11}
  #allocation0 [shape = 'u32[]', space=smem, size = 0x4, offset = 0x4, fixed_abs, tag = 'smem constant byte address 0x4 - core index']
  #allocation1 [shape = 'u32[144,128]{1,0:T(1,128)}', space=vmem, size = 0x12000, scoped, tag = 'internal scratch']
  %s0 = inlined_call_operand.vmem [shape: f32[1,40,40], index: 0, kind: input, shape index: {}]
  %s1 = inlined_call_operand.vmem [shape: f32[1,40,40], index: 1, kind: input, shape index: {}]
  %s2 = inlined_call_operand.vmem [shape: f32[1,40,40], index: 2, kind: input, shape index: {}]
  %s3 = inlined_call_operand.hbm [shape: f32[1,40,40], index: 3, kind: output, shape index: {}]
  %s4 = sld [smem:[#allocation0]]
  $region22: #{decov_net_individual.11} parent=0
    _
  %s6 = ssub.s32 1, %s4
  %s7 = scalar_select 0, %s6, %s4
  $region1: #{decov_net_individual.11} parent=0
    #allocation2 [shape = 'u8[20480]{0}', space=vmem, size = 0x5000, scoped, tag = 'output window, operand 0, single buffered']
    #allocation3 [shape = 's32[1]{0}', space=sflag, size = 0x4, scoped, tag = 'scoped memory for decov_net_individual.11']
    %8 = vsyncpa [#allocation3], 0
    // Predicated region
    $region2: #{decov_net_individual.11} parent=1 // pred_check
      _
    $region3: #{decov_net_individual.11} parent=1 // pred_check_branch
      %10 = sbr.rel (0) target = $region5
    $region4: #{decov_net_individual.11} parent=1 // pred_region
      _
    $region5: #{decov_net_individual.11} parent=1 // pred_fallthru
      _
    // Predicated region
    $region6: #{decov_net_individual.11} parent=1 // pred_check
      _
    $region7: #{decov_net_individual.11} parent=1 // pred_check_branch
      %12 = sbr.rel (0) target = $region9
    $region8: #{decov_net_individual.11} parent=1 // pred_region
      _
    $region9: #{decov_net_individual.11} parent=1 // pred_fallthru
      _
    // Predicated region
    $region10: #{decov_net_individual.11} parent=1 // pred_check
      _
    $region11: #{decov_net_individual.11} parent=1 // pred_check_branch
      %14 = sbr.rel (0) target = $region13
    $region12: #{decov_net_individual.11} parent=1 // pred_region
      _
    $region13: #{decov_net_individual.11} parent=1 // pred_fallthru
      _
    %v15 = vld [vmem:[%s0] sm:$0xff]
    %v16 = vld [vmem:[%s0 + $0x8] sm:$0xff]
    %v17 = vld [vmem:[%s0 + $0x10] sm:$0xff]
    %v18 = vld [vmem:[%s0 + $0x18] sm:$0xff]
    %v19 = vld [vmem:[%s0 + $0x20] sm:$0xff]
    %v20 = vld [vmem:[%s1] sm:$0xff]
    %v21 = vld [vmem:[%s1 + $0x8] sm:$0xff]
    %v22 = vld [vmem:[%s1 + $0x10] sm:$0xff]
    %v23 = vld [vmem:[%s1 + $0x18] sm:$0xff]
    %v24 = vld [vmem:[%s1 + $0x20] sm:$0xff]
    %v25 = vmul.f32 %v20, 4.0
    %v26 = vmul.f32 %v21, 4.0
    %v27 = vmul.f32 %v22, 4.0
    %v28 = vmul.f32 %v23, 4.0
    %v29 = vmul.f32 %v24, 4.0
    %v30 = vadd.f32 %v15, %v25
    %v31 = vadd.f32 %v16, %v26
    %v32 = vadd.f32 %v17, %v27
    %v33 = vadd.f32 %v18, %v28
    %v34 = vadd.f32 %v19, %v29
    %v35 = vld [vmem:[%s2] sm:$0xff]
    %v36 = vld [vmem:[%s2 + $0x8] sm:$0xff]
    %v37 = vld [vmem:[%s2 + $0x10] sm:$0xff]
    %v38 = vld [vmem:[%s2 + $0x18] sm:$0xff]
    %v39 = vld [vmem:[%s2 + $0x20] sm:$0xff]
    %v40 = vmul.f32 %v30, %v35
    %v41 = vmul.f32 %v31, %v36
    %v42 = vmul.f32 %v32, %v37
    %v43 = vmul.f32 %v33, %v38
    %v44 = vmul.f32 %v34, %v39
    %vm45 = vcmask 326656
    %46 = vst.msk [vmem:[#allocation2] sm:$0xff] %vm45, %v40
    %47 = vst.msk [vmem:[#allocation2 + $0x8] sm:$0xff] %vm45, %v41
    %48 = vst.msk [vmem:[#allocation2 + $0x10] sm:$0xff] %vm45, %v42
    %49 = vst.msk [vmem:[#allocation2 + $0x18] sm:$0xff] %vm45, %v43
    %50 = vst.msk [vmem:[#allocation2 + $0x20] sm:$0xff] %vm45, %v44
    // Predicated region
    $region14: #{decov_net_individual.11} parent=1 // pred_check
      _
    $region15: #{decov_net_individual.11} parent=1 // pred_check_branch
      %52 = sbr.rel (0) target = $region17
    $region16: #{decov_net_individual.11} parent=1 // pred_region
      %s54 = ssub.s32 640, 640
      %55 = vsyncadd [#allocation3], %s54
      %s56 = sshll.u32 [#allocation2], 4
      %s57 = int_to_ptr.vmem [resolvable:$true] %s56
      %62 = dma.vmem_to_hbm [thread:$0]  %s57, 640, %s3, [#allocation3], 128, 128, 8
    $region17: #{decov_net_individual.11} parent=1 // pred_fallthru
      _
    // Predicated region
    $region18: #{decov_net_individual.11} parent=1 // pred_check
      _
    $region19: #{decov_net_individual.11} parent=1 // pred_check_branch
      %64 = sbr.rel (0) target = $region21
    $region20: #{decov_net_individual.11} parent=1 // pred_region
      %65 = dma.done [#allocation3], 640
    $region21: #{decov_net_individual.11} parent=1 // pred_fallthru
      _
    %66 = vsyncpa [#allocation3], 1

</llo_original>
